<compile_context>
chip_gen: v7x
topology: tpu7x:2x2x1
jax: 0.10.0
libtpu: 0.0.40
codegen_flags: <defaults>
</compile_context>

<pallas_src>
import functools
import math

import jax
import jax.numpy as jnp
from jax import lax
from jax.experimental import pallas as pl
from jax.experimental.pallas import tpu as pltpu


def _layer_norm(x, gamma, beta, eps=1e-5):
    mu = jnp.mean(x, axis=-1, keepdims=True)
    xc = x - mu
    var = jnp.mean(xc * xc, axis=-1, keepdims=True)
    return xc * lax.rsqrt(var + eps) * gamma + beta


# -----------------------------------------------------------------------------
# Fused kernel: one batch element per grid step.
# -----------------------------------------------------------------------------
def hierarchical_layer_kernel(rs_ref, x_ref, ln1g_ref, ln1b_ref,
                              wq_ref, bq_ref, wk_ref, bk_ref, wv_ref, bv_ref,
                              wo_ref, bo_ref, ln2g_ref, ln2b_ref,
                              w1_ref, b1_ref, w2_ref, b2_ref,
                              o_ref, *, num_heads, head_dim):
    x = x_ref[0]                                      # (S, D) fp32
    rs = jnp.abs(rs_ref[0])                           # |residual_scale| scalar

    # ---- norm1 + multi-head self-attention (dropout = identity in eval mode)
    hn = _layer_norm(x, ln1g_ref[...], ln1b_ref[...])
    scale = 1.0 / math.sqrt(head_dim)

    acc = jnp.zeros(x.shape, jnp.float32)
    for h in range(num_heads):                        # static head loop
        q = jnp.dot(hn, wq_ref[h], preferred_element_type=jnp.float32) + bq_ref[h]
        k = jnp.dot(hn, wk_ref[h], preferred_element_type=jnp.float32) + bk_ref[h]
        v = jnp.dot(hn, wv_ref[h], preferred_element_type=jnp.float32) + bv_ref[h]

        # scores[i, j] = sum_c q[i, c] * k[j, c]  -> (S, S), scaled by 1/sqrt(Dh)
        s = lax.dot_general(q, k, (((1,), (1,)), ((), ())),
                            preferred_element_type=jnp.float32) * scale
        s = s - jnp.max(s, axis=-1, keepdims=True)
        e = jnp.exp(s)
        p = e * pl.reciprocal(jnp.sum(e, axis=-1, keepdims=True), approx=True)

        ctx = jnp.dot(p, v, preferred_element_type=jnp.float32)        # (S, Dh)
        # o_proj applied per head-slab: sum_h ctx_h @ Wo_h  (== concat @ Wo^T)
        acc = acc + jnp.dot(ctx, wo_ref[h], preferred_element_type=jnp.float32)
    attended = acc + bo_ref[...]

    x1 = x + rs * attended

    # ---- norm2 + feed-forward (Linear -> ReLU -> Linear -> ReLU)
    h2 = _layer_norm(x1, ln2g_ref[...], ln2b_ref[...])
    ff = jnp.maximum(
        jnp.dot(h2, w1_ref[...], preferred_element_type=jnp.float32) + b1_ref[...],
        0.0)
    ff = jnp.maximum(
        jnp.dot(ff, w2_ref[...], preferred_element_type=jnp.float32) + b2_ref[...],
        0.0)

    o_ref[0] = x1 + rs * ff


# -----------------------------------------------------------------------------
# Wrapper: handles the optional 4D <-> 3D view and the single pallas_call.
# -----------------------------------------------------------------------------
def hierarchical_layer_forward(x, params, *, num_heads):
    orig_shape = x.shape
    if x.ndim == 4:
        b, h, w, d = x.shape
        x3 = x.reshape(b, h * w, d)
    else:
        x3 = x
    B, S, D = x3.shape
    head_dim = D // num_heads

    def full(shape):
        return pl.BlockSpec(shape, lambda i, _n=len(shape): (0,) * _n)

    per_batch = pl.BlockSpec((1, S, D), lambda i: (i, 0, 0))

    out = pl.pallas_call(
        functools.partial(hierarchical_layer_kernel,
                          num_heads=num_heads, head_dim=head_dim),
        out_shape=jax.ShapeDtypeStruct((B, S, D), jnp.float32),
        grid=(B,),
        in_specs=[
            pl.BlockSpec(memory_space=pltpu.MemorySpace.SMEM),            # rs (1,)
            per_batch,                                                    # x
            full((1, D)), full((1, D)),                                   # ln1 g/b
            full((num_heads, D, head_dim)), full((num_heads, 1, head_dim)),   # wq,bq
            full((num_heads, D, head_dim)), full((num_heads, 1, head_dim)),   # wk,bk
            full((num_heads, D, head_dim)), full((num_heads, 1, head_dim)),   # wv,bv
            full((num_heads, head_dim, D)), full((1, D)),                 # wo, bo
            full((1, D)), full((1, D)),                                   # ln2 g/b
            full((D, 2 * D)), full((1, 2 * D)),                           # w1, b1
            full((2 * D, D)), full((1, D)),                               # w2, b2
        ],
        out_specs=per_batch,
        compiler_params=pltpu.CompilerParams(dimension_semantics=("parallel",)),
    )(params["rs"], x3,
      params["ln1_g"], params["ln1_b"],
      params["wq"], params["bq"], params["wk"], params["bk"],
      params["wv"], params["bv"], params["wo"], params["bo"],
      params["ln2_g"], params["ln2_b"],
      params["w1"], params["b1"], params["w2"], params["b2"])

    if len(orig_shape) == 4:
        out = out.reshape(orig_shape)
    return out


# -----------------------------------------------------------------------------
# Deterministic synthetic parameters (PyTorch Linear (out, in) weights are
# represented pre-transposed / pre-split per head).
# -----------------------------------------------------------------------------
def init_params(key, D, num_heads):
    Dh = D // num_heads
    keys = iter(jax.random.split(key, 32))

    def nrm(shape, scale=0.05):
        return scale * jax.random.normal(next(keys), shape, dtype=jnp.float32)

    params = {}
    params["rs"] = jnp.array([0.1], dtype=jnp.float32)          # residual_scale
    params["ln1_g"] = 1.0 + 0.1 * jax.random.normal(next(keys), (1, D), jnp.float32)
    params["ln1_b"] = 0.1 * jax.random.normal(next(keys), (1, D), jnp.float32)
    params["wq"], params["bq"] = nrm((num_heads, D, Dh)), nrm((num_heads, 1, Dh))
    params["wk"], params["bk"] = nrm((num_heads, D, Dh)), nrm((num_heads, 1, Dh))
    params["wv"], params["bv"] = nrm((num_heads, D, Dh)), nrm((num_heads, 1, Dh))
    params["wo"], params["bo"] = nrm((num_heads, Dh, D)), nrm((1, D))
    params["ln2_g"] = 1.0 + 0.1 * jax.random.normal(next(keys), (1, D), jnp.float32)
    params["ln2_b"] = 0.1 * jax.random.normal(next(keys), (1, D), jnp.float32)
    params["w1"], params["b1"] = nrm((D, 2 * D)), nrm((1, 2 * D))
    params["w2"], params["b2"] = nrm((2 * D, D)), nrm((1, D))
    return params


if __name__ == "__main__":
    # 4D input (b, h, w, d) exercises the view(b, h*w, d) path of the module.
    B, Himg, Wimg, D = 2, 8, 8, 32
    num_heads = 4

    key = jax.random.PRNGKey(0)
    kx, kp = jax.random.split(key)
    x = jax.random.normal(kx, (B, Himg, Wimg, D), dtype=jnp.float32)
    params = init_params(kp, D, num_heads)

    fwd = jax.jit(functools.partial(hierarchical_layer_forward, num_heads=num_heads))
    out = jax.block_until_ready(fwd(x, params))

    assert out.shape == x.shape and out.dtype == jnp.float32
    assert bool(jnp.all(jnp.isfinite(out)))
    # TODO(synk): MultiHeadAttention.last_attn_weights (.detach().cpu().numpy()
    # logging side effect) has no in-kernel equivalent and is omitted.
    print("KERNEL_OK")
</pallas_src>

<mosaic_0001>
module attributes {stable_mosaic.version = 11 : i64} {
  func.func @hierarchical_layer_kernel(%arg0: i32, %arg1: memref<1xf32, #tpu.memory_space<smem>>, %arg2: memref<1x64x32xf32, #tpu.memory_space<vmem>>, %arg3: memref<1x32xf32, #tpu.memory_space<vmem>>, %arg4: memref<1x32xf32, #tpu.memory_space<vmem>>, %arg5: memref<4x32x8xf32, #tpu.memory_space<vmem>>, %arg6: memref<4x1x8xf32, #tpu.memory_space<vmem>>, %arg7: memref<4x32x8xf32, #tpu.memory_space<vmem>>, %arg8: memref<4x1x8xf32, #tpu.memory_space<vmem>>, %arg9: memref<4x32x8xf32, #tpu.memory_space<vmem>>, %arg10: memref<4x1x8xf32, #tpu.memory_space<vmem>>, %arg11: memref<4x8x32xf32, #tpu.memory_space<vmem>>, %arg12: memref<1x32xf32, #tpu.memory_space<vmem>>, %arg13: memref<1x32xf32, #tpu.memory_space<vmem>>, %arg14: memref<1x32xf32, #tpu.memory_space<vmem>>, %arg15: memref<32x64xf32, #tpu.memory_space<vmem>>, %arg16: memref<1x64xf32, #tpu.memory_space<vmem>>, %arg17: memref<64x32xf32, #tpu.memory_space<vmem>>, %arg18: memref<1x32xf32, #tpu.memory_space<vmem>>, %arg19: memref<1x64x32xf32, #tpu.memory_space<vmem>>) attributes {dimension_semantics = [#tpu.dimension_semantics<parallel>], iteration_bounds = array<i64: 2>, scalar_prefetch = 0 : i64, scratch_operands = 0 : i64, tpu.core_type = #tpu.core_type<tc>, window_params = [{transform_indices = @transform_0, window_bounds = array<i64: 1>}, {transform_indices = @transform_1, window_bounds = array<i64: 1, 64, 32>}, {pipeline_mode = #tpu.pipeline_mode<synchronous>, transform_indices = @transform_2, window_bounds = array<i64: 1, 32>}, {pipeline_mode = #tpu.pipeline_mode<synchronous>, transform_indices = @transform_3, window_bounds = array<i64: 1, 32>}, {pipeline_mode = #tpu.pipeline_mode<synchronous>, transform_indices = @transform_4, window_bounds = array<i64: 4, 32, 8>}, {pipeline_mode = #tpu.pipeline_mode<synchronous>, transform_indices = @transform_5, window_bounds = array<i64: 4, 1, 8>}, {pipeline_mode = #tpu.pipeline_mode<synchronous>, transform_indices = @transform_6, window_bounds = array<i64: 4, 32, 8>}, {pipeline_mode = #tpu.pipeline_mode<synchronous>, transform_indices = @transform_7, window_bounds = array<i64: 4, 1, 8>}, {pipeline_mode = #tpu.pipeline_mode<synchronous>, transform_indices = @transform_8, window_bounds = array<i64: 4, 32, 8>}, {pipeline_mode = #tpu.pipeline_mode<synchronous>, transform_indices = @transform_9, window_bounds = array<i64: 4, 1, 8>}, {pipeline_mode = #tpu.pipeline_mode<synchronous>, transform_indices = @transform_10, window_bounds = array<i64: 4, 8, 32>}, {pipeline_mode = #tpu.pipeline_mode<synchronous>, transform_indices = @transform_11, window_bounds = array<i64: 1, 32>}, {pipeline_mode = #tpu.pipeline_mode<synchronous>, transform_indices = @transform_12, window_bounds = array<i64: 1, 32>}, {pipeline_mode = #tpu.pipeline_mode<synchronous>, transform_indices = @transform_13, window_bounds = array<i64: 1, 32>}, {pipeline_mode = #tpu.pipeline_mode<synchronous>, transform_indices = @transform_14, window_bounds = array<i64: 32, 64>}, {pipeline_mode = #tpu.pipeline_mode<synchronous>, transform_indices = @transform_15, window_bounds = array<i64: 1, 64>}, {pipeline_mode = #tpu.pipeline_mode<synchronous>, transform_indices = @transform_16, window_bounds = array<i64: 64, 32>}, {pipeline_mode = #tpu.pipeline_mode<synchronous>, transform_indices = @transform_17, window_bounds = array<i64: 1, 32>}, {transform_indices = @transform_18, window_bounds = array<i64: 1, 64, 32>}]} {
    %c0 = arith.constant 0 : index
    %c0_0 = arith.constant 0 : index
    %c0_1 = arith.constant 0 : index
    %0 = vector.load %arg2[%c0, %c0_0, %c0_1] : memref<1x64x32xf32, #tpu.memory_space<vmem>>, vector<1x64x32xf32>
    %1 = vector.shape_cast %0 : vector<1x64x32xf32> to vector<64x32xf32>
    %c0_2 = arith.constant 0 : index
    %2 = memref.load %arg1[%c0_2] : memref<1xf32, #tpu.memory_space<smem>>
    %3 = math.absf %2 : f32
    %c0_3 = arith.constant 0 : index
    %c0_4 = arith.constant 0 : index
    %4 = vector.load %arg3[%c0_3, %c0_4] : memref<1x32xf32, #tpu.memory_space<vmem>>, vector<1x32xf32>
    %c0_5 = arith.constant 0 : index
    %c0_6 = arith.constant 0 : index
    %5 = vector.load %arg4[%c0_5, %c0_6] : memref<1x32xf32, #tpu.memory_space<vmem>>, vector<1x32xf32>
    %cst = arith.constant dense<0.000000e+00> : vector<64xf32>
    %6 = vector.multi_reduction <add>, %1, %cst [1] : vector<64x32xf32> to vector<64xf32>
    %7 = vector.shape_cast %6 : vector<64xf32> to vector<64x1xf32>
    %cst_7 = arith.constant 3.200000e+01 : f32
    %8 = vector.broadcast %cst_7 : f32 to vector<64x1xf32>
    %9 = arith.divf %7, %8 : vector<64x1xf32>
    %10 = vector.broadcast %9 : vector<64x1xf32> to vector<64x32xf32>
    %11 = arith.subf %1, %10 : vector<64x32xf32>
    %12 = arith.mulf %11, %11 : vector<64x32xf32>
    %cst_8 = arith.constant dense<0.000000e+00> : vector<64xf32>
    %13 = vector.multi_reduction <add>, %12, %cst_8 [1] : vector<64x32xf32> to vector<64xf32>
    %14 = vector.shape_cast %13 : vector<64xf32> to vector<64x1xf32>
    %cst_9 = arith.constant 3.200000e+01 : f32
    %15 = vector.broadcast %cst_9 : f32 to vector<64x1xf32>
    %16 = arith.divf %14, %15 : vector<64x1xf32>
    %cst_10 = arith.constant 9.99999974E-6 : f32
    %17 = vector.broadcast %cst_10 : f32 to vector<64x1xf32>
    %18 = arith.addf %16, %17 : vector<64x1xf32>
    %19 = math.rsqrt %18 : vector<64x1xf32>
    %20 = vector.broadcast %19 : vector<64x1xf32> to vector<64x32xf32>
    %21 = arith.mulf %11, %20 : vector<64x32xf32>
    %22 = vector.broadcast %4 : vector<1x32xf32> to vector<64x32xf32>
    %23 = arith.mulf %21, %22 : vector<64x32xf32>
    %24 = vector.broadcast %5 : vector<1x32xf32> to vector<64x32xf32>
    %25 = arith.addf %23, %24 : vector<64x32xf32>
    %cst_11 = arith.constant 0.000000e+00 : f32
    %26 = vector.broadcast %cst_11 : f32 to vector<64x32xf32>
    %c0_12 = arith.constant 0 : index
    %c0_13 = arith.constant 0 : index
    %c0_14 = arith.constant 0 : index
    %27 = vector.load %arg5[%c0_12, %c0_13, %c0_14] : memref<4x32x8xf32, #tpu.memory_space<vmem>>, vector<1x32x8xf32>
    %28 = vector.shape_cast %27 : vector<1x32x8xf32> to vector<32x8xf32>
    %cst_15 = arith.constant dense<0.000000e+00> : vector<64x8xf32>
    %29 = tpu.matmul %25, %28, %cst_15 {dimension_numbers = #tpu.dot_dimension_numbers<[1], [0], [0], [1], [0, 0, 1, 1], [], []>} : vector<64x32xf32>, vector<32x8xf32>, vector<64x8xf32> -> vector<64x8xf32>
    %c0_16 = arith.constant 0 : index
    %c0_17 = arith.constant 0 : index
    %c0_18 = arith.constant 0 : index
    %30 = vector.load %arg6[%c0_16, %c0_17, %c0_18] : memref<4x1x8xf32, #tpu.memory_space<vmem>>, vector<1x1x8xf32>
    %31 = vector.shape_cast %30 : vector<1x1x8xf32> to vector<1x8xf32>
    %32 = vector.broadcast %31 : vector<1x8xf32> to vector<64x8xf32>
    %33 = arith.addf %29, %32 : vector<64x8xf32>
    %c0_19 = arith.constant 0 : index
    %c0_20 = arith.constant 0 : index
    %c0_21 = arith.constant 0 : index
    %34 = vector.load %arg7[%c0_19, %c0_20, %c0_21] : memref<4x32x8xf32, #tpu.memory_space<vmem>>, vector<1x32x8xf32>
    %35 = vector.shape_cast %34 : vector<1x32x8xf32> to vector<32x8xf32>
    %cst_22 = arith.constant dense<0.000000e+00> : vector<64x8xf32>
    %36 = tpu.matmul %25, %35, %cst_22 {dimension_numbers = #tpu.dot_dimension_numbers<[1], [0], [0], [1], [0, 0, 1, 1], [], []>} : vector<64x32xf32>, vector<32x8xf32>, vector<64x8xf32> -> vector<64x8xf32>
    %c0_23 = arith.constant 0 : index
    %c0_24 = arith.constant 0 : index
    %c0_25 = arith.constant 0 : index
    %37 = vector.load %arg8[%c0_23, %c0_24, %c0_25] : memref<4x1x8xf32, #tpu.memory_space<vmem>>, vector<1x1x8xf32>
    %38 = vector.shape_cast %37 : vector<1x1x8xf32> to vector<1x8xf32>
    %39 = vector.broadcast %38 : vector<1x8xf32> to vector<64x8xf32>
    %40 = arith.addf %36, %39 : vector<64x8xf32>
    %c0_26 = arith.constant 0 : index
    %c0_27 = arith.constant 0 : index
    %c0_28 = arith.constant 0 : index
    %41 = vector.load %arg9[%c0_26, %c0_27, %c0_28] : memref<4x32x8xf32, #tpu.memory_space<vmem>>, vector<1x32x8xf32>
    %42 = vector.shape_cast %41 : vector<1x32x8xf32> to vector<32x8xf32>
    %cst_29 = arith.constant dense<0.000000e+00> : vector<64x8xf32>
    %43 = tpu.matmul %25, %42, %cst_29 {dimension_numbers = #tpu.dot_dimension_numbers<[1], [0], [0], [1], [0, 0, 1, 1], [], []>} : vector<64x32xf32>, vector<32x8xf32>, vector<64x8xf32> -> vector<64x8xf32>
    %c0_30 = arith.constant 0 : index
    %c0_31 = arith.constant 0 : index
    %c0_32 = arith.constant 0 : index
    %44 = vector.load %arg10[%c0_30, %c0_31, %c0_32] : memref<4x1x8xf32, #tpu.memory_space<vmem>>, vector<1x1x8xf32>
    %45 = vector.shape_cast %44 : vector<1x1x8xf32> to vector<1x8xf32>
    %46 = vector.broadcast %45 : vector<1x8xf32> to vector<64x8xf32>
    %47 = arith.addf %43, %46 : vector<64x8xf32>
    %cst_33 = arith.constant dense<0.000000e+00> : vector<64x64xf32>
    %48 = tpu.matmul %33, %40, %cst_33 {dimension_numbers = #tpu.dot_dimension_numbers<[1], [1], [0], [0], [0, 0, 1, 0], [], []>} : vector<64x8xf32>, vector<64x8xf32>, vector<64x64xf32> -> vector<64x64xf32>
    %cst_34 = arith.constant 0.353553385 : f32
    %49 = vector.broadcast %cst_34 : f32 to vector<64x64xf32>
    %50 = arith.mulf %48, %49 : vector<64x64xf32>
    %cst_35 = arith.constant dense<0xFF800000> : vector<64xf32>
    %51 = vector.multi_reduction <maximumf>, %50, %cst_35 [1] : vector<64x64xf32> to vector<64xf32>
    %52 = vector.shape_cast %51 : vector<64xf32> to vector<64x1xf32>
    %53 = vector.broadcast %52 : vector<64x1xf32> to vector<64x64xf32>
    %54 = arith.subf %50, %53 : vector<64x64xf32>
    %55 = math.exp %54 : vector<64x64xf32>
    %cst_36 = arith.constant dense<0.000000e+00> : vector<64xf32>
    %56 = vector.multi_reduction <add>, %55, %cst_36 [1] : vector<64x64xf32> to vector<64xf32>
    %57 = vector.shape_cast %56 : vector<64xf32> to vector<64x1xf32>
    %58 = tpu.reciprocal %57 {approx = true} : vector<64x1xf32> -> vector<64x1xf32>
    %59 = vector.broadcast %58 : vector<64x1xf32> to vector<64x64xf32>
    %60 = arith.mulf %55, %59 : vector<64x64xf32>
    %cst_37 = arith.constant dense<0.000000e+00> : vector<64x8xf32>
    %61 = tpu.matmul %60, %47, %cst_37 {dimension_numbers = #tpu.dot_dimension_numbers<[1], [0], [0], [1], [0, 0, 1, 1], [], []>} : vector<64x64xf32>, vector<64x8xf32>, vector<64x8xf32> -> vector<64x8xf32>
    %c0_38 = arith.constant 0 : index
    %c0_39 = arith.constant 0 : index
    %c0_40 = arith.constant 0 : index
    %62 = vector.load %arg11[%c0_38, %c0_39, %c0_40] : memref<4x8x32xf32, #tpu.memory_space<vmem>>, vector<1x8x32xf32>
    %63 = vector.shape_cast %62 : vector<1x8x32xf32> to vector<8x32xf32>
    %cst_41 = arith.constant dense<0.000000e+00> : vector<64x32xf32>
    %64 = tpu.matmul %61, %63, %cst_41 {dimension_numbers = #tpu.dot_dimension_numbers<[1], [0], [0], [1], [0, 0, 1, 1], [], []>} : vector<64x8xf32>, vector<8x32xf32>, vector<64x32xf32> -> vector<64x32xf32>
    %65 = arith.addf %26, %64 : vector<64x32xf32>
    %c1 = arith.constant 1 : index
    %c0_42 = arith.constant 0 : index
    %c0_43 = arith.constant 0 : index
    %66 = vector.load %arg5[%c1, %c0_42, %c0_43] : memref<4x32x8xf32, #tpu.memory_space<vmem>>, vector<1x32x8xf32>
    %67 = vector.shape_cast %66 : vector<1x32x8xf32> to vector<32x8xf32>
    %cst_44 = arith.constant dense<0.000000e+00> : vector<64x8xf32>
    %68 = tpu.matmul %25, %67, %cst_44 {dimension_numbers = #tpu.dot_dimension_numbers<[1], [0], [0], [1], [0, 0, 1, 1], [], []>} : vector<64x32xf32>, vector<32x8xf32>, vector<64x8xf32> -> vector<64x8xf32>
    %c1_45 = arith.constant 1 : index
    %c0_46 = arith.constant 0 : index
    %c0_47 = arith.constant 0 : index
    %69 = vector.load %arg6[%c1_45, %c0_46, %c0_47] : memref<4x1x8xf32, #tpu.memory_space<vmem>>, vector<1x1x8xf32>
    %70 = vector.shape_cast %69 : vector<1x1x8xf32> to vector<1x8xf32>
    %71 = vector.broadcast %70 : vector<1x8xf32> to vector<64x8xf32>
    %72 = arith.addf %68, %71 : vector<64x8xf32>
    %c1_48 = arith.constant 1 : index
    %c0_49 = arith.constant 0 : index
    %c0_50 = arith.constant 0 : index
    %73 = vector.load %arg7[%c1_48, %c0_49, %c0_50] : memref<4x32x8xf32, #tpu.memory_space<vmem>>, vector<1x32x8xf32>
    %74 = vector.shape_cast %73 : vector<1x32x8xf32> to vector<32x8xf32>
    %cst_51 = arith.constant dense<0.000000e+00> : vector<64x8xf32>
    %75 = tpu.matmul %25, %74, %cst_51 {dimension_numbers = #tpu.dot_dimension_numbers<[1], [0], [0], [1], [0, 0, 1, 1], [], []>} : vector<64x32xf32>, vector<32x8xf32>, vector<64x8xf32> -> vector<64x8xf32>
    %c1_52 = arith.constant 1 : index
    %c0_53 = arith.constant 0 : index
    %c0_54 = arith.constant 0 : index
    %76 = vector.load %arg8[%c1_52, %c0_53, %c0_54] : memref<4x1x8xf32, #tpu.memory_space<vmem>>, vector<1x1x8xf32>
    %77 = vector.shape_cast %76 : vector<1x1x8xf32> to vector<1x8xf32>
    %78 = vector.broadcast %77 : vector<1x8xf32> to vector<64x8xf32>
    %79 = arith.addf %75, %78 : vector<64x8xf32>
    %c1_55 = arith.constant 1 : index
    %c0_56 = arith.constant 0 : index
    %c0_57 = arith.constant 0 : index
    %80 = vector.load %arg9[%c1_55, %c0_56, %c0_57] : memref<4x32x8xf32, #tpu.memory_space<vmem>>, vector<1x32x8xf32>
    %81 = vector.shape_cast %80 : vector<1x32x8xf32> to vector<32x8xf32>
    %cst_58 = arith.constant dense<0.000000e+00> : vector<64x8xf32>
    %82 = tpu.matmul %25, %81, %cst_58 {dimension_numbers = #tpu.dot_dimension_numbers<[1], [0], [0], [1], [0, 0, 1, 1], [], []>} : vector<64x32xf32>, vector<32x8xf32>, vector<64x8xf32> -> vector<64x8xf32>
    %c1_59 = arith.constant 1 : index
    %c0_60 = arith.constant 0 : index
    %c0_61 = arith.constant 0 : index
    %83 = vector.load %arg10[%c1_59, %c0_60, %c0_61] : memref<4x1x8xf32, #tpu.memory_space<vmem>>, vector<1x1x8xf32>
    %84 = vector.shape_cast %83 : vector<1x1x8xf32> to vector<1x8xf32>
    %85 = vector.broadcast %84 : vector<1x8xf32> to vector<64x8xf32>
    %86 = arith.addf %82, %85 : vector<64x8xf32>
    %cst_62 = arith.constant dense<0.000000e+00> : vector<64x64xf32>
    %87 = tpu.matmul %72, %79, %cst_62 {dimension_numbers = #tpu.dot_dimension_numbers<[1], [1], [0], [0], [0, 0, 1, 0], [], []>} : vector<64x8xf32>, vector<64x8xf32>, vector<64x64xf32> -> vector<64x64xf32>
    %cst_63 = arith.constant 0.353553385 : f32
    %88 = vector.broadcast %cst_63 : f32 to vector<64x64xf32>
    %89 = arith.mulf %87, %88 : vector<64x64xf32>
    %cst_64 = arith.constant dense<0xFF800000> : vector<64xf32>
    %90 = vector.multi_reduction <maximumf>, %89, %cst_64 [1] : vector<64x64xf32> to vector<64xf32>
    %91 = vector.shape_cast %90 : vector<64xf32> to vector<64x1xf32>
    %92 = vector.broadcast %91 : vector<64x1xf32> to vector<64x64xf32>
    %93 = arith.subf %89, %92 : vector<64x64xf32>
    %94 = math.exp %93 : vector<64x64xf32>
    %cst_65 = arith.constant dense<0.000000e+00> : vector<64xf32>
    %95 = vector.multi_reduction <add>, %94, %cst_65 [1] : vector<64x64xf32> to vector<64xf32>
    %96 = vector.shape_cast %95 : vector<64xf32> to vector<64x1xf32>
    %97 = tpu.reciprocal %96 {approx = true} : vector<64x1xf32> -> vector<64x1xf32>
    %98 = vector.broadcast %97 : vector<64x1xf32> to vector<64x64xf32>
    %99 = arith.mulf %94, %98 : vector<64x64xf32>
    %cst_66 = arith.constant dense<0.000000e+00> : vector<64x8xf32>
    %100 = tpu.matmul %99, %86, %cst_66 {dimension_numbers = #tpu.dot_dimension_numbers<[1], [0], [0], [1], [0, 0, 1, 1], [], []>} : vector<64x64xf32>, vector<64x8xf32>, vector<64x8xf32> -> vector<64x8xf32>
    %c1_67 = arith.constant 1 : index
    %c0_68 = arith.constant 0 : index
    %c0_69 = arith.constant 0 : index
    %101 = vector.load %arg11[%c1_67, %c0_68, %c0_69] : memref<4x8x32xf32, #tpu.memory_space<vmem>>, vector<1x8x32xf32>
    %102 = vector.shape_cast %101 : vector<1x8x32xf32> to vector<8x32xf32>
    %cst_70 = arith.constant dense<0.000000e+00> : vector<64x32xf32>
    %103 = tpu.matmul %100, %102, %cst_70 {dimension_numbers = #tpu.dot_dimension_numbers<[1], [0], [0], [1], [0, 0, 1, 1], [], []>} : vector<64x8xf32>, vector<8x32xf32>, vector<64x32xf32> -> vector<64x32xf32>
    %104 = arith.addf %65, %103 : vector<64x32xf32>
    %c2 = arith.constant 2 : index
    %c0_71 = arith.constant 0 : index
    %c0_72 = arith.constant 0 : index
    %105 = vector.load %arg5[%c2, %c0_71, %c0_72] : memref<4x32x8xf32, #tpu.memory_space<vmem>>, vector<1x32x8xf32>
    %106 = vector.shape_cast %105 : vector<1x32x8xf32> to vector<32x8xf32>
    %cst_73 = arith.constant dense<0.000000e+00> : vector<64x8xf32>
    %107 = tpu.matmul %25, %106, %cst_73 {dimension_numbers = #tpu.dot_dimension_numbers<[1], [0], [0], [1], [0, 0, 1, 1], [], []>} : vector<64x32xf32>, vector<32x8xf32>, vector<64x8xf32> -> vector<64x8xf32>
    %c2_74 = arith.constant 2 : index
    %c0_75 = arith.constant 0 : index
    %c0_76 = arith.constant 0 : index
    %108 = vector.load %arg6[%c2_74, %c0_75, %c0_76] : memref<4x1x8xf32, #tpu.memory_space<vmem>>, vector<1x1x8xf32>
    %109 = vector.shape_cast %108 : vector<1x1x8xf32> to vector<1x8xf32>
    %110 = vector.broadcast %109 : vector<1x8xf32> to vector<64x8xf32>
    %111 = arith.addf %107, %110 : vector<64x8xf32>
    %c2_77 = arith.constant 2 : index
    %c0_78 = arith.constant 0 : index
    %c0_79 = arith.constant 0 : index
    %112 = vector.load %arg7[%c2_77, %c0_78, %c0_79] : memref<4x32x8xf32, #tpu.memory_space<vmem>>, vector<1x32x8xf32>
    %113 = vector.shape_cast %112 : vector<1x32x8xf32> to vector<32x8xf32>
    %cst_80 = arith.constant dense<0.000000e+00> : vector<64x8xf32>
    %114 = tpu.matmul %25, %113, %cst_80 {dimension_numbers = #tpu.dot_dimension_numbers<[1], [0], [0], [1], [0, 0, 1, 1], [], []>} : vector<64x32xf32>, vector<32x8xf32>, vector<64x8xf32> -> vector<64x8xf32>
    %c2_81 = arith.constant 2 : index
    %c0_82 = arith.constant 0 : index
    %c0_83 = arith.constant 0 : index
    %115 = vector.load %arg8[%c2_81, %c0_82, %c0_83] : memref<4x1x8xf32, #tpu.memory_space<vmem>>, vector<1x1x8xf32>
    %116 = vector.shape_cast %115 : vector<1x1x8xf32> to vector<1x8xf32>
    %117 = vector.broadcast %116 : vector<1x8xf32> to vector<64x8xf32>
    %118 = arith.addf %114, %117 : vector<64x8xf32>
    %c2_84 = arith.constant 2 : index
    %c0_85 = arith.constant 0 : index
    %c0_86 = arith.constant 0 : index
    %119 = vector.load %arg9[%c2_84, %c0_85, %c0_86] : memref<4x32x8xf32, #tpu.memory_space<vmem>>, vector<1x32x8xf32>
    %120 = vector.shape_cast %119 : vector<1x32x8xf32> to vector<32x8xf32>
    %cst_87 = arith.constant dense<0.000000e+00> : vector<64x8xf32>
    %121 = tpu.matmul %25, %120, %cst_87 {dimension_numbers = #tpu.dot_dimension_numbers<[1], [0], [0], [1], [0, 0, 1, 1], [], []>} : vector<64x32xf32>, vector<32x8xf32>, vector<64x8xf32> -> vector<64x8xf32>
    %c2_88 = arith.constant 2 : index
    %c0_89 = arith.constant 0 : index
    %c0_90 = arith.constant 0 : index
    %122 = vector.load %arg10[%c2_88, %c0_89, %c0_90] : memref<4x1x8xf32, #tpu.memory_space<vmem>>, vector<1x1x8xf32>
    %123 = vector.shape_cast %122 : vector<1x1x8xf32> to vector<1x8xf32>
    %124 = vector.broadcast %123 : vector<1x8xf32> to vector<64x8xf32>
    %125 = arith.addf %121, %124 : vector<64x8xf32>
    %cst_91 = arith.constant dense<0.000000e+00> : vector<64x64xf32>
    %126 = tpu.matmul %111, %118, %cst_91 {dimension_numbers = #tpu.dot_dimension_numbers<[1], [1], [0], [0], [0, 0, 1, 0], [], []>} : vector<64x8xf32>, vector<64x8xf32>, vector<64x64xf32> -> vector<64x64xf32>
    %cst_92 = arith.constant 0.353553385 : f32
    %127 = vector.broadcast %cst_92 : f32 to vector<64x64xf32>
    %128 = arith.mulf %126, %127 : vector<64x64xf32>
    %cst_93 = arith.constant dense<0xFF800000> : vector<64xf32>
    %129 = vector.multi_reduction <maximumf>, %128, %cst_93 [1] : vector<64x64xf32> to vector<64xf32>
    %130 = vector.shape_cast %129 : vector<64xf32> to vector<64x1xf32>
    %131 = vector.broadcast %130 : vector<64x1xf32> to vector<64x64xf32>
    %132 = arith.subf %128, %131 : vector<64x64xf32>
    %133 = math.exp %132 : vector<64x64xf32>
    %cst_94 = arith.constant dense<0.000000e+00> : vector<64xf32>
    %134 = vector.multi_reduction <add>, %133, %cst_94 [1] : vector<64x64xf32> to vector<64xf32>
    %135 = vector.shape_cast %134 : vector<64xf32> to vector<64x1xf32>
    %136 = tpu.reciprocal %135 {approx = true} : vector<64x1xf32> -> vector<64x1xf32>
    %137 = vector.broadcast %136 : vector<64x1xf32> to vector<64x64xf32>
    %138 = arith.mulf %133, %137 : vector<64x64xf32>
    %cst_95 = arith.constant dense<0.000000e+00> : vector<64x8xf32>
    %139 = tpu.matmul %138, %125, %cst_95 {dimension_numbers = #tpu.dot_dimension_numbers<[1], [0], [0], [1], [0, 0, 1, 1], [], []>} : vector<64x64xf32>, vector<64x8xf32>, vector<64x8xf32> -> vector<64x8xf32>
    %c2_96 = arith.constant 2 : index
    %c0_97 = arith.constant 0 : index
    %c0_98 = arith.constant 0 : index
    %140 = vector.load %arg11[%c2_96, %c0_97, %c0_98] : memref<4x8x32xf32, #tpu.memory_space<vmem>>, vector<1x8x32xf32>
    %141 = vector.shape_cast %140 : vector<1x8x32xf32> to vector<8x32xf32>
    %cst_99 = arith.constant dense<0.000000e+00> : vector<64x32xf32>
    %142 = tpu.matmul %139, %141, %cst_99 {dimension_numbers = #tpu.dot_dimension_numbers<[1], [0], [0], [1], [0, 0, 1, 1], [], []>} : vector<64x8xf32>, vector<8x32xf32>, vector<64x32xf32> -> vector<64x32xf32>
    %143 = arith.addf %104, %142 : vector<64x32xf32>
    %c3 = arith.constant 3 : index
    %c0_100 = arith.constant 0 : index
    %c0_101 = arith.constant 0 : index
    %144 = vector.load %arg5[%c3, %c0_100, %c0_101] : memref<4x32x8xf32, #tpu.memory_space<vmem>>, vector<1x32x8xf32>
    %145 = vector.shape_cast %144 : vector<1x32x8xf32> to vector<32x8xf32>
    %cst_102 = arith.constant dense<0.000000e+00> : vector<64x8xf32>
    %146 = tpu.matmul %25, %145, %cst_102 {dimension_numbers = #tpu.dot_dimension_numbers<[1], [0], [0], [1], [0, 0, 1, 1], [], []>} : vector<64x32xf32>, vector<32x8xf32>, vector<64x8xf32> -> vector<64x8xf32>
    %c3_103 = arith.constant 3 : index
    %c0_104 = arith.constant 0 : index
    %c0_105 = arith.constant 0 : index
    %147 = vector.load %arg6[%c3_103, %c0_104, %c0_105] : memref<4x1x8xf32, #tpu.memory_space<vmem>>, vector<1x1x8xf32>
    %148 = vector.shape_cast %147 : vector<1x1x8xf32> to vector<1x8xf32>
    %149 = vector.broadcast %148 : vector<1x8xf32> to vector<64x8xf32>
    %150 = arith.addf %146, %149 : vector<64x8xf32>
    %c3_106 = arith.constant 3 : index
    %c0_107 = arith.constant 0 : index
    %c0_108 = arith.constant 0 : index
    %151 = vector.load %arg7[%c3_106, %c0_107, %c0_108] : memref<4x32x8xf32, #tpu.memory_space<vmem>>, vector<1x32x8xf32>
    %152 = vector.shape_cast %151 : vector<1x32x8xf32> to vector<32x8xf32>
    %cst_109 = arith.constant dense<0.000000e+00> : vector<64x8xf32>
    %153 = tpu.matmul %25, %152, %cst_109 {dimension_numbers = #tpu.dot_dimension_numbers<[1], [0], [0], [1], [0, 0, 1, 1], [], []>} : vector<64x32xf32>, vector<32x8xf32>, vector<64x8xf32> -> vector<64x8xf32>
    %c3_110 = arith.constant 3 : index
    %c0_111 = arith.constant 0 : index
    %c0_112 = arith.constant 0 : index
    %154 = vector.load %arg8[%c3_110, %c0_111, %c0_112] : memref<4x1x8xf32, #tpu.memory_space<vmem>>, vector<1x1x8xf32>
    %155 = vector.shape_cast %154 : vector<1x1x8xf32> to vector<1x8xf32>
    %156 = vector.broadcast %155 : vector<1x8xf32> to vector<64x8xf32>
    %157 = arith.addf %153, %156 : vector<64x8xf32>
    %c3_113 = arith.constant 3 : index
    %c0_114 = arith.constant 0 : index
    %c0_115 = arith.constant 0 : index
    %158 = vector.load %arg9[%c3_113, %c0_114, %c0_115] : memref<4x32x8xf32, #tpu.memory_space<vmem>>, vector<1x32x8xf32>
    %159 = vector.shape_cast %158 : vector<1x32x8xf32> to vector<32x8xf32>
    %cst_116 = arith.constant dense<0.000000e+00> : vector<64x8xf32>
    %160 = tpu.matmul %25, %159, %cst_116 {dimension_numbers = #tpu.dot_dimension_numbers<[1], [0], [0], [1], [0, 0, 1, 1], [], []>} : vector<64x32xf32>, vector<32x8xf32>, vector<64x8xf32> -> vector<64x8xf32>
    %c3_117 = arith.constant 3 : index
    %c0_118 = arith.constant 0 : index
    %c0_119 = arith.constant 0 : index
    %161 = vector.load %arg10[%c3_117, %c0_118, %c0_119] : memref<4x1x8xf32, #tpu.memory_space<vmem>>, vector<1x1x8xf32>
    %162 = vector.shape_cast %161 : vector<1x1x8xf32> to vector<1x8xf32>
    %163 = vector.broadcast %162 : vector<1x8xf32> to vector<64x8xf32>
    %164 = arith.addf %160, %163 : vector<64x8xf32>
    %cst_120 = arith.constant dense<0.000000e+00> : vector<64x64xf32>
    %165 = tpu.matmul %150, %157, %cst_120 {dimension_numbers = #tpu.dot_dimension_numbers<[1], [1], [0], [0], [0, 0, 1, 0], [], []>} : vector<64x8xf32>, vector<64x8xf32>, vector<64x64xf32> -> vector<64x64xf32>
    %cst_121 = arith.constant 0.353553385 : f32
    %166 = vector.broadcast %cst_121 : f32 to vector<64x64xf32>
    %167 = arith.mulf %165, %166 : vector<64x64xf32>
    %cst_122 = arith.constant dense<0xFF800000> : vector<64xf32>
    %168 = vector.multi_reduction <maximumf>, %167, %cst_122 [1] : vector<64x64xf32> to vector<64xf32>
    %169 = vector.shape_cast %168 : vector<64xf32> to vector<64x1xf32>
    %170 = vector.broadcast %169 : vector<64x1xf32> to vector<64x64xf32>
    %171 = arith.subf %167, %170 : vector<64x64xf32>
    %172 = math.exp %171 : vector<64x64xf32>
    %cst_123 = arith.constant dense<0.000000e+00> : vector<64xf32>
    %173 = vector.multi_reduction <add>, %172, %cst_123 [1] : vector<64x64xf32> to vector<64xf32>
    %174 = vector.shape_cast %173 : vector<64xf32> to vector<64x1xf32>
    %175 = tpu.reciprocal %174 {approx = true} : vector<64x1xf32> -> vector<64x1xf32>
    %176 = vector.broadcast %175 : vector<64x1xf32> to vector<64x64xf32>
    %177 = arith.mulf %172, %176 : vector<64x64xf32>
    %cst_124 = arith.constant dense<0.000000e+00> : vector<64x8xf32>
    %178 = tpu.matmul %177, %164, %cst_124 {dimension_numbers = #tpu.dot_dimension_numbers<[1], [0], [0], [1], [0, 0, 1, 1], [], []>} : vector<64x64xf32>, vector<64x8xf32>, vector<64x8xf32> -> vector<64x8xf32>
    %c3_125 = arith.constant 3 : index
    %c0_126 = arith.constant 0 : index
    %c0_127 = arith.constant 0 : index
    %179 = vector.load %arg11[%c3_125, %c0_126, %c0_127] : memref<4x8x32xf32, #tpu.memory_space<vmem>>, vector<1x8x32xf32>
    %180 = vector.shape_cast %179 : vector<1x8x32xf32> to vector<8x32xf32>
    %cst_128 = arith.constant dense<0.000000e+00> : vector<64x32xf32>
    %181 = tpu.matmul %178, %180, %cst_128 {dimension_numbers = #tpu.dot_dimension_numbers<[1], [0], [0], [1], [0, 0, 1, 1], [], []>} : vector<64x8xf32>, vector<8x32xf32>, vector<64x32xf32> -> vector<64x32xf32>
    %182 = arith.addf %143, %181 : vector<64x32xf32>
    %c0_129 = arith.constant 0 : index
    %c0_130 = arith.constant 0 : index
    %183 = vector.load %arg12[%c0_129, %c0_130] : memref<1x32xf32, #tpu.memory_space<vmem>>, vector<1x32xf32>
    %184 = vector.broadcast %183 : vector<1x32xf32> to vector<64x32xf32>
    %185 = arith.addf %182, %184 : vector<64x32xf32>
    %186 = vector.broadcast %3 : f32 to vector<64x32xf32>
    %187 = arith.mulf %186, %185 : vector<64x32xf32>
    %188 = arith.addf %1, %187 : vector<64x32xf32>
    %c0_131 = arith.constant 0 : index
    %c0_132 = arith.constant 0 : index
    %189 = vector.load %arg13[%c0_131, %c0_132] : memref<1x32xf32, #tpu.memory_space<vmem>>, vector<1x32xf32>
    %c0_133 = arith.constant 0 : index
    %c0_134 = arith.constant 0 : index
    %190 = vector.load %arg14[%c0_133, %c0_134] : memref<1x32xf32, #tpu.memory_space<vmem>>, vector<1x32xf32>
    %cst_135 = arith.constant dense<0.000000e+00> : vector<64xf32>
    %191 = vector.multi_reduction <add>, %188, %cst_135 [1] : vector<64x32xf32> to vector<64xf32>
    %192 = vector.shape_cast %191 : vector<64xf32> to vector<64x1xf32>
    %cst_136 = arith.constant 3.200000e+01 : f32
    %193 = vector.broadcast %cst_136 : f32 to vector<64x1xf32>
    %194 = arith.divf %192, %193 : vector<64x1xf32>
    %195 = vector.broadcast %194 : vector<64x1xf32> to vector<64x32xf32>
    %196 = arith.subf %188, %195 : vector<64x32xf32>
    %197 = arith.mulf %196, %196 : vector<64x32xf32>
    %cst_137 = arith.constant dense<0.000000e+00> : vector<64xf32>
    %198 = vector.multi_reduction <add>, %197, %cst_137 [1] : vector<64x32xf32> to vector<64xf32>
    %199 = vector.shape_cast %198 : vector<64xf32> to vector<64x1xf32>
    %cst_138 = arith.constant 3.200000e+01 : f32
    %200 = vector.broadcast %cst_138 : f32 to vector<64x1xf32>
    %201 = arith.divf %199, %200 : vector<64x1xf32>
    %cst_139 = arith.constant 9.99999974E-6 : f32
    %202 = vector.broadcast %cst_139 : f32 to vector<64x1xf32>
    %203 = arith.addf %201, %202 : vector<64x1xf32>
    %204 = math.rsqrt %203 : vector<64x1xf32>
    %205 = vector.broadcast %204 : vector<64x1xf32> to vector<64x32xf32>
    %206 = arith.mulf %196, %205 : vector<64x32xf32>
    %207 = vector.broadcast %189 : vector<1x32xf32> to vector<64x32xf32>
    %208 = arith.mulf %206, %207 : vector<64x32xf32>
    %209 = vector.broadcast %190 : vector<1x32xf32> to vector<64x32xf32>
    %210 = arith.addf %208, %209 : vector<64x32xf32>
    %c0_140 = arith.constant 0 : index
    %c0_141 = arith.constant 0 : index
    %211 = vector.load %arg15[%c0_140, %c0_141] : memref<32x64xf32, #tpu.memory_space<vmem>>, vector<32x64xf32>
    %cst_142 = arith.constant dense<0.000000e+00> : vector<64x64xf32>
    %212 = tpu.matmul %210, %211, %cst_142 {dimension_numbers = #tpu.dot_dimension_numbers<[1], [0], [0], [1], [0, 0, 1, 1], [], []>} : vector<64x32xf32>, vector<32x64xf32>, vector<64x64xf32> -> vector<64x64xf32>
    %c0_143 = arith.constant 0 : index
    %c0_144 = arith.constant 0 : index
    %213 = vector.load %arg16[%c0_143, %c0_144] : memref<1x64xf32, #tpu.memory_space<vmem>>, vector<1x64xf32>
    %214 = vector.broadcast %213 : vector<1x64xf32> to vector<64x64xf32>
    %215 = arith.addf %212, %214 : vector<64x64xf32>
    %cst_145 = arith.constant 0.000000e+00 : f32
    %216 = vector.broadcast %cst_145 : f32 to vector<64x64xf32>
    %217 = arith.maximumf %215, %216 : vector<64x64xf32>
    %c0_146 = arith.constant 0 : index
    %c0_147 = arith.constant 0 : index
    %218 = vector.load %arg17[%c0_146, %c0_147] : memref<64x32xf32, #tpu.memory_space<vmem>>, vector<64x32xf32>
    %cst_148 = arith.constant dense<0.000000e+00> : vector<64x32xf32>
    %219 = tpu.matmul %217, %218, %cst_148 {dimension_numbers = #tpu.dot_dimension_numbers<[1], [0], [0], [1], [0, 0, 1, 1], [], []>} : vector<64x64xf32>, vector<64x32xf32>, vector<64x32xf32> -> vector<64x32xf32>
    %c0_149 = arith.constant 0 : index
    %c0_150 = arith.constant 0 : index
    %220 = vector.load %arg18[%c0_149, %c0_150] : memref<1x32xf32, #tpu.memory_space<vmem>>, vector<1x32xf32>
    %221 = vector.broadcast %220 : vector<1x32xf32> to vector<64x32xf32>
    %222 = arith.addf %219, %221 : vector<64x32xf32>
    %cst_151 = arith.constant 0.000000e+00 : f32
    %223 = vector.broadcast %cst_151 : f32 to vector<64x32xf32>
    %224 = arith.maximumf %222, %223 : vector<64x32xf32>
    %225 = vector.broadcast %3 : f32 to vector<64x32xf32>
    %226 = arith.mulf %225, %224 : vector<64x32xf32>
    %227 = arith.addf %188, %226 : vector<64x32xf32>
    %c0_152 = arith.constant 0 : index
    %c0_153 = arith.constant 0 : index
    %c0_154 = arith.constant 0 : index
    %228 = vector.load %arg19[%c0_152, %c0_153, %c0_154] : memref<1x64x32xf32, #tpu.memory_space<vmem>>, vector<1x64x32xf32>
    %229 = vector.shape_cast %228 : vector<1x64x32xf32> to vector<64x32xf32>
    %230 = vector.shape_cast %227 : vector<64x32xf32> to vector<1x64x32xf32>
    tpu.vector_store %arg19[%c0_152, %c0_153, %c0_154], %230 {strides = array<i32>} : memref<1x64x32xf32, #tpu.memory_space<vmem>>, vector<1x64x32xf32>,
    return
  }
  func.func @transform_0(%arg0: i32) -> i32 {
    %c0_i32 = arith.constant 0 : i32
    %c0_i32_0 = arith.constant 0 : i32
    return %c0_i32 : i32
  }
  func.func @transform_1(%arg0: i32) -> (i32, i32, i32) {
    %c0_i32 = arith.constant 0 : i32
    %c0_i32_0 = arith.constant 0 : i32
    %c0_i32_1 = arith.constant 0 : i32
    return %arg0, %c0_i32, %c0_i32_0 : i32, i32, i32
  }
  func.func @transform_2(%arg0: i32) -> (i32, i32) {
    %c0_i32 = arith.constant 0 : i32
    %c0_i32_0 = arith.constant 0 : i32
    %c0_i32_1 = arith.constant 0 : i32
    return %c0_i32, %c0_i32_0 : i32, i32
  }
  func.func @transform_3(%arg0: i32) -> (i32, i32) {
    %c0_i32 = arith.constant 0 : i32
    %c0_i32_0 = arith.constant 0 : i32
    %c0_i32_1 = arith.constant 0 : i32
    return %c0_i32, %c0_i32_0 : i32, i32
  }
  func.func @transform_4(%arg0: i32) -> (i32, i32, i32) {
    %c0_i32 = arith.constant 0 : i32
    %c0_i32_0 = arith.constant 0 : i32
    %c0_i32_1 = arith.constant 0 : i32
    %c0_i32_2 = arith.constant 0 : i32
    return %c0_i32, %c0_i32_0, %c0_i32_1 : i32, i32, i32
  }
  func.func @transform_5(%arg0: i32) -> (i32, i32, i32) {
    %c0_i32 = arith.constant 0 : i32
    %c0_i32_0 = arith.constant 0 : i32
    %c0_i32_1 = arith.constant 0 : i32
    %c0_i32_2 = arith.constant 0 : i32
    return %c0_i32, %c0_i32_0, %c0_i32_1 : i32, i32, i32
  }
  func.func @transform_6(%arg0: i32) -> (i32, i32, i32) {
    %c0_i32 = arith.constant 0 : i32
    %c0_i32_0 = arith.constant 0 : i32
    %c0_i32_1 = arith.constant 0 : i32
    %c0_i32_2 = arith.constant 0 : i32
    return %c0_i32, %c0_i32_0, %c0_i32_1 : i32, i32, i32
  }
  func.func @transform_7(%arg0: i32) -> (i32, i32, i32) {
    %c0_i32 = arith.constant 0 : i32
    %c0_i32_0 = arith.constant 0 : i32
    %c0_i32_1 = arith.constant 0 : i32
    %c0_i32_2 = arith.constant 0 : i32
    return %c0_i32, %c0_i32_0, %c0_i32_1 : i32, i32, i32
  }
  func.func @transform_8(%arg0: i32) -> (i32, i32, i32) {
    %c0_i32 = arith.constant 0 : i32
    %c0_i32_0 = arith.constant 0 : i32
    %c0_i32_1 = arith.constant 0 : i32
    %c0_i32_2 = arith.constant 0 : i32
    return %c0_i32, %c0_i32_0, %c0_i32_1 : i32, i32, i32
  }
  func.func @transform_9(%arg0: i32) -> (i32, i32, i32) {
    %c0_i32 = arith.constant 0 : i32
    %c0_i32_0 = arith.constant 0 : i32
    %c0_i32_1 = arith.constant 0 : i32
    %c0_i32_2 = arith.constant 0 : i32
    return %c0_i32, %c0_i32_0, %c0_i32_1 : i32, i32, i32
  }
  func.func @transform_10(%arg0: i32) -> (i32, i32, i32) {
    %c0_i32 = arith.constant 0 : i32
    %c0_i32_0 = arith.constant 0 : i32
    %c0_i32_1 = arith.constant 0 : i32
    %c0_i32_2 = arith.constant 0 : i32
    return %c0_i32, %c0_i32_0, %c0_i32_1 : i32, i32, i32
  }
  func.func @transform_11(%arg0: i32) -> (i32, i32) {
    %c0_i32 = arith.constant 0 : i32
    %c0_i32_0 = arith.constant 0 : i32
    %c0_i32_1 = arith.constant 0 : i32
    return %c0_i32, %c0_i32_0 : i32, i32
  }
  func.func @transform_12(%arg0: i32) -> (i32, i32) {
    %c0_i32 = arith.constant 0 : i32
    %c0_i32_0 = arith.constant 0 : i32
    %c0_i32_1 = arith.constant 0 : i32
    return %c0_i32, %c0_i32_0 : i32, i32
  }
  func.func @transform_13(%arg0: i32) -> (i32, i32) {
    %c0_i32 = arith.constant 0 : i32
    %c0_i32_0 = arith.constant 0 : i32
    %c0_i32_1 = arith.constant 0 : i32
    return %c0_i32, %c0_i32_0 : i32, i32
  }
  func.func @transform_14(%arg0: i32) -> (i32, i32) {
    %c0_i32 = arith.constant 0 : i32
    %c0_i32_0 = arith.constant 0 : i32
    %c0_i32_1 = arith.constant 0 : i32
    return %c0_i32, %c0_i32_0 : i32, i32
  }
  func.func @transform_15(%arg0: i32) -> (i32, i32) {
    %c0_i32 = arith.constant 0 : i32
    %c0_i32_0 = arith.constant 0 : i32
    %c0_i32_1 = arith.constant 0 : i32
    return %c0_i32, %c0_i32_0 : i32, i32
  }
  func.func @transform_16(%arg0: i32) -> (i32, i32) {
    %c0_i32 = arith.constant 0 : i32
    %c0_i32_0 = arith.constant 0 : i32
    %c0_i32_1 = arith.constant 0 : i32
    return %c0_i32, %c0_i32_0 : i32, i32
  }
  func.func @transform_17(%arg0: i32) -> (i32, i32) {
    %c0_i32 = arith.constant 0 : i32
    %c0_i32_0 = arith.constant 0 : i32
    %c0_i32_1 = arith.constant 0 : i32
    return %c0_i32, %c0_i32_0 : i32, i32
  }
  func.func @transform_18(%arg0: i32) -> (i32, i32, i32) {
    %c0_i32 = arith.constant 0 : i32
    %c0_i32_0 = arith.constant 0 : i32
    %c0_i32_1 = arith.constant 0 : i32
    return %arg0, %c0_i32, %c0_i32_0 : i32, i32, i32
  }
}

</mosaic_0001>

<llo_original>
// kernel: hierarchical_layer_forward.1
$region0: #{hierarchical_layer_forward.1}
  #allocation0 [shape = 'u32[]', space=smem, size = 0x4, offset = 0x4, fixed_abs, tag = 'smem constant byte address 0x4 - core index']
  #allocation1 [shape = 'u32[144,128]{1,0:T(1,128)}', space=vmem, size = 0x12000, scoped, tag = 'internal scratch']
  #allocation2 [shape = 'f32[1]{0:T(128)S(6)}', space=smem, size = 0x200, scoped, tag = 'scoped memory for hierarchical_layer_forward.1']
  %s0 = inlined_call_operand.<no memory space> [shape: f32[1], index: 0, kind: input, shape index: {}]
  %s1 = inlined_call_operand.vmem [shape: f32[2,64,32], index: 1, kind: input, shape index: {}]
  %s2 = inlined_call_operand.vmem [shape: f32[1,32], index: 2, kind: input, shape index: {}]
  %s3 = inlined_call_operand.vmem [shape: f32[1,32], index: 3, kind: input, shape index: {}]
  %s4 = inlined_call_operand.vmem [shape: f32[4,32,8], index: 4, kind: input, shape index: {}]
  %s5 = inlined_call_operand.vmem [shape: f32[4,1,8], index: 5, kind: input, shape index: {}]
  %s6 = inlined_call_operand.vmem [shape: f32[4,32,8], index: 6, kind: input, shape index: {}]
  %s7 = inlined_call_operand.vmem [shape: f32[4,1,8], index: 7, kind: input, shape index: {}]
  %s8 = inlined_call_operand.vmem [shape: f32[4,32,8], index: 8, kind: input, shape index: {}]
  %s9 = inlined_call_operand.vmem [shape: f32[4,1,8], index: 9, kind: input, shape index: {}]
  %s10 = inlined_call_operand.vmem [shape: f32[4,8,32], index: 10, kind: input, shape index: {}]
  %s11 = inlined_call_operand.vmem [shape: f32[1,32], index: 11, kind: input, shape index: {}]
  %s12 = inlined_call_operand.vmem [shape: f32[1,32], index: 12, kind: input, shape index: {}]
  %s13 = inlined_call_operand.vmem [shape: f32[1,32], index: 13, kind: input, shape index: {}]
  %s14 = inlined_call_operand.vmem [shape: f32[32,64], index: 14, kind: input, shape index: {}]
  %s15 = inlined_call_operand.vmem [shape: f32[1,64], index: 15, kind: input, shape index: {}]
  %s16 = inlined_call_operand.vmem [shape: f32[64,32], index: 16, kind: input, shape index: {}]
  %s17 = inlined_call_operand.vmem [shape: f32[1,32], index: 17, kind: input, shape index: {}]
  %s18 = inlined_call_operand.hbm [shape: f32[2,64,32], index: 18, kind: output, shape index: {}]
  %s19 = sld [smem:[#allocation0]]
  $region105: #{hierarchical_layer_forward.1} parent=0
    _
  %s21 = ssub.s32 1, %s19
  %s22 = scalar_select 0, %s21, %s19
  %23 = sst [smem:[#allocation2]] %s0
  $region1: #{hierarchical_layer_forward.1} parent=0
    #allocation3 [shape = 'u8[65536]{0}', space=vmem, size = 0x10000, scoped, tag = 'output window, operand 0']
    #allocation4 [shape = 's32[2]{0}', space=sflag, size = 0x8, scoped, tag = 'scoped memory for hierarchical_layer_forward.1']
    %24 = vsyncpa [#allocation4], 0
    %s25 = scalar_lea.sflag [#allocation4], 1
    %26 = vsyncpa %s25, 0
    loop: start=0, step=1, limit=4
    $region2: #{hierarchical_layer_forward.1} parent=1 // loop_pre_header
      _
    $region3: #{hierarchical_layer_forward.1} parent=1 // loop_header
      %s28 = sphi 0, %s32
      %p29 = scmp.ge.s32.totalorder %s28, 4
      %s36 = sphi 0, %s36
      %s38 = sphi 0, %s36
      %s39 = sphi 0, %s38
      %s53 = sphi 0, %s39
      %s59 = sphi 0, %s61
      %s62 = sphi 0, %s59
      %s63 = sphi 0, %s62
      %s79 = sphi 0, %s63
      %s83 = sphi 0, %s83
      %s85 = sphi 0, %s83
      %s86 = sphi 0, %s85
      %s100 = sphi 0, %s86
      %s104 = sphi 0, %s104
      %s106 = sphi 0, %s104
      %s107 = sphi 0, %s106
      %s121 = sphi 0, %s107
      %s125 = sphi 0, %s125
      %s127 = sphi 0, %s125
      %s128 = sphi 0, %s127
      %s142 = sphi 0, %s128
      %s146 = sphi 0, %s146
      %s148 = sphi 0, %s146
      %s149 = sphi 0, %s148
      %s163 = sphi 0, %s149
      %s167 = sphi 0, %s167
      %s169 = sphi 0, %s167
      %s170 = sphi 0, %s169
      %s184 = sphi 0, %s170
      %s188 = sphi 0, %s188
      %s190 = sphi 0, %s188
      %s191 = sphi 0, %s190
      %s205 = sphi 0, %s191
      %s209 = sphi 0, %s209
      %s211 = sphi 0, %s209
      %s212 = sphi 0, %s211
      %s226 = sphi 0, %s212
      %s230 = sphi 0, %s230
      %s232 = sphi 0, %s230
      %s233 = sphi 0, %s232
      %s247 = sphi 0, %s233
      %s251 = sphi 0, %s251
      %s253 = sphi 0, %s251
      %s254 = sphi 0, %s253
      %s268 = sphi 0, %s254
      %s272 = sphi 0, %s272
      %s274 = sphi 0, %s272
      %s275 = sphi 0, %s274
      %s289 = sphi 0, %s275
      %s293 = sphi 0, %s293
      %s295 = sphi 0, %s293
      %s296 = sphi 0, %s295
      %s310 = sphi 0, %s296
      %s314 = sphi 0, %s314
      %s316 = sphi 0, %s314
      %s317 = sphi 0, %s316
      %s331 = sphi 0, %s317
      %s335 = sphi 0, %s335
      %s337 = sphi 0, %s335
      %s338 = sphi 0, %s337
      %s352 = sphi 0, %s338
      %s356 = sphi 0, %s356
      %s358 = sphi 0, %s356
      %s359 = sphi 0, %s358
      %s373 = sphi 0, %s359
      %s377 = sphi 0, %s377
      %s379 = sphi 0, %s377
      %s380 = sphi 0, %s379
      %s394 = sphi 0, %s380
      %s398 = sphi 0, %s398
      %s400 = sphi 0, %s398
      %s401 = sphi 0, %s400
      %s415 = sphi 0, %s401
      %s421 = sphi 0, %s423
      %s424 = sphi 0, %s421
      %s425 = sphi 0, %s424
      %s441 = sphi 0, %s425
    $region4: #{hierarchical_layer_forward.1} parent=1 // loop_header_branch
      %31 = sbr.rel (%p29) target = $region8
    $region5: #{hierarchical_layer_forward.1} parent=1 // loop_body
      %s33 = ssub.s32 %s28, 1
      %s34 = ssub.s32 %s28, 2
      %s35 = sadd.s32 %s28, 1
      %s37 = sadd.s32 %s36, 1
      %p40 = scmp.eq.s32.totalorder %s28, 1
      %p41 = scmp.ne.s32.totalorder %s36, %s38
      %p42 = scmp.eq.s32.totalorder %s28, 0
      %p43 = por %p41, %p42
      %p44 = scmp.ne.s32.totalorder %s36, %s38
      %p45 = scmp.eq.s32.totalorder %s33, 1
      %p46 = por %p44, %p45
      %p47 = scmp.ne.s32.totalorder %s38, %s39
      %p48 = scmp.eq.s32.totalorder %s33, 0
      %p49 = por %p47, %p48
      %p50 = scmp.ne.s32.totalorder %s38, %s39
      %p51 = scmp.eq.s32.totalorder %s34, 1
      %p52 = por %p50, %p51
      %p54 = scmp.ne.s32.totalorder %s39, %s53
      %p55 = scmp.eq.s32.totalorder %s34, 0
      %p56 = por %p54, %p55
      %s57 = ssub.s32 %s28, %s35
      %p58 = scmp.eq.s32.totalorder %s57, 0
      %s60 = sadd.s32 %s59, 1
      %s61 = scalar_select %p58, %s59, %s60
      %p64 = pneg %p58
      %p65 = scmp.eq.s32.totalorder %s28, 1
      %p66 = por %p64, %p65
      %p67 = scmp.ne.s32.totalorder %s59, %s62
      %p68 = scmp.eq.s32.totalorder %s28, 0
      %p69 = por %p67, %p68
      %p70 = scmp.ne.s32.totalorder %s59, %s62
      %p71 = scmp.eq.s32.totalorder %s33, 1
      %p72 = por %p70, %p71
      %p73 = scmp.ne.s32.totalorder %s62, %s63
      %p74 = scmp.eq.s32.totalorder %s33, 0
      %p75 = por %p73, %p74
      %p76 = scmp.ne.s32.totalorder %s62, %s63
      %p77 = scmp.eq.s32.totalorder %s34, 1
      %p78 = por %p76, %p77
      %p80 = scmp.ne.s32.totalorder %s63, %s79
      %p81 = scmp.eq.s32.totalorder %s34, 0
      %p82 = por %p80, %p81
      %s84 = sadd.s32 %s83, 1
      %p87 = scmp.eq.s32.totalorder %s28, 1
      %p88 = scmp.ne.s32.totalorder %s83, %s85
      %p89 = scmp.eq.s32.totalorder %s28, 0
      %p90 = por %p88, %p89
      %p91 = scmp.ne.s32.totalorder %s83, %s85
      %p92 = scmp.eq.s32.totalorder %s33, 1
      %p93 = por %p91, %p92
      %p94 = scmp.ne.s32.totalorder %s85, %s86
      %p95 = scmp.eq.s32.totalorder %s33, 0
      %p96 = por %p94, %p95
      %p97 = scmp.ne.s32.totalorder %s85, %s86
      %p98 = scmp.eq.s32.totalorder %s34, 1
      %p99 = por %p97, %p98
      %p101 = scmp.ne.s32.totalorder %s86, %s100
      %p102 = scmp.eq.s32.totalorder %s34, 0
      %p103 = por %p101, %p102
      %s105 = sadd.s32 %s104, 1
      %p108 = scmp.eq.s32.totalorder %s28, 1
      %p109 = scmp.ne.s32.totalorder %s104, %s106
      %p110 = scmp.eq.s32.totalorder %s28, 0
      %p111 = por %p109, %p110
      %p112 = scmp.ne.s32.totalorder %s104, %s106
      %p113 = scmp.eq.s32.totalorder %s33, 1
      %p114 = por %p112, %p113
      %p115 = scmp.ne.s32.totalorder %s106, %s107
      %p116 = scmp.eq.s32.totalorder %s33, 0
      %p117 = por %p115, %p116
      %p118 = scmp.ne.s32.totalorder %s106, %s107
      %p119 = scmp.eq.s32.totalorder %s34, 1
      %p120 = por %p118, %p119
      %p122 = scmp.ne.s32.totalorder %s107, %s121
      %p123 = scmp.eq.s32.totalorder %s34, 0
      %p124 = por %p122, %p123
      %s126 = sadd.s32 %s125, 1
      %p129 = scmp.eq.s32.totalorder %s28, 1
      %p130 = scmp.ne.s32.totalorder %s125, %s127
      %p131 = scmp.eq.s32.totalorder %s28, 0
      %p132 = por %p130, %p131
      %p133 = scmp.ne.s32.totalorder %s125, %s127
      %p134 = scmp.eq.s32.totalorder %s33, 1
      %p135 = por %p133, %p134
      %p136 = scmp.ne.s32.totalorder %s127, %s128
      %p137 = scmp.eq.s32.totalorder %s33, 0
      %p138 = por %p136, %p137
      %p139 = scmp.ne.s32.totalorder %s127, %s128
      %p140 = scmp.eq.s32.totalorder %s34, 1
      %p141 = por %p139, %p140
      %p143 = scmp.ne.s32.totalorder %s128, %s142
      %p144 = scmp.eq.s32.totalorder %s34, 0
      %p145 = por %p143, %p144
      %s147 = sadd.s32 %s146, 1
      %p150 = scmp.eq.s32.totalorder %s28, 1
      %p151 = scmp.ne.s32.totalorder %s146, %s148
      %p152 = scmp.eq.s32.totalorder %s28, 0
      %p153 = por %p151, %p152
      %p154 = scmp.ne.s32.totalorder %s146, %s148
      %p155 = scmp.eq.s32.totalorder %s33, 1
      %p156 = por %p154, %p155
      %p157 = scmp.ne.s32.totalorder %s148, %s149
      %p158 = scmp.eq.s32.totalorder %s33, 0
      %p159 = por %p157, %p158
      %p160 = scmp.ne.s32.totalorder %s148, %s149
      %p161 = scmp.eq.s32.totalorder %s34, 1
      %p162 = por %p160, %p161
      %p164 = scmp.ne.s32.totalorder %s149, %s163
      %p165 = scmp.eq.s32.totalorder %s34, 0
      %p166 = por %p164, %p165
      %s168 = sadd.s32 %s167, 1
      %p171 = scmp.eq.s32.totalorder %s28, 1
      %p172 = scmp.ne.s32.totalorder %s167, %s169
      %p173 = scmp.eq.s32.totalorder %s28, 0
      %p174 = por %p172, %p173
      %p175 = scmp.ne.s32.totalorder %s167, %s169
      %p176 = scmp.eq.s32.totalorder %s33, 1
      %p177 = por %p175, %p176
      %p178 = scmp.ne.s32.totalorder %s169, %s170
      %p179 = scmp.eq.s32.totalorder %s33, 0
      %p180 = por %p178, %p179
      %p181 = scmp.ne.s32.totalorder %s169, %s170
      %p182 = scmp.eq.s32.totalorder %s34, 1
      %p183 = por %p181, %p182
      %p185 = scmp.ne.s32.totalorder %s170, %s184
      %p186 = scmp.eq.s32.totalorder %s34, 0
      %p187 = por %p185, %p186
      %s189 = sadd.s32 %s188, 1
      %p192 = scmp.eq.s32.totalorder %s28, 1
      %p193 = scmp.ne.s32.totalorder %s188, %s190
      %p194 = scmp.eq.s32.totalorder %s28, 0
      %p195 = por %p193, %p194
      %p196 = scmp.ne.s32.totalorder %s188, %s190
      %p197 = scmp.eq.s32.totalorder %s33, 1
      %p198 = por %p196, %p197
      %p199 = scmp.ne.s32.totalorder %s190, %s191
      %p200 = scmp.eq.s32.totalorder %s33, 0
      %p201 = por %p199, %p200
      %p202 = scmp.ne.s32.totalorder %s190, %s191
      %p203 = scmp.eq.s32.totalorder %s34, 1
      %p204 = por %p202, %p203
      %p206 = scmp.ne.s32.totalorder %s191, %s205
      %p207 = scmp.eq.s32.totalorder %s34, 0
      %p208 = por %p206, %p207
      %s210 = sadd.s32 %s209, 1
      %p213 = scmp.eq.s32.totalorder %s28, 1
      %p214 = scmp.ne.s32.totalorder %s209, %s211
      %p215 = scmp.eq.s32.totalorder %s28, 0
      %p216 = por %p214, %p215
      %p217 = scmp.ne.s32.totalorder %s209, %s211
      %p218 = scmp.eq.s32.totalorder %s33, 1
      %p219 = por %p217, %p218
      %p220 = scmp.ne.s32.totalorder %s211, %s212
      %p221 = scmp.eq.s32.totalorder %s33, 0
      %p222 = por %p220, %p221
      %p223 = scmp.ne.s32.totalorder %s211, %s212
      %p224 = scmp.eq.s32.totalorder %s34, 1
      %p225 = por %p223, %p224
      %p227 = scmp.ne.s32.totalorder %s212, %s226
      %p228 = scmp.eq.s32.totalorder %s34, 0
      %p229 = por %p227, %p228
      %s231 = sadd.s32 %s230, 1
      %p234 = scmp.eq.s32.totalorder %s28, 1
      %p235 = scmp.ne.s32.totalorder %s230, %s232
      %p236 = scmp.eq.s32.totalorder %s28, 0
      %p237 = por %p235, %p236
      %p238 = scmp.ne.s32.totalorder %s230, %s232
      %p239 = scmp.eq.s32.totalorder %s33, 1
      %p240 = por %p238, %p239
      %p241 = scmp.ne.s32.totalorder %s232, %s233
      %p242 = scmp.eq.s32.totalorder %s33, 0
      %p243 = por %p241, %p242
      %p244 = scmp.ne.s32.totalorder %s232, %s233
      %p245 = scmp.eq.s32.totalorder %s34, 1
      %p246 = por %p244, %p245
      %p248 = scmp.ne.s32.totalorder %s233, %s247
      %p249 = scmp.eq.s32.totalorder %s34, 0
      %p250 = por %p248, %p249
      %s252 = sadd.s32 %s251, 1
      %p255 = scmp.eq.s32.totalorder %s28, 1
      %p256 = scmp.ne.s32.totalorder %s251, %s253
      %p257 = scmp.eq.s32.totalorder %s28, 0
      %p258 = por %p256, %p257
      %p259 = scmp.ne.s32.totalorder %s251, %s253
      %p260 = scmp.eq.s32.totalorder %s33, 1
      %p261 = por %p259, %p260
      %p262 = scmp.ne.s32.totalorder %s253, %s254
      %p263 = scmp.eq.s32.totalorder %s33, 0
      %p264 = por %p262, %p263
      %p265 = scmp.ne.s32.totalorder %s253, %s254
      %p266 = scmp.eq.s32.totalorder %s34, 1
      %p267 = por %p265, %p266
      %p269 = scmp.ne.s32.totalorder %s254, %s268
      %p270 = scmp.eq.s32.totalorder %s34, 0
      %p271 = por %p269, %p270
      %s273 = sadd.s32 %s272, 1
      %p276 = scmp.eq.s32.totalorder %s28, 1
      %p277 = scmp.ne.s32.totalorder %s272, %s274
      %p278 = scmp.eq.s32.totalorder %s28, 0
      %p279 = por %p277, %p278
      %p280 = scmp.ne.s32.totalorder %s272, %s274
      %p281 = scmp.eq.s32.totalorder %s33, 1
      %p282 = por %p280, %p281
      %p283 = scmp.ne.s32.totalorder %s274, %s275
      %p284 = scmp.eq.s32.totalorder %s33, 0
      %p285 = por %p283, %p284
      %p286 = scmp.ne.s32.totalorder %s274, %s275
      %p287 = scmp.eq.s32.totalorder %s34, 1
      %p288 = por %p286, %p287
      %p290 = scmp.ne.s32.totalorder %s275, %s289
      %p291 = scmp.eq.s32.totalorder %s34, 0
      %p292 = por %p290, %p291
      %s294 = sadd.s32 %s293, 1
      %p297 = scmp.eq.s32.totalorder %s28, 1
      %p298 = scmp.ne.s32.totalorder %s293, %s295
      %p299 = scmp.eq.s32.totalorder %s28, 0
      %p300 = por %p298, %p299
      %p301 = scmp.ne.s32.totalorder %s293, %s295
      %p302 = scmp.eq.s32.totalorder %s33, 1
      %p303 = por %p301, %p302
      %p304 = scmp.ne.s32.totalorder %s295, %s296
      %p305 = scmp.eq.s32.totalorder %s33, 0
      %p306 = por %p304, %p305
      %p307 = scmp.ne.s32.totalorder %s295, %s296
      %p308 = scmp.eq.s32.totalorder %s34, 1
      %p309 = por %p307, %p308
      %p311 = scmp.ne.s32.totalorder %s296, %s310
      %p312 = scmp.eq.s32.totalorder %s34, 0
      %p313 = por %p311, %p312
      %s315 = sadd.s32 %s314, 1
      %p318 = scmp.eq.s32.totalorder %s28, 1
      %p319 = scmp.ne.s32.totalorder %s314, %s316
      %p320 = scmp.eq.s32.totalorder %s28, 0
      %p321 = por %p319, %p320
      %p322 = scmp.ne.s32.totalorder %s314, %s316
      %p323 = scmp.eq.s32.totalorder %s33, 1
      %p324 = por %p322, %p323
      %p325 = scmp.ne.s32.totalorder %s316, %s317
      %p326 = scmp.eq.s32.totalorder %s33, 0
      %p327 = por %p325, %p326
      %p328 = scmp.ne.s32.totalorder %s316, %s317
      %p329 = scmp.eq.s32.totalorder %s34, 1
      %p330 = por %p328, %p329
      %p332 = scmp.ne.s32.totalorder %s317, %s331
      %p333 = scmp.eq.s32.totalorder %s34, 0
      %p334 = por %p332, %p333
      %s336 = sadd.s32 %s335, 1
      %p339 = scmp.eq.s32.totalorder %s28, 1
      %p340 = scmp.ne.s32.totalorder %s335, %s337
      %p341 = scmp.eq.s32.totalorder %s28, 0
      %p342 = por %p340, %p341
      %p343 = scmp.ne.s32.totalorder %s335, %s337
      %p344 = scmp.eq.s32.totalorder %s33, 1
      %p345 = por %p343, %p344
      %p346 = scmp.ne.s32.totalorder %s337, %s338
      %p347 = scmp.eq.s32.totalorder %s33, 0
      %p348 = por %p346, %p347
      %p349 = scmp.ne.s32.totalorder %s337, %s338
      %p350 = scmp.eq.s32.totalorder %s34, 1
      %p351 = por %p349, %p350
      %p353 = scmp.ne.s32.totalorder %s338, %s352
      %p354 = scmp.eq.s32.totalorder %s34, 0
      %p355 = por %p353, %p354
      %s357 = sadd.s32 %s356, 1
      %p360 = scmp.eq.s32.totalorder %s28, 1
      %p361 = scmp.ne.s32.totalorder %s356, %s358
      %p362 = scmp.eq.s32.totalorder %s28, 0
      %p363 = por %p361, %p362
      %p364 = scmp.ne.s32.totalorder %s356, %s358
      %p365 = scmp.eq.s32.totalorder %s33, 1
      %p366 = por %p364, %p365
      %p367 = scmp.ne.s32.totalorder %s358, %s359
      %p368 = scmp.eq.s32.totalorder %s33, 0
      %p369 = por %p367, %p368
      %p370 = scmp.ne.s32.totalorder %s358, %s359
      %p371 = scmp.eq.s32.totalorder %s34, 1
      %p372 = por %p370, %p371
      %p374 = scmp.ne.s32.totalorder %s359, %s373
      %p375 = scmp.eq.s32.totalorder %s34, 0
      %p376 = por %p374, %p375
      %s378 = sadd.s32 %s377, 1
      %p381 = scmp.eq.s32.totalorder %s28, 1
      %p382 = scmp.ne.s32.totalorder %s377, %s379
      %p383 = scmp.eq.s32.totalorder %s28, 0
      %p384 = por %p382, %p383
      %p385 = scmp.ne.s32.totalorder %s377, %s379
      %p386 = scmp.eq.s32.totalorder %s33, 1
      %p387 = por %p385, %p386
      %p388 = scmp.ne.s32.totalorder %s379, %s380
      %p389 = scmp.eq.s32.totalorder %s33, 0
      %p390 = por %p388, %p389
      %p391 = scmp.ne.s32.totalorder %s379, %s380
      %p392 = scmp.eq.s32.totalorder %s34, 1
      %p393 = por %p391, %p392
      %p395 = scmp.ne.s32.totalorder %s380, %s394
      %p396 = scmp.eq.s32.totalorder %s34, 0
      %p397 = por %p395, %p396
      %s399 = sadd.s32 %s398, 1
      %p402 = scmp.eq.s32.totalorder %s28, 1
      %p403 = scmp.ne.s32.totalorder %s398, %s400
      %p404 = scmp.eq.s32.totalorder %s28, 0
      %p405 = por %p403, %p404
      %p406 = scmp.ne.s32.totalorder %s398, %s400
      %p407 = scmp.eq.s32.totalorder %s33, 1
      %p408 = por %p406, %p407
      %p409 = scmp.ne.s32.totalorder %s400, %s401
      %p410 = scmp.eq.s32.totalorder %s33, 0
      %p411 = por %p409, %p410
      %p412 = scmp.ne.s32.totalorder %s400, %s401
      %p413 = scmp.eq.s32.totalorder %s34, 1
      %p414 = por %p412, %p413
      %p416 = scmp.ne.s32.totalorder %s401, %s415
      %p417 = scmp.eq.s32.totalorder %s34, 0
      %p418 = por %p416, %p417
      %s419 = ssub.s32 %s28, %s35
      %p420 = scmp.eq.s32.totalorder %s419, 0
      %s422 = sadd.s32 %s421, 1
      %s423 = scalar_select %p420, %s421, %s422
      %p426 = pneg %p420
      %p427 = scmp.eq.s32.totalorder %s28, 1
      %p428 = por %p426, %p427
      %p429 = scmp.ne.s32.totalorder %s421, %s424
      %p430 = scmp.eq.s32.totalorder %s28, 0
      %p431 = por %p429, %p430
      %p432 = scmp.ne.s32.totalorder %s421, %s424
      %p433 = scmp.eq.s32.totalorder %s33, 1
      %p434 = por %p432, %p433
      %p435 = scmp.ne.s32.totalorder %s424, %s425
      %p436 = scmp.eq.s32.totalorder %s33, 0
      %p437 = por %p435, %p436
      %p438 = scmp.ne.s32.totalorder %s424, %s425
      %p439 = scmp.eq.s32.totalorder %s34, 1
      %p440 = por %p438, %p439
      %p442 = scmp.ne.s32.totalorder %s425, %s441
      %p443 = scmp.eq.s32.totalorder %s34, 0
      %p444 = por %p442, %p443
      %p445 = scmp.le.s32.totalorder 1, %s28
      %p446 = scmp.lt.s32.totalorder %s28, 3
      %p447 = pnand %p445, %p446
      %p448 = pneg %p447
      // Predicated region
      $region9: #{hierarchical_layer_forward.1} parent=5 // pred_check
        _
      $region10: #{hierarchical_layer_forward.1} parent=5 // pred_check_branch
        %450 = sbr.rel (%p447) target = $region12
      $region11: #{hierarchical_layer_forward.1} parent=5 // pred_region
        %s451 = ssub.s32 %s28, 1
        // Predicated region
        $region13: #{hierarchical_layer_forward.1} parent=11 // pred_check
          %p452 = pneg %p49
        $region14: #{hierarchical_layer_forward.1} parent=11 // pred_check_branch
          %454 = sbr.rel (%p452) target = $region16
        $region15: #{hierarchical_layer_forward.1} parent=11 // pred_region
          _
        $region16: #{hierarchical_layer_forward.1} parent=11 // pred_fallthru
          _
        // Predicated region
        $region17: #{hierarchical_layer_forward.1} parent=11 // pred_check
          %p455 = pneg %p96
        $region18: #{hierarchical_layer_forward.1} parent=11 // pred_check_branch
          %457 = sbr.rel (%p455) target = $region20
        $region19: #{hierarchical_layer_forward.1} parent=11 // pred_region
          _
        $region20: #{hierarchical_layer_forward.1} parent=11 // pred_fallthru
          _
        // Predicated region
        $region21: #{hierarchical_layer_forward.1} parent=11 // pred_check
          %p458 = pneg %p117
        $region22: #{hierarchical_layer_forward.1} parent=11 // pred_check_branch
          %460 = sbr.rel (%p458) target = $region24
        $region23: #{hierarchical_layer_forward.1} parent=11 // pred_region
          _
        $region24: #{hierarchical_layer_forward.1} parent=11 // pred_fallthru
          _
        // Predicated region
        $region25: #{hierarchical_layer_forward.1} parent=11 // pred_check
          %p461 = pneg %p138
        $region26: #{hierarchical_layer_forward.1} parent=11 // pred_check_branch
          %463 = sbr.rel (%p461) target = $region28
        $region27: #{hierarchical_layer_forward.1} parent=11 // pred_region
          _
        $region28: #{hierarchical_layer_forward.1} parent=11 // pred_fallthru
          _
        // Predicated region
        $region29: #{hierarchical_layer_forward.1} parent=11 // pred_check
          %p464 = pneg %p159
        $region30: #{hierarchical_layer_forward.1} parent=11 // pred_check_branch
          %466 = sbr.rel (%p464) target = $region32
        $region31: #{hierarchical_layer_forward.1} parent=11 // pred_region
          _
        $region32: #{hierarchical_layer_forward.1} parent=11 // pred_fallthru
          _
        // Predicated region
        $region33: #{hierarchical_layer_forward.1} parent=11 // pred_check
          %p467 = pneg %p180
        $region34: #{hierarchical_layer_forward.1} parent=11 // pred_check_branch
          %469 = sbr.rel (%p467) target = $region36
        $region35: #{hierarchical_layer_forward.1} parent=11 // pred_region
          _
        $region36: #{hierarchical_layer_forward.1} parent=11 // pred_fallthru
          _
        // Predicated region
        $region37: #{hierarchical_layer_forward.1} parent=11 // pred_check
          %p470 = pneg %p201
        $region38: #{hierarchical_layer_forward.1} parent=11 // pred_check_branch
          %472 = sbr.rel (%p470) target = $region40
        $region39: #{hierarchical_layer_forward.1} parent=11 // pred_region
          _
        $region40: #{hierarchical_layer_forward.1} parent=11 // pred_fallthru
          _
        // Predicated region
        $region41: #{hierarchical_layer_forward.1} parent=11 // pred_check
          %p473 = pneg %p222
        $region42: #{hierarchical_layer_forward.1} parent=11 // pred_check_branch
          %475 = sbr.rel (%p473) target = $region44
        $region43: #{hierarchical_layer_forward.1} parent=11 // pred_region
          _
        $region44: #{hierarchical_layer_forward.1} parent=11 // pred_fallthru
          _
        // Predicated region
        $region45: #{hierarchical_layer_forward.1} parent=11 // pred_check
          %p476 = pneg %p243
        $region46: #{hierarchical_layer_forward.1} parent=11 // pred_check_branch
          %478 = sbr.rel (%p476) target = $region48
        $region47: #{hierarchical_layer_forward.1} parent=11 // pred_region
          _
        $region48: #{hierarchical_layer_forward.1} parent=11 // pred_fallthru
          _
        // Predicated region
        $region49: #{hierarchical_layer_forward.1} parent=11 // pred_check
          %p479 = pneg %p264
        $region50: #{hierarchical_layer_forward.1} parent=11 // pred_check_branch
          %481 = sbr.rel (%p479) target = $region52
        $region51: #{hierarchical_layer_forward.1} parent=11 // pred_region
          _
        $region52: #{hierarchical_layer_forward.1} parent=11 // pred_fallthru
          _
        // Predicated region
        $region53: #{hierarchical_layer_forward.1} parent=11 // pred_check
          %p482 = pneg %p285
        $region54: #{hierarchical_layer_forward.1} parent=11 // pred_check_branch
          %484 = sbr.rel (%p482) target = $region56
        $region55: #{hierarchical_layer_forward.1} parent=11 // pred_region
          _
        $region56: #{hierarchical_layer_forward.1} parent=11 // pred_fallthru
          _
        // Predicated region
        $region57: #{hierarchical_layer_forward.1} parent=11 // pred_check
          %p485 = pneg %p306
        $region58: #{hierarchical_layer_forward.1} parent=11 // pred_check_branch
          %487 = sbr.rel (%p485) target = $region60
        $region59: #{hierarchical_layer_forward.1} parent=11 // pred_region
          _
        $region60: #{hierarchical_layer_forward.1} parent=11 // pred_fallthru
          _
        // Predicated region
        $region61: #{hierarchical_layer_forward.1} parent=11 // pred_check
          %p488 = pneg %p327
        $region62: #{hierarchical_layer_forward.1} parent=11 // pred_check_branch
          %490 = sbr.rel (%p488) target = $region64
        $region63: #{hierarchical_layer_forward.1} parent=11 // pred_region
          _
        $region64: #{hierarchical_layer_forward.1} parent=11 // pred_fallthru
          _
        // Predicated region
        $region65: #{hierarchical_layer_forward.1} parent=11 // pred_check
          %p491 = pneg %p348
        $region66: #{hierarchical_layer_forward.1} parent=11 // pred_check_branch
          %493 = sbr.rel (%p491) target = $region68
        $region67: #{hierarchical_layer_forward.1} parent=11 // pred_region
          _
        $region68: #{hierarchical_layer_forward.1} parent=11 // pred_fallthru
          _
        // Predicated region
        $region69: #{hierarchical_layer_forward.1} parent=11 // pred_check
          %p494 = pneg %p369
        $region70: #{hierarchical_layer_forward.1} parent=11 // pred_check_branch
          %496 = sbr.rel (%p494) target = $region72
        $region71: #{hierarchical_layer_forward.1} parent=11 // pred_region
          _
        $region72: #{hierarchical_layer_forward.1} parent=11 // pred_fallthru
          _
        // Predicated region
        $region73: #{hierarchical_layer_forward.1} parent=11 // pred_check
          %p497 = pneg %p390
        $region74: #{hierarchical_layer_forward.1} parent=11 // pred_check_branch
          %499 = sbr.rel (%p497) target = $region76
        $region75: #{hierarchical_layer_forward.1} parent=11 // pred_region
          _
        $region76: #{hierarchical_layer_forward.1} parent=11 // pred_fallthru
          _
        // Predicated region
        $region77: #{hierarchical_layer_forward.1} parent=11 // pred_check
          %p500 = pneg %p411
        $region78: #{hierarchical_layer_forward.1} parent=11 // pred_check_branch
          %502 = sbr.rel (%p500) target = $region80
        $region79: #{hierarchical_layer_forward.1} parent=11 // pred_region
          _
        $region80: #{hierarchical_layer_forward.1} parent=11 // pred_fallthru
          _
      $region12: #{hierarchical_layer_forward.1} parent=5 // pred_fallthru
        _
      %p503 = scmp.lt.s32.totalorder %s28, 2
      // Predicated region
      $region81: #{hierarchical_layer_forward.1} parent=5 // pred_check
        %p504 = pneg %p503
      $region82: #{hierarchical_layer_forward.1} parent=5 // pred_check_branch
        %506 = sbr.rel (%p504) target = $region84
      $region83: #{hierarchical_layer_forward.1} parent=5 // pred_region
        // Predicated region
        $region85: #{hierarchical_layer_forward.1} parent=83 // pred_check
          %p507 = pneg %p69
        $region86: #{hierarchical_layer_forward.1} parent=83 // pred_check_branch
          %509 = sbr.rel (%p507) target = $region88
        $region87: #{hierarchical_layer_forward.1} parent=83 // pred_region
          %p510 = scmp.lt.s32.totalorder %s28, 1
          %s511 = scalar_select %p510, %s28, 1
          %s512 = smul.addr %s511, 8
          %s513 = smul.addr %s512, 8
          %s514 = scalar_lea.vmem %s1, %s513
        $region88: #{hierarchical_layer_forward.1} parent=83 // pred_fallthru
          _
      $region84: #{hierarchical_layer_forward.1} parent=5 // pred_fallthru
        _
      %p515 = scmp.le.s32.totalorder 1, %s28
      %p516 = scmp.lt.s32.totalorder %s28, 3
      %p517 = pnand %p515, %p516
      %p518 = pneg %p517
      // Predicated region
      $region89: #{hierarchical_layer_forward.1} parent=5 // pred_check
        _
      $region90: #{hierarchical_layer_forward.1} parent=5 // pred_check_branch
        %520 = sbr.rel (%p517) target = $region92
      $region91: #{hierarchical_layer_forward.1} parent=5 // pred_region
        %s521 = ssub.s32 %s28, 1
        %p522 = pneg %p49
        %p523 = pneg %p46
        %p524 = scmp.lt.s32.totalorder %s33, 1
        %s525 = scalar_select %p524, %s33, 1
        %s526 = smul.addr %s525, 8
        %s527 = smul.addr %s526, 8
        %s528 = scalar_lea.vmem %s1, %s527
        %p529 = pneg %p75
        %p530 = pneg %p72
        %p531 = pneg %p96
        %p532 = pneg %p93
        %p533 = pneg %p117
        %p534 = pneg %p114
        %p535 = pneg %p138
        %p536 = pneg %p135
        %p537 = pneg %p159
        %p538 = pneg %p156
        %p539 = pneg %p180
        %p540 = pneg %p177
        %p541 = pneg %p201
        %p542 = pneg %p198
        %p543 = pneg %p222
        %p544 = pneg %p219
        %p545 = pneg %p243
        %p546 = pneg %p240
        %p547 = pneg %p264
        %p548 = pneg %p261
        %p549 = pneg %p285
        %p550 = pneg %p282
        %p551 = pneg %p306
        %p552 = pneg %p303
        %p553 = pneg %p327
        %p554 = pneg %p324
        %p555 = pneg %p348
        %p556 = pneg %p345
        %p557 = pneg %p369
        %p558 = pneg %p366
        %p559 = pneg %p390
        %p560 = pneg %p387
        %p561 = pneg %p411
        %p562 = pneg %p408
        %p563 = pneg %p437
        %p564 = pneg %p434
        %s565 = sand.u32 %s424, 1
        %s566 = scalar_lea.sflag [#allocation4], %s565
        %s567 = sand.u32 %s424, 1
        %s568 = smul.addr %s567, 64
        %s569 = scalar_lea.vmem [#allocation3], %s568
        %p570 = scmp.lt.s32.totalorder %s33, 1
        %s571 = scalar_select %p570, %s33, 1
        %s572 = smul.addr %s571, 8
        %s573 = smul.addr %s572, 8
        %s574 = scalar_lea.vmem %s1, %s573
        %v575 = vld [vmem:[%s574] sm:$0xff]
        %v576 = vld [vmem:[%s574 + $0x8] sm:$0xff]
        %v577 = vld [vmem:[%s574 + $0x10] sm:$0xff]
        %v578 = vld [vmem:[%s574 + $0x18] sm:$0xff]
        %v579 = vld [vmem:[%s574 + $0x20] sm:$0xff]
        %v580 = vld [vmem:[%s574 + $0x28] sm:$0xff]
        %v581 = vld [vmem:[%s574 + $0x30] sm:$0xff]
        %v582 = vld [vmem:[%s574 + $0x38] sm:$0xff]
        %s583 = sld [smem:[#allocation2]]
        %s584 = sand.u32 2147483647, %s583
        %v585 = vld [vmem:[%s2] sm:$0x1]
        %v586 = vld [vmem:[%s3] sm:$0x1]
        %vm587 = vcmask 261120
        %v588 = vsel %vm587, %v575, 0.0
        %589 = vadd.xlane.f32.xlu0 %v588
        %v590 = vpop.xlane.xlu0 %589
        %v591 = vsel %vm587, %v576, 0.0
        %592 = vadd.xlane.f32.xlu0 %v591
        %v593 = vpop.xlane.xlu0 %592
        %v594 = vsel %vm587, %v577, 0.0
        %595 = vadd.xlane.f32.xlu0 %v594
        %v596 = vpop.xlane.xlu0 %595
        %v597 = vsel %vm587, %v578, 0.0
        %598 = vadd.xlane.f32.xlu0 %v597
        %v599 = vpop.xlane.xlu0 %598
        %v600 = vsel %vm587, %v579, 0.0
        %601 = vadd.xlane.f32.xlu0 %v600
        %v602 = vpop.xlane.xlu0 %601
        %v603 = vsel %vm587, %v580, 0.0
        %604 = vadd.xlane.f32.xlu0 %v603
        %v605 = vpop.xlane.xlu0 %604
        %v606 = vsel %vm587, %v581, 0.0
        %607 = vadd.xlane.f32.xlu0 %v606
        %v608 = vpop.xlane.xlu0 %607
        %v609 = vsel %vm587, %v582, 0.0
        %610 = vadd.xlane.f32.xlu0 %v609
        %v611 = vpop.xlane.xlu0 %610
        %v612 = vrcp.pop 32.0
        %v613 = vmul.f32 %v590, %v612
        %v614 = vmul.f32 %v593, %v612
        %v615 = vmul.f32 %v596, %v612
        %v616 = vmul.f32 %v599, %v612
        %v617 = vmul.f32 %v602, %v612
        %v618 = vmul.f32 %v605, %v612
        %v619 = vmul.f32 %v608, %v612
        %v620 = vmul.f32 %v611, %v612
        %v621 = vsub.f32 %v575, %v613
        %v622 = vsub.f32 %v576, %v614
        %v623 = vsub.f32 %v577, %v615
        %v624 = vsub.f32 %v578, %v616
        %v625 = vsub.f32 %v579, %v617
        %v626 = vsub.f32 %v580, %v618
        %v627 = vsub.f32 %v581, %v619
        %v628 = vsub.f32 %v582, %v620
        %v629 = vmul.f32 %v621, %v621
        %v630 = vmul.f32 %v622, %v622
        %v631 = vmul.f32 %v623, %v623
        %v632 = vmul.f32 %v624, %v624
        %v633 = vmul.f32 %v625, %v625
        %v634 = vmul.f32 %v626, %v626
        %v635 = vmul.f32 %v627, %v627
        %v636 = vmul.f32 %v628, %v628
        %v637 = vsel %vm587, %v629, 0.0
        %638 = vadd.xlane.f32.xlu0 %v637
        %v639 = vpop.xlane.xlu0 %638
        %v640 = vsel %vm587, %v630, 0.0
        %641 = vadd.xlane.f32.xlu0 %v640
        %v642 = vpop.xlane.xlu0 %641
        %v643 = vsel %vm587, %v631, 0.0
        %644 = vadd.xlane.f32.xlu0 %v643
        %v645 = vpop.xlane.xlu0 %644
        %v646 = vsel %vm587, %v632, 0.0
        %647 = vadd.xlane.f32.xlu0 %v646
        %v648 = vpop.xlane.xlu0 %647
        %v649 = vsel %vm587, %v633, 0.0
        %650 = vadd.xlane.f32.xlu0 %v649
        %v651 = vpop.xlane.xlu0 %650
        %v652 = vsel %vm587, %v634, 0.0
        %653 = vadd.xlane.f32.xlu0 %v652
        %v654 = vpop.xlane.xlu0 %653
        %v655 = vsel %vm587, %v635, 0.0
        %656 = vadd.xlane.f32.xlu0 %v655
        %v657 = vpop.xlane.xlu0 %656
        %v658 = vsel %vm587, %v636, 0.0
        %659 = vadd.xlane.f32.xlu0 %v658
        %v660 = vpop.xlane.xlu0 %659
        %v661 = vmul.f32 %v639, %v612
        %v662 = vmul.f32 %v642, %v612
        %v663 = vmul.f32 %v645, %v612
        %v664 = vmul.f32 %v648, %v612
        %v665 = vmul.f32 %v651, %v612
        %v666 = vmul.f32 %v654, %v612
        %v667 = vmul.f32 %v657, %v612
        %v668 = vmul.f32 %v660, %v612
        %v669 = vadd.f32 %v661, 1e-05
        %v670 = vadd.f32 %v662, 1e-05
        %v671 = vadd.f32 %v663, 1e-05
        %v672 = vadd.f32 %v664, 1e-05
        %v673 = vadd.f32 %v665, 1e-05
        %v674 = vadd.f32 %v666, 1e-05
        %v675 = vadd.f32 %v667, 1e-05
        %v676 = vadd.f32 %v668, 1e-05
        %v677 = vrsqrt.pop %v669
        %v678 = vrsqrt.pop %v670
        %v679 = vrsqrt.pop %v671
        %v680 = vrsqrt.pop %v672
        %v681 = vrsqrt.pop %v673
        %v682 = vrsqrt.pop %v674
        %v683 = vrsqrt.pop %v675
        %v684 = vrsqrt.pop %v676
        %v685 = vmul.f32 %v621, %v677
        %v686 = vmul.f32 %v622, %v678
        %v687 = vmul.f32 %v623, %v679
        %v688 = vmul.f32 %v624, %v680
        %v689 = vmul.f32 %v625, %v681
        %v690 = vmul.f32 %v626, %v682
        %v691 = vmul.f32 %v627, %v683
        %v692 = vmul.f32 %v628, %v684
        %v694 = vlaneseq
        %v695 = vshrl.u32 %v694, 7
        %v696 = vsub.s32 0, %v695
        %v697 = vrot.slane %v585, %v696
        %v699 = vmul.f32 %v685, %v697
        %v700 = vmul.f32 %v686, %v697
        %v701 = vmul.f32 %v687, %v697
        %v702 = vmul.f32 %v688, %v697
        %v703 = vmul.f32 %v689, %v697
        %v704 = vmul.f32 %v690, %v697
        %v705 = vmul.f32 %v691, %v697
        %v706 = vmul.f32 %v692, %v697
        %v708 = vlaneseq
        %v709 = vshrl.u32 %v708, 7
        %v710 = vsub.s32 0, %v709
        %v711 = vrot.slane %v586, %v710
        %v713 = vadd.f32 %v699, %v711
        %v714 = vadd.f32 %v700, %v711
        %v715 = vadd.f32 %v701, %v711
        %v716 = vadd.f32 %v702, %v711
        %v717 = vadd.f32 %v703, %v711
        %v718 = vadd.f32 %v704, %v711
        %v719 = vadd.f32 %v705, %v711
        %v720 = vadd.f32 %v706, %v711
        %v721 = vld [vmem:[%s4] sm:$0xff]
        %v722 = vld [vmem:[%s4 + $0x8] sm:$0xff]
        %v723 = vld [vmem:[%s4 + $0x10] sm:$0xff]
        %v724 = vld [vmem:[%s4 + $0x18] sm:$0xff]
        %v725 = vld [vmem:[%s5] sm:$0x1]
        %v727 = vlaneseq
        %v728 = vshrl.u32 %v727, 7
        %v729 = vsub.s32 0, %v728
        %v730 = vrot.slane %v725, %v729
        %v733 = vsel %vm587, %v713, 0
        %v736 = vsel %vm587, %v714, 0
        %v739 = vsel %vm587, %v715, 0
        %v742 = vsel %vm587, %v716, 0
        %v745 = vsel %vm587, %v717, 0
        %v748 = vsel %vm587, %v718, 0
        %v751 = vsel %vm587, %v719, 0
        %v754 = vsel %vm587, %v720, 0
        %756 = vmatprep.subr.mxu0 0.0
        %757 = vmatpush1.msra.mxu0 %v721
        %758 = vmatprep.subr.mxu0 0.0
        %759 = vmatpush1.msra.mxu0 %v722
        %760 = vmatprep.subr.mxu0 0.0
        %761 = vmatpush1.msra.mxu0 %v723
        %762 = vmatprep.subr.mxu0 0.0
        %763 = vmatpush1.msra.mxu0 %v724
        %764 = vmatprep.subr.mxu0 0.0
        %765 = vmatpush1.msra.mxu0 0.0
        %766 = vmatprep.subr.mxu0 0.0
        %767 = vmatpush1.msra.mxu0 0.0
        %768 = vmatprep.subr.mxu0 0.0
        %769 = vmatpush1.msra.mxu0 0.0
        %770 = vmatprep.subr.mxu0 0.0
        %771 = vmatpush1.msra.mxu0 0.0
        %772 = vmatprep.subr.mxu0 0.0
        %773 = vmatpush1.msra.mxu0 0.0
        %774 = vmatprep.subr.mxu0 0.0
        %775 = vmatpush1.msra.mxu0 0.0
        %776 = vmatprep.subr.mxu0 0.0
        %777 = vmatpush1.msra.mxu0 0.0
        %778 = vmatprep.subr.mxu0 0.0
        %779 = vmatpush1.msra.mxu0 0.0
        %780 = vmatprep.subr.mxu0 0.0
        %781 = vmatpush1.msra.mxu0 0.0
        %782 = vmatprep.subr.mxu0 0.0
        %783 = vmatpush1.msra.mxu0 0.0
        %784 = vmatprep.subr.mxu0 0.0
        %785 = vmatpush1.msra.mxu0 0.0
        %786 = vmatprep.subr.mxu0 0.0
        %787 = vmatpush1.msra.mxu0 0.0
        %788 = vmatprep.subr.mxu0 0.0
        %789 = vmatpush1.msra.mxu0 0.0
        %790 = vmatprep.subr.mxu0 0.0
        %791 = vmatpush1.msra.mxu0 0.0
        %792 = vmatprep.subr.mxu0 0.0
        %793 = vmatpush1.msra.mxu0 0.0
        %794 = vmatprep.subr.mxu0 0.0
        %795 = vmatpush1.msra.mxu0 0.0
        %796 = vmatprep.subr.mxu0 0.0
        %797 = vmatpush1.msra.mxu0 0.0
        %798 = vmatprep.subr.mxu0 0.0
        %799 = vmatpush1.msra.mxu0 0.0
        %800 = vmatprep.subr.mxu0 0.0
        %801 = vmatpush1.msra.mxu0 0.0
        %802 = vmatprep.subr.mxu0 0.0
        %803 = vmatpush1.msra.mxu0 0.0
        %804 = vmatprep.subr.mxu0 0.0
        %805 = vmatpush1.msra.mxu0 0.0
        %806 = vmatprep.subr.mxu0 0.0
        %807 = vmatpush1.msra.mxu0 0.0
        %808 = vmatprep.subr.mxu0 0.0
        %809 = vmatpush1.msra.mxu0 0.0
        %810 = vmatprep.subr.mxu0 0.0
        %811 = vmatpush1.msra.mxu0 0.0
        %812 = vmatprep.subr.mxu0 0.0
        %813 = vmatpush1.msra.mxu0 0.0
        %814 = vmatprep.subr.mxu0 0.0
        %815 = vmatpush1.msra.mxu0 0.0
        %816 = vmatprep.subr.mxu0 0.0
        %817 = vmatpush1.msra.mxu0 0.0
        %818 = vmatprep.subr.mxu0 0.0
        %819 = vmatpush1.msra.mxu0 0.0
        %820 = vmatprep.mubr.f32.mxu0 0.0
        %821 = vmatmul.mubr.f32.gmra.mrb[0].mxu0 %v733
        %v822 = vpop.f32.mrb[0].mxu0
        %v823 = vadd.f32 %v730, %v822
        %v824 = vpop.f32.mrb[0].mxu0
        %825 = vmatprep.mubr.f32.mxu0 0.0
        %826 = vmatmul.mubr.f32.gmra.mrb[0].mxu0 %v736
        %v827 = vpop.f32.mrb[0].mxu0
        %v828 = vadd.f32 %v730, %v827
        %v829 = vpop.f32.mrb[0].mxu0
        %830 = vmatprep.mubr.f32.mxu0 0.0
        %831 = vmatmul.mubr.f32.gmra.mrb[0].mxu0 %v739
        %v832 = vpop.f32.mrb[0].mxu0
        %v833 = vadd.f32 %v730, %v832
        %v834 = vpop.f32.mrb[0].mxu0
        %835 = vmatprep.mubr.f32.mxu0 0.0
        %836 = vmatmul.mubr.f32.gmra.mrb[0].mxu0 %v742
        %v837 = vpop.f32.mrb[0].mxu0
        %v838 = vadd.f32 %v730, %v837
        %v839 = vpop.f32.mrb[0].mxu0
        %840 = vmatprep.mubr.f32.mxu0 0.0
        %841 = vmatmul.mubr.f32.gmra.mrb[0].mxu0 %v745
        %v842 = vpop.f32.mrb[0].mxu0
        %v843 = vadd.f32 %v730, %v842
        %v844 = vpop.f32.mrb[0].mxu0
        %845 = vmatprep.mubr.f32.mxu0 0.0
        %846 = vmatmul.mubr.f32.gmra.mrb[0].mxu0 %v748
        %v847 = vpop.f32.mrb[0].mxu0
        %v848 = vadd.f32 %v730, %v847
        %v849 = vpop.f32.mrb[0].mxu0
        %850 = vmatprep.mubr.f32.mxu0 0.0
        %851 = vmatmul.mubr.f32.gmra.mrb[0].mxu0 %v751
        %v852 = vpop.f32.mrb[0].mxu0
        %v853 = vadd.f32 %v730, %v852
        %v854 = vpop.f32.mrb[0].mxu0
        %855 = vmatprep.mubr.f32.mxu0 0.0
        %856 = vmatmul.mubr.f32.gmra.mrb[0].mxu0 %v754
        %v857 = vpop.f32.mrb[0].mxu0
        %v858 = vadd.f32 %v730, %v857
        %v859 = vpop.f32.mrb[0].mxu0
        %860 = vdwg.mxu0
        %v861 = vld [vmem:[%s6] sm:$0xff]
        %v862 = vld [vmem:[%s6 + $0x8] sm:$0xff]
        %v863 = vld [vmem:[%s6 + $0x10] sm:$0xff]
        %v864 = vld [vmem:[%s6 + $0x18] sm:$0xff]
        %v865 = vld [vmem:[%s7] sm:$0x1]
        %v867 = vlaneseq
        %v868 = vshrl.u32 %v867, 7
        %v869 = vsub.s32 0, %v868
        %v870 = vrot.slane %v865, %v869
        %872 = vmatprep.subr.mxu0 0.0
        %873 = vmatpush1.msra.mxu0 %v861
        %874 = vmatprep.subr.mxu0 0.0
        %875 = vmatpush1.msra.mxu0 %v862
        %876 = vmatprep.subr.mxu0 0.0
        %877 = vmatpush1.msra.mxu0 %v863
        %878 = vmatprep.subr.mxu0 0.0
        %879 = vmatpush1.msra.mxu0 %v864
        %880 = vmatprep.subr.mxu0 0.0
        %881 = vmatpush1.msra.mxu0 0.0
        %882 = vmatprep.subr.mxu0 0.0
        %883 = vmatpush1.msra.mxu0 0.0
        %884 = vmatprep.subr.mxu0 0.0
        %885 = vmatpush1.msra.mxu0 0.0
        %886 = vmatprep.subr.mxu0 0.0
        %887 = vmatpush1.msra.mxu0 0.0
        %888 = vmatprep.subr.mxu0 0.0
        %889 = vmatpush1.msra.mxu0 0.0
        %890 = vmatprep.subr.mxu0 0.0
        %891 = vmatpush1.msra.mxu0 0.0
        %892 = vmatprep.subr.mxu0 0.0
        %893 = vmatpush1.msra.mxu0 0.0
        %894 = vmatprep.subr.mxu0 0.0
        %895 = vmatpush1.msra.mxu0 0.0
        %896 = vmatprep.subr.mxu0 0.0
        %897 = vmatpush1.msra.mxu0 0.0
        %898 = vmatprep.subr.mxu0 0.0
        %899 = vmatpush1.msra.mxu0 0.0
        %900 = vmatprep.subr.mxu0 0.0
        %901 = vmatpush1.msra.mxu0 0.0
        %902 = vmatprep.subr.mxu0 0.0
        %903 = vmatpush1.msra.mxu0 0.0
        %904 = vmatprep.subr.mxu0 0.0
        %905 = vmatpush1.msra.mxu0 0.0
        %906 = vmatprep.subr.mxu0 0.0
        %907 = vmatpush1.msra.mxu0 0.0
        %908 = vmatprep.subr.mxu0 0.0
        %909 = vmatpush1.msra.mxu0 0.0
        %910 = vmatprep.subr.mxu0 0.0
        %911 = vmatpush1.msra.mxu0 0.0
        %912 = vmatprep.subr.mxu0 0.0
        %913 = vmatpush1.msra.mxu0 0.0
        %914 = vmatprep.subr.mxu0 0.0
        %915 = vmatpush1.msra.mxu0 0.0
        %916 = vmatprep.subr.mxu0 0.0
        %917 = vmatpush1.msra.mxu0 0.0
        %918 = vmatprep.subr.mxu0 0.0
        %919 = vmatpush1.msra.mxu0 0.0
        %920 = vmatprep.subr.mxu0 0.0
        %921 = vmatpush1.msra.mxu0 0.0
        %922 = vmatprep.subr.mxu0 0.0
        %923 = vmatpush1.msra.mxu0 0.0
        %924 = vmatprep.subr.mxu0 0.0
        %925 = vmatpush1.msra.mxu0 0.0
        %926 = vmatprep.subr.mxu0 0.0
        %927 = vmatpush1.msra.mxu0 0.0
        %928 = vmatprep.subr.mxu0 0.0
        %929 = vmatpush1.msra.mxu0 0.0
        %930 = vmatprep.subr.mxu0 0.0
        %931 = vmatpush1.msra.mxu0 0.0
        %932 = vmatprep.subr.mxu0 0.0
        %933 = vmatpush1.msra.mxu0 0.0
        %934 = vmatprep.subr.mxu0 0.0
        %935 = vmatpush1.msra.mxu0 0.0
        %936 = vmatprep.mubr.f32.mxu0 0.0
        %937 = vmatmul.mubr.f32.gmra.mrb[0].mxu0 %v733
        %v938 = vpop.f32.mrb[0].mxu0
        %v939 = vadd.f32 %v870, %v938
        %v940 = vpop.f32.mrb[0].mxu0
        %941 = vmatprep.mubr.f32.mxu0 0.0
        %942 = vmatmul.mubr.f32.gmra.mrb[0].mxu0 %v736
        %v943 = vpop.f32.mrb[0].mxu0
        %v944 = vadd.f32 %v870, %v943
        %v945 = vpop.f32.mrb[0].mxu0
        %946 = vmatprep.mubr.f32.mxu0 0.0
        %947 = vmatmul.mubr.f32.gmra.mrb[0].mxu0 %v739
        %v948 = vpop.f32.mrb[0].mxu0
        %v949 = vadd.f32 %v870, %v948
        %v950 = vpop.f32.mrb[0].mxu0
        %951 = vmatprep.mubr.f32.mxu0 0.0
        %952 = vmatmul.mubr.f32.gmra.mrb[0].mxu0 %v742
        %v953 = vpop.f32.mrb[0].mxu0
        %v954 = vadd.f32 %v870, %v953
        %v955 = vpop.f32.mrb[0].mxu0
        %956 = vmatprep.mubr.f32.mxu0 0.0
        %957 = vmatmul.mubr.f32.gmra.mrb[0].mxu0 %v745
        %v958 = vpop.f32.mrb[0].mxu0
        %v959 = vadd.f32 %v870, %v958
        %v960 = vpop.f32.mrb[0].mxu0
        %961 = vmatprep.mubr.f32.mxu0 0.0
        %962 = vmatmul.mubr.f32.gmra.mrb[0].mxu0 %v748
        %v963 = vpop.f32.mrb[0].mxu0
        %v964 = vadd.f32 %v870, %v963
        %v965 = vpop.f32.mrb[0].mxu0
        %966 = vmatprep.mubr.f32.mxu0 0.0
        %967 = vmatmul.mubr.f32.gmra.mrb[0].mxu0 %v751
        %v968 = vpop.f32.mrb[0].mxu0
        %v969 = vadd.f32 %v870, %v968
        %v970 = vpop.f32.mrb[0].mxu0
        %971 = vmatprep.mubr.f32.mxu0 0.0
        %972 = vmatmul.mubr.f32.gmra.mrb[0].mxu0 %v754
        %v973 = vpop.f32.mrb[0].mxu0
        %v974 = vadd.f32 %v870, %v973
        %v975 = vpop.f32.mrb[0].mxu0
        %976 = vdwg.mxu0
        %v977 = vld [vmem:[%s8] sm:$0xff]
        %v978 = vld [vmem:[%s8 + $0x8] sm:$0xff]
        %v979 = vld [vmem:[%s8 + $0x10] sm:$0xff]
        %v980 = vld [vmem:[%s8 + $0x18] sm:$0xff]
        %v981 = vld [vmem:[%s9] sm:$0x1]
        %v983 = vlaneseq
        %v984 = vshrl.u32 %v983, 7
        %v985 = vsub.s32 0, %v984
        %v986 = vrot.slane %v981, %v985
        %988 = vmatprep.subr.mxu0 0.0
        %989 = vmatpush1.msra.mxu0 %v977
        %990 = vmatprep.subr.mxu0 0.0
        %991 = vmatpush1.msra.mxu0 %v978
        %992 = vmatprep.subr.mxu0 0.0
        %993 = vmatpush1.msra.mxu0 %v979
        %994 = vmatprep.subr.mxu0 0.0
        %995 = vmatpush1.msra.mxu0 %v980
        %996 = vmatprep.subr.mxu0 0.0
        %997 = vmatpush1.msra.mxu0 0.0
        %998 = vmatprep.subr.mxu0 0.0
        %999 = vmatpush1.msra.mxu0 0.0
        %1000 = vmatprep.subr.mxu0 0.0
        %1001 = vmatpush1.msra.mxu0 0.0
        %1002 = vmatprep.subr.mxu0 0.0
        %1003 = vmatpush1.msra.mxu0 0.0
        %1004 = vmatprep.subr.mxu0 0.0
        %1005 = vmatpush1.msra.mxu0 0.0
        %1006 = vmatprep.subr.mxu0 0.0
        %1007 = vmatpush1.msra.mxu0 0.0
        %1008 = vmatprep.subr.mxu0 0.0
        %1009 = vmatpush1.msra.mxu0 0.0
        %1010 = vmatprep.subr.mxu0 0.0
        %1011 = vmatpush1.msra.mxu0 0.0
        %1012 = vmatprep.subr.mxu0 0.0
        %1013 = vmatpush1.msra.mxu0 0.0
        %1014 = vmatprep.subr.mxu0 0.0
        %1015 = vmatpush1.msra.mxu0 0.0
        %1016 = vmatprep.subr.mxu0 0.0
        %1017 = vmatpush1.msra.mxu0 0.0
        %1018 = vmatprep.subr.mxu0 0.0
        %1019 = vmatpush1.msra.mxu0 0.0
        %1020 = vmatprep.subr.mxu0 0.0
        %1021 = vmatpush1.msra.mxu0 0.0
        %1022 = vmatprep.subr.mxu0 0.0
        %1023 = vmatpush1.msra.mxu0 0.0
        %1024 = vmatprep.subr.mxu0 0.0
        %1025 = vmatpush1.msra.mxu0 0.0
        %1026 = vmatprep.subr.mxu0 0.0
        %1027 = vmatpush1.msra.mxu0 0.0
        %1028 = vmatprep.subr.mxu0 0.0
        %1029 = vmatpush1.msra.mxu0 0.0
        %1030 = vmatprep.subr.mxu0 0.0
        %1031 = vmatpush1.msra.mxu0 0.0
        %1032 = vmatprep.subr.mxu0 0.0
        %1033 = vmatpush1.msra.mxu0 0.0
        %1034 = vmatprep.subr.mxu0 0.0
        %1035 = vmatpush1.msra.mxu0 0.0
        %1036 = vmatprep.subr.mxu0 0.0
        %1037 = vmatpush1.msra.mxu0 0.0
        %1038 = vmatprep.subr.mxu0 0.0
        %1039 = vmatpush1.msra.mxu0 0.0
        %1040 = vmatprep.subr.mxu0 0.0
        %1041 = vmatpush1.msra.mxu0 0.0
        %1042 = vmatprep.subr.mxu0 0.0
        %1043 = vmatpush1.msra.mxu0 0.0
        %1044 = vmatprep.subr.mxu0 0.0
        %1045 = vmatpush1.msra.mxu0 0.0
        %1046 = vmatprep.subr.mxu0 0.0
        %1047 = vmatpush1.msra.mxu0 0.0
        %1048 = vmatprep.subr.mxu0 0.0
        %1049 = vmatpush1.msra.mxu0 0.0
        %1050 = vmatprep.subr.mxu0 0.0
        %1051 = vmatpush1.msra.mxu0 0.0
        %1052 = vmatprep.mubr.f32.mxu0 0.0
        %1053 = vmatmul.mubr.f32.gmra.mrb[0].mxu0 %v733
        %v1054 = vpop.f32.mrb[0].mxu0
        %v1055 = vadd.f32 %v986, %v1054
        %v1056 = vpop.f32.mrb[0].mxu0
        %1057 = vmatprep.mubr.f32.mxu0 0.0
        %1058 = vmatmul.mubr.f32.gmra.mrb[0].mxu0 %v736
        %v1059 = vpop.f32.mrb[0].mxu0
        %v1060 = vadd.f32 %v986, %v1059
        %v1061 = vpop.f32.mrb[0].mxu0
        %1062 = vmatprep.mubr.f32.mxu0 0.0
        %1063 = vmatmul.mubr.f32.gmra.mrb[0].mxu0 %v739
        %v1064 = vpop.f32.mrb[0].mxu0
        %v1065 = vadd.f32 %v986, %v1064
        %v1066 = vpop.f32.mrb[0].mxu0
        %1067 = vmatprep.mubr.f32.mxu0 0.0
        %1068 = vmatmul.mubr.f32.gmra.mrb[0].mxu0 %v742
        %v1069 = vpop.f32.mrb[0].mxu0
        %v1070 = vadd.f32 %v986, %v1069
        %v1071 = vpop.f32.mrb[0].mxu0
        %1072 = vmatprep.mubr.f32.mxu0 0.0
        %1073 = vmatmul.mubr.f32.gmra.mrb[0].mxu0 %v745
        %v1074 = vpop.f32.mrb[0].mxu0
        %v1075 = vadd.f32 %v986, %v1074
        %v1076 = vpop.f32.mrb[0].mxu0
        %1077 = vmatprep.mubr.f32.mxu0 0.0
        %1078 = vmatmul.mubr.f32.gmra.mrb[0].mxu0 %v748
        %v1079 = vpop.f32.mrb[0].mxu0
        %v1080 = vadd.f32 %v986, %v1079
        %v1081 = vpop.f32.mrb[0].mxu0
        %1082 = vmatprep.mubr.f32.mxu0 0.0
        %1083 = vmatmul.mubr.f32.gmra.mrb[0].mxu0 %v751
        %v1084 = vpop.f32.mrb[0].mxu0
        %v1085 = vadd.f32 %v986, %v1084
        %v1086 = vpop.f32.mrb[0].mxu0
        %1087 = vmatprep.mubr.f32.mxu0 0.0
        %1088 = vmatmul.mubr.f32.gmra.mrb[0].mxu0 %v754
        %v1089 = vpop.f32.mrb[0].mxu0
        %v1090 = vadd.f32 %v986, %v1089
        %v1091 = vpop.f32.mrb[0].mxu0
        %1092 = vdwg.mxu0
        %vm1093 = vcmask 64512
        %v1095 = vsel %vm1093, %v823, 0
        %v1098 = vsel %vm1093, %v828, 0
        %v1101 = vsel %vm1093, %v833, 0
        %v1104 = vsel %vm1093, %v838, 0
        %v1107 = vsel %vm1093, %v843, 0
        %v1110 = vsel %vm1093, %v848, 0
        %v1113 = vsel %vm1093, %v853, 0
        %v1116 = vsel %vm1093, %v858, 0
        %v1119 = vsel %vm1093, %v939, 0
        %v1122 = vsel %vm1093, %v944, 0
        %v1125 = vsel %vm1093, %v949, 0
        %v1128 = vsel %vm1093, %v954, 0
        %v1131 = vsel %vm1093, %v959, 0
        %v1134 = vsel %vm1093, %v964, 0
        %v1137 = vsel %vm1093, %v969, 0
        %v1140 = vsel %vm1093, %v974, 0
        %1142 = vmatprep.subr.mxu0 0.0
        %1143 = vmatpush1.xpose.msra.mxu0 %v1119
        %1144 = vmatprep.subr.mxu0 0.0
        %1145 = vmatpush1.xpose.msra.mxu0 %v1122
        %1146 = vmatprep.subr.mxu0 0.0
        %1147 = vmatpush1.xpose.msra.mxu0 %v1125
        %1148 = vmatprep.subr.mxu0 0.0
        %1149 = vmatpush1.xpose.msra.mxu0 %v1128
        %1150 = vmatprep.subr.mxu0 0.0
        %1151 = vmatpush1.xpose.msra.mxu0 %v1131
        %1152 = vmatprep.subr.mxu0 0.0
        %1153 = vmatpush1.xpose.msra.mxu0 %v1134
        %1154 = vmatprep.subr.mxu0 0.0
        %1155 = vmatpush1.xpose.msra.mxu0 %v1137
        %1156 = vmatprep.subr.mxu0 0.0
        %1157 = vmatpush1.xpose.msra.mxu0 %v1140
        %1158 = vmatprep.subr.mxu0 0.0
        %1159 = vmatpush1.xpose.msra.mxu0 0.0
        %1160 = vmatprep.subr.mxu0 0.0
        %1161 = vmatpush1.xpose.msra.mxu0 0.0
        %1162 = vmatprep.subr.mxu0 0.0
        %1163 = vmatpush1.xpose.msra.mxu0 0.0
        %1164 = vmatprep.subr.mxu0 0.0
        %1165 = vmatpush1.xpose.msra.mxu0 0.0
        %1166 = vmatprep.subr.mxu0 0.0
        %1167 = vmatpush1.xpose.msra.mxu0 0.0
        %1168 = vmatprep.subr.mxu0 0.0
        %1169 = vmatpush1.xpose.msra.mxu0 0.0
        %1170 = vmatprep.subr.mxu0 0.0
        %1171 = vmatpush1.xpose.msra.mxu0 0.0
        %1172 = vmatprep.subr.mxu0 0.0
        %1173 = vmatpush1.xpose.msra.mxu0 0.0
        %1174 = vmatprep.subr.mxu0 0.0
        %1175 = vmatpush1.xpose.msra.mxu0 0.0
        %1176 = vmatprep.subr.mxu0 0.0
        %1177 = vmatpush1.xpose.msra.mxu0 0.0
        %1178 = vmatprep.subr.mxu0 0.0
        %1179 = vmatpush1.xpose.msra.mxu0 0.0
        %1180 = vmatprep.subr.mxu0 0.0
        %1181 = vmatpush1.xpose.msra.mxu0 0.0
        %1182 = vmatprep.subr.mxu0 0.0
        %1183 = vmatpush1.xpose.msra.mxu0 0.0
        %1184 = vmatprep.subr.mxu0 0.0
        %1185 = vmatpush1.xpose.msra.mxu0 0.0
        %1186 = vmatprep.subr.mxu0 0.0
        %1187 = vmatpush1.xpose.msra.mxu0 0.0
        %1188 = vmatprep.subr.mxu0 0.0
        %1189 = vmatpush1.xpose.msra.mxu0 0.0
        %1190 = vmatprep.subr.mxu0 0.0
        %1191 = vmatpush1.xpose.msra.mxu0 0.0
        %1192 = vmatprep.subr.mxu0 0.0
        %1193 = vmatpush1.xpose.msra.mxu0 0.0
        %1194 = vmatprep.subr.mxu0 0.0
        %1195 = vmatpush1.xpose.msra.mxu0 0.0
        %1196 = vmatprep.subr.mxu0 0.0
        %1197 = vmatpush1.xpose.msra.mxu0 0.0
        %1198 = vmatprep.subr.mxu0 0.0
        %1199 = vmatpush1.xpose.msra.mxu0 0.0
        %1200 = vmatprep.subr.mxu0 0.0
        %1201 = vmatpush1.xpose.msra.mxu0 0.0
        %1202 = vmatprep.subr.mxu0 0.0
        %1203 = vmatpush1.xpose.msra.mxu0 0.0
        %1204 = vmatprep.subr.mxu0 0.0
        %1205 = vmatpush1.xpose.msra.mxu0 0.0
        %1206 = vmatprep.mubr.f32.mxu0 0.0
        %1207 = vmatmul.mubr.f32.gmra.mrb[0].mxu0 %v1095
        %v1208 = vpop.f32.mrb[0].mxu0
        %v1209 = vadd.f32 0.0, %v1208
        %v1210 = vpop.f32.mrb[0].mxu0
        %1211 = vmatprep.mubr.f32.mxu0 0.0
        %1212 = vmatmul.mubr.f32.gmra.mrb[0].mxu0 %v1098
        %v1213 = vpop.f32.mrb[0].mxu0
        %v1214 = vadd.f32 0.0, %v1213
        %v1215 = vpop.f32.mrb[0].mxu0
        %1216 = vmatprep.mubr.f32.mxu0 0.0
        %1217 = vmatmul.mubr.f32.gmra.mrb[0].mxu0 %v1101
        %v1218 = vpop.f32.mrb[0].mxu0
        %v1219 = vadd.f32 0.0, %v1218
        %v1220 = vpop.f32.mrb[0].mxu0
        %1221 = vmatprep.mubr.f32.mxu0 0.0
        %1222 = vmatmul.mubr.f32.gmra.mrb[0].mxu0 %v1104
        %v1223 = vpop.f32.mrb[0].mxu0
        %v1224 = vadd.f32 0.0, %v1223
        %v1225 = vpop.f32.mrb[0].mxu0
        %1226 = vmatprep.mubr.f32.mxu0 0.0
        %1227 = vmatmul.mubr.f32.gmra.mrb[0].mxu0 %v1107
        %v1228 = vpop.f32.mrb[0].mxu0
        %v1229 = vadd.f32 0.0, %v1228
        %v1230 = vpop.f32.mrb[0].mxu0
        %1231 = vmatprep.mubr.f32.mxu0 0.0
        %1232 = vmatmul.mubr.f32.gmra.mrb[0].mxu0 %v1110
        %v1233 = vpop.f32.mrb[0].mxu0
        %v1234 = vadd.f32 0.0, %v1233
        %v1235 = vpop.f32.mrb[0].mxu0
        %1236 = vmatprep.mubr.f32.mxu0 0.0
        %1237 = vmatmul.mubr.f32.gmra.mrb[0].mxu0 %v1113
        %v1238 = vpop.f32.mrb[0].mxu0
        %v1239 = vadd.f32 0.0, %v1238
        %v1240 = vpop.f32.mrb[0].mxu0
        %1241 = vmatprep.mubr.f32.mxu0 0.0
        %1242 = vmatmul.mubr.f32.gmra.mrb[0].mxu0 %v1116
        %v1243 = vpop.f32.mrb[0].mxu0
        %v1244 = vadd.f32 0.0, %v1243
        %v1245 = vpop.f32.mrb[0].mxu0
        %1246 = vdwg.mxu0
        %v1247 = vmul.f32 %v1209, 0.35355338
        %v1248 = vmul.f32 %v1214, 0.35355338
        %v1249 = vmul.f32 %v1219, 0.35355338
        %v1250 = vmul.f32 %v1224, 0.35355338
        %v1251 = vmul.f32 %v1229, 0.35355338
        %v1252 = vmul.f32 %v1234, 0.35355338
        %v1253 = vmul.f32 %v1239, 0.35355338
        %v1254 = vmul.f32 %v1244, 0.35355338
        %vm1255 = vcmask 523264
        %v1256 = vsel %vm1255, %v1247, -inf
        %1257 = vmax.xlane.f32.xlu0 %v1256
        %v1258 = vpop.xlane.xlu0 %1257
        %v1259 = vsel %vm1255, %v1248, -inf
        %1260 = vmax.xlane.f32.xlu0 %v1259
        %v1261 = vpop.xlane.xlu0 %1260
        %v1262 = vsel %vm1255, %v1249, -inf
        %1263 = vmax.xlane.f32.xlu0 %v1262
        %v1264 = vpop.xlane.xlu0 %1263
        %v1265 = vsel %vm1255, %v1250, -inf
        %1266 = vmax.xlane.f32.xlu0 %v1265
        %v1267 = vpop.xlane.xlu0 %1266
        %v1268 = vsel %vm1255, %v1251, -inf
        %1269 = vmax.xlane.f32.xlu0 %v1268
        %v1270 = vpop.xlane.xlu0 %1269
        %v1271 = vsel %vm1255, %v1252, -inf
        %1272 = vmax.xlane.f32.xlu0 %v1271
        %v1273 = vpop.xlane.xlu0 %1272
        %v1274 = vsel %vm1255, %v1253, -inf
        %1275 = vmax.xlane.f32.xlu0 %v1274
        %v1276 = vpop.xlane.xlu0 %1275
        %v1277 = vsel %vm1255, %v1254, -inf
        %1278 = vmax.xlane.f32.xlu0 %v1277
        %v1279 = vpop.xlane.xlu0 %1278
        %v1280 = vsub.f32 %v1247, %v1258
        %v1281 = vsub.f32 %v1248, %v1261
        %v1282 = vsub.f32 %v1249, %v1264
        %v1283 = vsub.f32 %v1250, %v1267
        %v1284 = vsub.f32 %v1251, %v1270
        %v1285 = vsub.f32 %v1252, %v1273
        %v1286 = vsub.f32 %v1253, %v1276
        %v1287 = vsub.f32 %v1254, %v1279
        %v1288 = vmul.f32 %v1280, 1.442695
        %v1289 = vpow.pop %v1288
        %v1290 = vmul.f32 %v1281, 1.442695
        %v1291 = vpow.pop %v1290
        %v1292 = vmul.f32 %v1282, 1.442695
        %v1293 = vpow.pop %v1292
        %v1294 = vmul.f32 %v1283, 1.442695
        %v1295 = vpow.pop %v1294
        %v1296 = vmul.f32 %v1284, 1.442695
        %v1297 = vpow.pop %v1296
        %v1298 = vmul.f32 %v1285, 1.442695
        %v1299 = vpow.pop %v1298
        %v1300 = vmul.f32 %v1286, 1.442695
        %v1301 = vpow.pop %v1300
        %v1302 = vmul.f32 %v1287, 1.442695
        %v1303 = vpow.pop %v1302
        %v1304 = vsel %vm1255, %v1289, 0.0
        %1305 = vadd.xlane.f32.xlu0 %v1304
        %v1306 = vpop.xlane.xlu0 %1305
        %v1307 = vsel %vm1255, %v1291, 0.0
        %1308 = vadd.xlane.f32.xlu0 %v1307
        %v1309 = vpop.xlane.xlu0 %1308
        %v1310 = vsel %vm1255, %v1293, 0.0
        %1311 = vadd.xlane.f32.xlu0 %v1310
        %v1312 = vpop.xlane.xlu0 %1311
        %v1313 = vsel %vm1255, %v1295, 0.0
        %1314 = vadd.xlane.f32.xlu0 %v1313
        %v1315 = vpop.xlane.xlu0 %1314
        %v1316 = vsel %vm1255, %v1297, 0.0
        %1317 = vadd.xlane.f32.xlu0 %v1316
        %v1318 = vpop.xlane.xlu0 %1317
        %v1319 = vsel %vm1255, %v1299, 0.0
        %1320 = vadd.xlane.f32.xlu0 %v1319
        %v1321 = vpop.xlane.xlu0 %1320
        %v1322 = vsel %vm1255, %v1301, 0.0
        %1323 = vadd.xlane.f32.xlu0 %v1322
        %v1324 = vpop.xlane.xlu0 %1323
        %v1325 = vsel %vm1255, %v1303, 0.0
        %1326 = vadd.xlane.f32.xlu0 %v1325
        %v1327 = vpop.xlane.xlu0 %1326
        %v1328 = vrcp.pop %v1306
        %v1329 = vrcp.pop %v1309
        %v1330 = vrcp.pop %v1312
        %v1331 = vrcp.pop %v1315
        %v1332 = vrcp.pop %v1318
        %v1333 = vrcp.pop %v1321
        %v1334 = vrcp.pop %v1324
        %v1335 = vrcp.pop %v1327
        %v1336 = vmul.f32 %v1289, %v1328
        %v1337 = vmul.f32 %v1291, %v1329
        %v1338 = vmul.f32 %v1293, %v1330
        %v1339 = vmul.f32 %v1295, %v1331
        %v1340 = vmul.f32 %v1297, %v1332
        %v1341 = vmul.f32 %v1299, %v1333
        %v1342 = vmul.f32 %v1301, %v1334
        %v1343 = vmul.f32 %v1303, %v1335
        %v1345 = vsel %vm1255, %v1336, 0
        %v1348 = vsel %vm1255, %v1337, 0
        %v1351 = vsel %vm1255, %v1338, 0
        %v1354 = vsel %vm1255, %v1339, 0
        %v1357 = vsel %vm1255, %v1340, 0
        %v1360 = vsel %vm1255, %v1341, 0
        %v1363 = vsel %vm1255, %v1342, 0
        %v1366 = vsel %vm1255, %v1343, 0
        %1368 = vmatprep.subr.mxu0 0.0
        %1369 = vmatpush1.msra.mxu0 %v1055
        %1370 = vmatprep.subr.mxu0 0.0
        %1371 = vmatpush1.msra.mxu0 %v1060
        %1372 = vmatprep.subr.mxu0 0.0
        %1373 = vmatpush1.msra.mxu0 %v1065
        %1374 = vmatprep.subr.mxu0 0.0
        %1375 = vmatpush1.msra.mxu0 %v1070
        %1376 = vmatprep.subr.mxu0 0.0
        %1377 = vmatpush1.msra.mxu0 %v1075
        %1378 = vmatprep.subr.mxu0 0.0
        %1379 = vmatpush1.msra.mxu0 %v1080
        %1380 = vmatprep.subr.mxu0 0.0
        %1381 = vmatpush1.msra.mxu0 %v1085
        %1382 = vmatprep.subr.mxu0 0.0
        %1383 = vmatpush1.msra.mxu0 %v1090
        %1384 = vmatprep.subr.mxu0 0.0
        %1385 = vmatpush1.msra.mxu0 0.0
        %1386 = vmatprep.subr.mxu0 0.0
        %1387 = vmatpush1.msra.mxu0 0.0
        %1388 = vmatprep.subr.mxu0 0.0
        %1389 = vmatpush1.msra.mxu0 0.0
        %1390 = vmatprep.subr.mxu0 0.0
        %1391 = vmatpush1.msra.mxu0 0.0
        %1392 = vmatprep.subr.mxu0 0.0
        %1393 = vmatpush1.msra.mxu0 0.0
        %1394 = vmatprep.subr.mxu0 0.0
        %1395 = vmatpush1.msra.mxu0 0.0
        %1396 = vmatprep.subr.mxu0 0.0
        %1397 = vmatpush1.msra.mxu0 0.0
        %1398 = vmatprep.subr.mxu0 0.0
        %1399 = vmatpush1.msra.mxu0 0.0
        %1400 = vmatprep.subr.mxu0 0.0
        %1401 = vmatpush1.msra.mxu0 0.0
        %1402 = vmatprep.subr.mxu0 0.0
        %1403 = vmatpush1.msra.mxu0 0.0
        %1404 = vmatprep.subr.mxu0 0.0
        %1405 = vmatpush1.msra.mxu0 0.0
        %1406 = vmatprep.subr.mxu0 0.0
        %1407 = vmatpush1.msra.mxu0 0.0
        %1408 = vmatprep.subr.mxu0 0.0
        %1409 = vmatpush1.msra.mxu0 0.0
        %1410 = vmatprep.subr.mxu0 0.0
        %1411 = vmatpush1.msra.mxu0 0.0
        %1412 = vmatprep.subr.mxu0 0.0
        %1413 = vmatpush1.msra.mxu0 0.0
        %1414 = vmatprep.subr.mxu0 0.0
        %1415 = vmatpush1.msra.mxu0 0.0
        %1416 = vmatprep.subr.mxu0 0.0
        %1417 = vmatpush1.msra.mxu0 0.0
        %1418 = vmatprep.subr.mxu0 0.0
        %1419 = vmatpush1.msra.mxu0 0.0
        %1420 = vmatprep.subr.mxu0 0.0
        %1421 = vmatpush1.msra.mxu0 0.0
        %1422 = vmatprep.subr.mxu0 0.0
        %1423 = vmatpush1.msra.mxu0 0.0
        %1424 = vmatprep.subr.mxu0 0.0
        %1425 = vmatpush1.msra.mxu0 0.0
        %1426 = vmatprep.subr.mxu0 0.0
        %1427 = vmatpush1.msra.mxu0 0.0
        %1428 = vmatprep.subr.mxu0 0.0
        %1429 = vmatpush1.msra.mxu0 0.0
        %1430 = vmatprep.subr.mxu0 0.0
        %1431 = vmatpush1.msra.mxu0 0.0
        %1432 = vmatprep.mubr.f32.mxu0 0.0
        %1433 = vmatmul.mubr.f32.gmra.mrb[0].mxu0 %v1345
        %v1434 = vpop.f32.mrb[0].mxu0
        %v1435 = vadd.f32 0.0, %v1434
        %v1436 = vpop.f32.mrb[0].mxu0
        %1437 = vmatprep.mubr.f32.mxu0 0.0
        %1438 = vmatmul.mubr.f32.gmra.mrb[0].mxu0 %v1348
        %v1439 = vpop.f32.mrb[0].mxu0
        %v1440 = vadd.f32 0.0, %v1439
        %v1441 = vpop.f32.mrb[0].mxu0
        %1442 = vmatprep.mubr.f32.mxu0 0.0
        %1443 = vmatmul.mubr.f32.gmra.mrb[0].mxu0 %v1351
        %v1444 = vpop.f32.mrb[0].mxu0
        %v1445 = vadd.f32 0.0, %v1444
        %v1446 = vpop.f32.mrb[0].mxu0
        %1447 = vmatprep.mubr.f32.mxu0 0.0
        %1448 = vmatmul.mubr.f32.gmra.mrb[0].mxu0 %v1354
        %v1449 = vpop.f32.mrb[0].mxu0
        %v1450 = vadd.f32 0.0, %v1449
        %v1451 = vpop.f32.mrb[0].mxu0
        %1452 = vmatprep.mubr.f32.mxu0 0.0
        %1453 = vmatmul.mubr.f32.gmra.mrb[0].mxu0 %v1357
        %v1454 = vpop.f32.mrb[0].mxu0
        %v1455 = vadd.f32 0.0, %v1454
        %v1456 = vpop.f32.mrb[0].mxu0
        %1457 = vmatprep.mubr.f32.mxu0 0.0
        %1458 = vmatmul.mubr.f32.gmra.mrb[0].mxu0 %v1360
        %v1459 = vpop.f32.mrb[0].mxu0
        %v1460 = vadd.f32 0.0, %v1459
        %v1461 = vpop.f32.mrb[0].mxu0
        %1462 = vmatprep.mubr.f32.mxu0 0.0
        %1463 = vmatmul.mubr.f32.gmra.mrb[0].mxu0 %v1363
        %v1464 = vpop.f32.mrb[0].mxu0
        %v1465 = vadd.f32 0.0, %v1464
        %v1466 = vpop.f32.mrb[0].mxu0
        %1467 = vmatprep.mubr.f32.mxu0 0.0
        %1468 = vmatmul.mubr.f32.gmra.mrb[0].mxu0 %v1366
        %v1469 = vpop.f32.mrb[0].mxu0
        %v1470 = vadd.f32 0.0, %v1469
        %v1471 = vpop.f32.mrb[0].mxu0
        %1472 = vdwg.mxu0
        %v1473 = vld [vmem:[%s10] sm:$0xff]
        %s1474 = scalar_lea.vmem %s4, 32
        %v1475 = vld [vmem:[%s1474] sm:$0xff]
        %v1476 = vld [vmem:[%s1474 + $0x8] sm:$0xff]
        %v1477 = vld [vmem:[%s1474 + $0x10] sm:$0xff]
        %v1478 = vld [vmem:[%s1474 + $0x18] sm:$0xff]
        %s1479 = scalar_lea.vmem %s5, 1
        %v1480 = vld [vmem:[%s1479] sm:$0x1]
        %v1482 = vlaneseq
        %v1483 = vshrl.u32 %v1482, 7
        %v1484 = vsub.s32 0, %v1483
        %v1485 = vrot.slane %v1480, %v1484
        %1487 = vmatprep.subr.mxu0 0.0
        %1488 = vmatpush1.msra.mxu0 %v1475
        %1489 = vmatprep.subr.mxu0 0.0
        %1490 = vmatpush1.msra.mxu0 %v1476
        %1491 = vmatprep.subr.mxu0 0.0
        %1492 = vmatpush1.msra.mxu0 %v1477
        %1493 = vmatprep.subr.mxu0 0.0
        %1494 = vmatpush1.msra.mxu0 %v1478
        %1495 = vmatprep.subr.mxu0 0.0
        %1496 = vmatpush1.msra.mxu0 0.0
        %1497 = vmatprep.subr.mxu0 0.0
        %1498 = vmatpush1.msra.mxu0 0.0
        %1499 = vmatprep.subr.mxu0 0.0
        %1500 = vmatpush1.msra.mxu0 0.0
        %1501 = vmatprep.subr.mxu0 0.0
        %1502 = vmatpush1.msra.mxu0 0.0
        %1503 = vmatprep.subr.mxu0 0.0
        %1504 = vmatpush1.msra.mxu0 0.0
        %1505 = vmatprep.subr.mxu0 0.0
        %1506 = vmatpush1.msra.mxu0 0.0
        %1507 = vmatprep.subr.mxu0 0.0
        %1508 = vmatpush1.msra.mxu0 0.0
        %1509 = vmatprep.subr.mxu0 0.0
        %1510 = vmatpush1.msra.mxu0 0.0
        %1511 = vmatprep.subr.mxu0 0.0
        %1512 = vmatpush1.msra.mxu0 0.0
        %1513 = vmatprep.subr.mxu0 0.0
        %1514 = vmatpush1.msra.mxu0 0.0
        %1515 = vmatprep.subr.mxu0 0.0
        %1516 = vmatpush1.msra.mxu0 0.0
        %1517 = vmatprep.subr.mxu0 0.0
        %1518 = vmatpush1.msra.mxu0 0.0
        %1519 = vmatprep.subr.mxu0 0.0
        %1520 = vmatpush1.msra.mxu0 0.0
        %1521 = vmatprep.subr.mxu0 0.0
        %1522 = vmatpush1.msra.mxu0 0.0
        %1523 = vmatprep.subr.mxu0 0.0
        %1524 = vmatpush1.msra.mxu0 0.0
        %1525 = vmatprep.subr.mxu0 0.0
        %1526 = vmatpush1.msra.mxu0 0.0
        %1527 = vmatprep.subr.mxu0 0.0
        %1528 = vmatpush1.msra.mxu0 0.0
        %1529 = vmatprep.subr.mxu0 0.0
        %1530 = vmatpush1.msra.mxu0 0.0
        %1531 = vmatprep.subr.mxu0 0.0
        %1532 = vmatpush1.msra.mxu0 0.0
        %1533 = vmatprep.subr.mxu0 0.0
        %1534 = vmatpush1.msra.mxu0 0.0
        %1535 = vmatprep.subr.mxu0 0.0
        %1536 = vmatpush1.msra.mxu0 0.0
        %1537 = vmatprep.subr.mxu0 0.0
        %1538 = vmatpush1.msra.mxu0 0.0
        %1539 = vmatprep.subr.mxu0 0.0
        %1540 = vmatpush1.msra.mxu0 0.0
        %1541 = vmatprep.subr.mxu0 0.0
        %1542 = vmatpush1.msra.mxu0 0.0
        %1543 = vmatprep.subr.mxu0 0.0
        %1544 = vmatpush1.msra.mxu0 0.0
        %1545 = vmatprep.subr.mxu0 0.0
        %1546 = vmatpush1.msra.mxu0 0.0
        %1547 = vmatprep.subr.mxu0 0.0
        %1548 = vmatpush1.msra.mxu0 0.0
        %1549 = vmatprep.subr.mxu0 0.0
        %1550 = vmatpush1.msra.mxu0 0.0
        %1551 = vmatprep.mubr.f32.mxu0 0.0
        %1552 = vmatmul.mubr.f32.gmra.mrb[0].mxu0 %v733
        %v1553 = vpop.f32.mrb[0].mxu0
        %v1554 = vadd.f32 %v1485, %v1553
        %v1555 = vpop.f32.mrb[0].mxu0
        %1556 = vmatprep.mubr.f32.mxu0 0.0
        %1557 = vmatmul.mubr.f32.gmra.mrb[0].mxu0 %v736
        %v1558 = vpop.f32.mrb[0].mxu0
        %v1559 = vadd.f32 %v1485, %v1558
        %v1560 = vpop.f32.mrb[0].mxu0
        %1561 = vmatprep.mubr.f32.mxu0 0.0
        %1562 = vmatmul.mubr.f32.gmra.mrb[0].mxu0 %v739
        %v1563 = vpop.f32.mrb[0].mxu0
        %v1564 = vadd.f32 %v1485, %v1563
        %v1565 = vpop.f32.mrb[0].mxu0
        %1566 = vmatprep.mubr.f32.mxu0 0.0
        %1567 = vmatmul.mubr.f32.gmra.mrb[0].mxu0 %v742
        %v1568 = vpop.f32.mrb[0].mxu0
        %v1569 = vadd.f32 %v1485, %v1568
        %v1570 = vpop.f32.mrb[0].mxu0
        %1571 = vmatprep.mubr.f32.mxu0 0.0
        %1572 = vmatmul.mubr.f32.gmra.mrb[0].mxu0 %v745
        %v1573 = vpop.f32.mrb[0].mxu0
        %v1574 = vadd.f32 %v1485, %v1573
        %v1575 = vpop.f32.mrb[0].mxu0
        %1576 = vmatprep.mubr.f32.mxu0 0.0
        %1577 = vmatmul.mubr.f32.gmra.mrb[0].mxu0 %v748
        %v1578 = vpop.f32.mrb[0].mxu0
        %v1579 = vadd.f32 %v1485, %v1578
        %v1580 = vpop.f32.mrb[0].mxu0
        %1581 = vmatprep.mubr.f32.mxu0 0.0
        %1582 = vmatmul.mubr.f32.gmra.mrb[0].mxu0 %v751
        %v1583 = vpop.f32.mrb[0].mxu0
        %v1584 = vadd.f32 %v1485, %v1583
        %v1585 = vpop.f32.mrb[0].mxu0
        %1586 = vmatprep.mubr.f32.mxu0 0.0
        %1587 = vmatmul.mubr.f32.gmra.mrb[0].mxu0 %v754
        %v1588 = vpop.f32.mrb[0].mxu0
        %v1589 = vadd.f32 %v1485, %v1588
        %v1590 = vpop.f32.mrb[0].mxu0
        %1591 = vdwg.mxu0
        %s1592 = scalar_lea.vmem %s6, 32
        %v1593 = vld [vmem:[%s1592] sm:$0xff]
        %v1594 = vld [vmem:[%s1592 + $0x8] sm:$0xff]
        %v1595 = vld [vmem:[%s1592 + $0x10] sm:$0xff]
        %v1596 = vld [vmem:[%s1592 + $0x18] sm:$0xff]
        %s1597 = scalar_lea.vmem %s7, 1
        %v1598 = vld [vmem:[%s1597] sm:$0x1]
        %v1600 = vlaneseq
        %v1601 = vshrl.u32 %v1600, 7
        %v1602 = vsub.s32 0, %v1601
        %v1603 = vrot.slane %v1598, %v1602
        %1605 = vmatprep.subr.mxu0 0.0
        %1606 = vmatpush1.msra.mxu0 %v1593
        %1607 = vmatprep.subr.mxu0 0.0
        %1608 = vmatpush1.msra.mxu0 %v1594
        %1609 = vmatprep.subr.mxu0 0.0
        %1610 = vmatpush1.msra.mxu0 %v1595
        %1611 = vmatprep.subr.mxu0 0.0
        %1612 = vmatpush1.msra.mxu0 %v1596
        %1613 = vmatprep.subr.mxu0 0.0
        %1614 = vmatpush1.msra.mxu0 0.0
        %1615 = vmatprep.subr.mxu0 0.0
        %1616 = vmatpush1.msra.mxu0 0.0
        %1617 = vmatprep.subr.mxu0 0.0
        %1618 = vmatpush1.msra.mxu0 0.0
        %1619 = vmatprep.subr.mxu0 0.0
        %1620 = vmatpush1.msra.mxu0 0.0
        %1621 = vmatprep.subr.mxu0 0.0
        %1622 = vmatpush1.msra.mxu0 0.0
        %1623 = vmatprep.subr.mxu0 0.0
        %1624 = vmatpush1.msra.mxu0 0.0
        %1625 = vmatprep.subr.mxu0 0.0
        %1626 = vmatpush1.msra.mxu0 0.0
        %1627 = vmatprep.subr.mxu0 0.0
        %1628 = vmatpush1.msra.mxu0 0.0
        %1629 = vmatprep.subr.mxu0 0.0
        %1630 = vmatpush1.msra.mxu0 0.0
        %1631 = vmatprep.subr.mxu0 0.0
        %1632 = vmatpush1.msra.mxu0 0.0
        %1633 = vmatprep.subr.mxu0 0.0
        %1634 = vmatpush1.msra.mxu0 0.0
        %1635 = vmatprep.subr.mxu0 0.0
        %1636 = vmatpush1.msra.mxu0 0.0
        %1637 = vmatprep.subr.mxu0 0.0
        %1638 = vmatpush1.msra.mxu0 0.0
        %1639 = vmatprep.subr.mxu0 0.0
        %1640 = vmatpush1.msra.mxu0 0.0
        %1641 = vmatprep.subr.mxu0 0.0
        %1642 = vmatpush1.msra.mxu0 0.0
        %1643 = vmatprep.subr.mxu0 0.0
        %1644 = vmatpush1.msra.mxu0 0.0
        %1645 = vmatprep.subr.mxu0 0.0
        %1646 = vmatpush1.msra.mxu0 0.0
        %1647 = vmatprep.subr.mxu0 0.0
        %1648 = vmatpush1.msra.mxu0 0.0
        %1649 = vmatprep.subr.mxu0 0.0
        %1650 = vmatpush1.msra.mxu0 0.0
        %1651 = vmatprep.subr.mxu0 0.0
        %1652 = vmatpush1.msra.mxu0 0.0
        %1653 = vmatprep.subr.mxu0 0.0
        %1654 = vmatpush1.msra.mxu0 0.0
        %1655 = vmatprep.subr.mxu0 0.0
        %1656 = vmatpush1.msra.mxu0 0.0
        %1657 = vmatprep.subr.mxu0 0.0
        %1658 = vmatpush1.msra.mxu0 0.0
        %1659 = vmatprep.subr.mxu0 0.0
        %1660 = vmatpush1.msra.mxu0 0.0
        %1661 = vmatprep.subr.mxu0 0.0
        %1662 = vmatpush1.msra.mxu0 0.0
        %1663 = vmatprep.subr.mxu0 0.0
        %1664 = vmatpush1.msra.mxu0 0.0
        %1665 = vmatprep.subr.mxu0 0.0
        %1666 = vmatpush1.msra.mxu0 0.0
        %1667 = vmatprep.subr.mxu0 0.0
        %1668 = vmatpush1.msra.mxu0 0.0
        %1669 = vmatprep.mubr.f32.mxu0 0.0
        %1670 = vmatmul.mubr.f32.gmra.mrb[0].mxu0 %v733
        %v1671 = vpop.f32.mrb[0].mxu0
        %v1672 = vadd.f32 %v1603, %v1671
        %v1673 = vpop.f32.mrb[0].mxu0
        %1674 = vmatprep.mubr.f32.mxu0 0.0
        %1675 = vmatmul.mubr.f32.gmra.mrb[0].mxu0 %v736
        %v1676 = vpop.f32.mrb[0].mxu0
        %v1677 = vadd.f32 %v1603, %v1676
        %v1678 = vpop.f32.mrb[0].mxu0
        %1679 = vmatprep.mubr.f32.mxu0 0.0
        %1680 = vmatmul.mubr.f32.gmra.mrb[0].mxu0 %v739
        %v1681 = vpop.f32.mrb[0].mxu0
        %v1682 = vadd.f32 %v1603, %v1681
        %v1683 = vpop.f32.mrb[0].mxu0
        %1684 = vmatprep.mubr.f32.mxu0 0.0
        %1685 = vmatmul.mubr.f32.gmra.mrb[0].mxu0 %v742
        %v1686 = vpop.f32.mrb[0].mxu0
        %v1687 = vadd.f32 %v1603, %v1686
        %v1688 = vpop.f32.mrb[0].mxu0
        %1689 = vmatprep.mubr.f32.mxu0 0.0
        %1690 = vmatmul.mubr.f32.gmra.mrb[0].mxu0 %v745
        %v1691 = vpop.f32.mrb[0].mxu0
        %v1692 = vadd.f32 %v1603, %v1691
        %v1693 = vpop.f32.mrb[0].mxu0
        %1694 = vmatprep.mubr.f32.mxu0 0.0
        %1695 = vmatmul.mubr.f32.gmra.mrb[0].mxu0 %v748
        %v1696 = vpop.f32.mrb[0].mxu0
        %v1697 = vadd.f32 %v1603, %v1696
        %v1698 = vpop.f32.mrb[0].mxu0
        %1699 = vmatprep.mubr.f32.mxu0 0.0
        %1700 = vmatmul.mubr.f32.gmra.mrb[0].mxu0 %v751
        %v1701 = vpop.f32.mrb[0].mxu0
        %v1702 = vadd.f32 %v1603, %v1701
        %v1703 = vpop.f32.mrb[0].mxu0
        %1704 = vmatprep.mubr.f32.mxu0 0.0
        %1705 = vmatmul.mubr.f32.gmra.mrb[0].mxu0 %v754
        %v1706 = vpop.f32.mrb[0].mxu0
        %v1707 = vadd.f32 %v1603, %v1706
        %v1708 = vpop.f32.mrb[0].mxu0
        %1709 = vdwg.mxu0
        %s1710 = scalar_lea.vmem %s8, 32
        %v1711 = vld [vmem:[%s1710] sm:$0xff]
        %v1712 = vld [vmem:[%s1710 + $0x8] sm:$0xff]
        %v1713 = vld [vmem:[%s1710 + $0x10] sm:$0xff]
        %v1714 = vld [vmem:[%s1710 + $0x18] sm:$0xff]
        %s1715 = scalar_lea.vmem %s9, 1
        %v1716 = vld [vmem:[%s1715] sm:$0x1]
        %v1718 = vlaneseq
        %v1719 = vshrl.u32 %v1718, 7
        %v1720 = vsub.s32 0, %v1719
        %v1721 = vrot.slane %v1716, %v1720
        %1723 = vmatprep.subr.mxu0 0.0
        %1724 = vmatpush1.msra.mxu0 %v1711
        %1725 = vmatprep.subr.mxu0 0.0
        %1726 = vmatpush1.msra.mxu0 %v1712
        %1727 = vmatprep.subr.mxu0 0.0
        %1728 = vmatpush1.msra.mxu0 %v1713
        %1729 = vmatprep.subr.mxu0 0.0
        %1730 = vmatpush1.msra.mxu0 %v1714
        %1731 = vmatprep.subr.mxu0 0.0
        %1732 = vmatpush1.msra.mxu0 0.0
        %1733 = vmatprep.subr.mxu0 0.0
        %1734 = vmatpush1.msra.mxu0 0.0
        %1735 = vmatprep.subr.mxu0 0.0
        %1736 = vmatpush1.msra.mxu0 0.0
        %1737 = vmatprep.subr.mxu0 0.0
        %1738 = vmatpush1.msra.mxu0 0.0
        %1739 = vmatprep.subr.mxu0 0.0
        %1740 = vmatpush1.msra.mxu0 0.0
        %1741 = vmatprep.subr.mxu0 0.0
        %1742 = vmatpush1.msra.mxu0 0.0
        %1743 = vmatprep.subr.mxu0 0.0
        %1744 = vmatpush1.msra.mxu0 0.0
        %1745 = vmatprep.subr.mxu0 0.0
        %1746 = vmatpush1.msra.mxu0 0.0
        %1747 = vmatprep.subr.mxu0 0.0
        %1748 = vmatpush1.msra.mxu0 0.0
        %1749 = vmatprep.subr.mxu0 0.0
        %1750 = vmatpush1.msra.mxu0 0.0
        %1751 = vmatprep.subr.mxu0 0.0
        %1752 = vmatpush1.msra.mxu0 0.0
        %1753 = vmatprep.subr.mxu0 0.0
        %1754 = vmatpush1.msra.mxu0 0.0
        %1755 = vmatprep.subr.mxu0 0.0
        %1756 = vmatpush1.msra.mxu0 0.0
        %1757 = vmatprep.subr.mxu0 0.0
        %1758 = vmatpush1.msra.mxu0 0.0
        %1759 = vmatprep.subr.mxu0 0.0
        %1760 = vmatpush1.msra.mxu0 0.0
        %1761 = vmatprep.subr.mxu0 0.0
        %1762 = vmatpush1.msra.mxu0 0.0
        %1763 = vmatprep.subr.mxu0 0.0
        %1764 = vmatpush1.msra.mxu0 0.0
        %1765 = vmatprep.subr.mxu0 0.0
        %1766 = vmatpush1.msra.mxu0 0.0
        %1767 = vmatprep.subr.mxu0 0.0
        %1768 = vmatpush1.msra.mxu0 0.0
        %1769 = vmatprep.subr.mxu0 0.0
        %1770 = vmatpush1.msra.mxu0 0.0
        %1771 = vmatprep.subr.mxu0 0.0
        %1772 = vmatpush1.msra.mxu0 0.0
        %1773 = vmatprep.subr.mxu0 0.0
        %1774 = vmatpush1.msra.mxu0 0.0
        %1775 = vmatprep.subr.mxu0 0.0
        %1776 = vmatpush1.msra.mxu0 0.0
        %1777 = vmatprep.subr.mxu0 0.0
        %1778 = vmatpush1.msra.mxu0 0.0
        %1779 = vmatprep.subr.mxu0 0.0
        %1780 = vmatpush1.msra.mxu0 0.0
        %1781 = vmatprep.subr.mxu0 0.0
        %1782 = vmatpush1.msra.mxu0 0.0
        %1783 = vmatprep.subr.mxu0 0.0
        %1784 = vmatpush1.msra.mxu0 0.0
        %1785 = vmatprep.subr.mxu0 0.0
        %1786 = vmatpush1.msra.mxu0 0.0
        %1787 = vmatprep.mubr.f32.mxu0 0.0
        %1788 = vmatmul.mubr.f32.gmra.mrb[0].mxu0 %v733
        %v1789 = vpop.f32.mrb[0].mxu0
        %v1790 = vadd.f32 %v1721, %v1789
        %v1791 = vpop.f32.mrb[0].mxu0
        %1792 = vmatprep.mubr.f32.mxu0 0.0
        %1793 = vmatmul.mubr.f32.gmra.mrb[0].mxu0 %v736
        %v1794 = vpop.f32.mrb[0].mxu0
        %v1795 = vadd.f32 %v1721, %v1794
        %v1796 = vpop.f32.mrb[0].mxu0
        %1797 = vmatprep.mubr.f32.mxu0 0.0
        %1798 = vmatmul.mubr.f32.gmra.mrb[0].mxu0 %v739
        %v1799 = vpop.f32.mrb[0].mxu0
        %v1800 = vadd.f32 %v1721, %v1799
        %v1801 = vpop.f32.mrb[0].mxu0
        %1802 = vmatprep.mubr.f32.mxu0 0.0
        %1803 = vmatmul.mubr.f32.gmra.mrb[0].mxu0 %v742
        %v1804 = vpop.f32.mrb[0].mxu0
        %v1805 = vadd.f32 %v1721, %v1804
        %v1806 = vpop.f32.mrb[0].mxu0
        %1807 = vmatprep.mubr.f32.mxu0 0.0
        %1808 = vmatmul.mubr.f32.gmra.mrb[0].mxu0 %v745
        %v1809 = vpop.f32.mrb[0].mxu0
        %v1810 = vadd.f32 %v1721, %v1809
        %v1811 = vpop.f32.mrb[0].mxu0
        %1812 = vmatprep.mubr.f32.mxu0 0.0
        %1813 = vmatmul.mubr.f32.gmra.mrb[0].mxu0 %v748
        %v1814 = vpop.f32.mrb[0].mxu0
        %v1815 = vadd.f32 %v1721, %v1814
        %v1816 = vpop.f32.mrb[0].mxu0
        %1817 = vmatprep.mubr.f32.mxu0 0.0
        %1818 = vmatmul.mubr.f32.gmra.mrb[0].mxu0 %v751
        %v1819 = vpop.f32.mrb[0].mxu0
        %v1820 = vadd.f32 %v1721, %v1819
        %v1821 = vpop.f32.mrb[0].mxu0
        %1822 = vmatprep.mubr.f32.mxu0 0.0
        %1823 = vmatmul.mubr.f32.gmra.mrb[0].mxu0 %v754
        %v1824 = vpop.f32.mrb[0].mxu0
        %v1825 = vadd.f32 %v1721, %v1824
        %v1826 = vpop.f32.mrb[0].mxu0
        %1827 = vdwg.mxu0
        %v1829 = vsel %vm1093, %v1554, 0
        %v1832 = vsel %vm1093, %v1559, 0
        %v1835 = vsel %vm1093, %v1564, 0
        %v1838 = vsel %vm1093, %v1569, 0
        %v1841 = vsel %vm1093, %v1574, 0
        %v1844 = vsel %vm1093, %v1579, 0
        %v1847 = vsel %vm1093, %v1584, 0
        %v1850 = vsel %vm1093, %v1589, 0
        %v1853 = vsel %vm1093, %v1672, 0
        %v1856 = vsel %vm1093, %v1677, 0
        %v1859 = vsel %vm1093, %v1682, 0
        %v1862 = vsel %vm1093, %v1687, 0
        %v1865 = vsel %vm1093, %v1692, 0
        %v1868 = vsel %vm1093, %v1697, 0
        %v1871 = vsel %vm1093, %v1702, 0
        %v1874 = vsel %vm1093, %v1707, 0
        %1876 = vmatprep.subr.mxu0 0.0
        %1877 = vmatpush1.xpose.msra.mxu0 %v1853
        %1878 = vmatprep.subr.mxu0 0.0
        %1879 = vmatpush1.xpose.msra.mxu0 %v1856
        %1880 = vmatprep.subr.mxu0 0.0
        %1881 = vmatpush1.xpose.msra.mxu0 %v1859
        %1882 = vmatprep.subr.mxu0 0.0
        %1883 = vmatpush1.xpose.msra.mxu0 %v1862
        %1884 = vmatprep.subr.mxu0 0.0
        %1885 = vmatpush1.xpose.msra.mxu0 %v1865
        %1886 = vmatprep.subr.mxu0 0.0
        %1887 = vmatpush1.xpose.msra.mxu0 %v1868
        %1888 = vmatprep.subr.mxu0 0.0
        %1889 = vmatpush1.xpose.msra.mxu0 %v1871
        %1890 = vmatprep.subr.mxu0 0.0
        %1891 = vmatpush1.xpose.msra.mxu0 %v1874
        %1892 = vmatprep.subr.mxu0 0.0
        %1893 = vmatpush1.xpose.msra.mxu0 0.0
        %1894 = vmatprep.subr.mxu0 0.0
        %1895 = vmatpush1.xpose.msra.mxu0 0.0
        %1896 = vmatprep.subr.mxu0 0.0
        %1897 = vmatpush1.xpose.msra.mxu0 0.0
        %1898 = vmatprep.subr.mxu0 0.0
        %1899 = vmatpush1.xpose.msra.mxu0 0.0
        %1900 = vmatprep.subr.mxu0 0.0
        %1901 = vmatpush1.xpose.msra.mxu0 0.0
        %1902 = vmatprep.subr.mxu0 0.0
        %1903 = vmatpush1.xpose.msra.mxu0 0.0
        %1904 = vmatprep.subr.mxu0 0.0
        %1905 = vmatpush1.xpose.msra.mxu0 0.0
        %1906 = vmatprep.subr.mxu0 0.0
        %1907 = vmatpush1.xpose.msra.mxu0 0.0
        %1908 = vmatprep.subr.mxu0 0.0
        %1909 = vmatpush1.xpose.msra.mxu0 0.0
        %1910 = vmatprep.subr.mxu0 0.0
        %1911 = vmatpush1.xpose.msra.mxu0 0.0
        %1912 = vmatprep.subr.mxu0 0.0
        %1913 = vmatpush1.xpose.msra.mxu0 0.0
        %1914 = vmatprep.subr.mxu0 0.0
        %1915 = vmatpush1.xpose.msra.mxu0 0.0
        %1916 = vmatprep.subr.mxu0 0.0
        %1917 = vmatpush1.xpose.msra.mxu0 0.0
        %1918 = vmatprep.subr.mxu0 0.0
        %1919 = vmatpush1.xpose.msra.mxu0 0.0
        %1920 = vmatprep.subr.mxu0 0.0
        %1921 = vmatpush1.xpose.msra.mxu0 0.0
        %1922 = vmatprep.subr.mxu0 0.0
        %1923 = vmatpush1.xpose.msra.mxu0 0.0
        %1924 = vmatprep.subr.mxu0 0.0
        %1925 = vmatpush1.xpose.msra.mxu0 0.0
        %1926 = vmatprep.subr.mxu0 0.0
        %1927 = vmatpush1.xpose.msra.mxu0 0.0
        %1928 = vmatprep.subr.mxu0 0.0
        %1929 = vmatpush1.xpose.msra.mxu0 0.0
        %1930 = vmatprep.subr.mxu0 0.0
        %1931 = vmatpush1.xpose.msra.mxu0 0.0
        %1932 = vmatprep.subr.mxu0 0.0
        %1933 = vmatpush1.xpose.msra.mxu0 0.0
        %1934 = vmatprep.subr.mxu0 0.0
        %1935 = vmatpush1.xpose.msra.mxu0 0.0
        %1936 = vmatprep.subr.mxu0 0.0
        %1937 = vmatpush1.xpose.msra.mxu0 0.0
        %1938 = vmatprep.subr.mxu0 0.0
        %1939 = vmatpush1.xpose.msra.mxu0 0.0
        %1940 = vmatprep.mubr.f32.mxu0 0.0
        %1941 = vmatmul.mubr.f32.gmra.mrb[0].mxu0 %v1829
        %v1942 = vpop.f32.mrb[0].mxu0
        %v1943 = vadd.f32 0.0, %v1942
        %v1944 = vpop.f32.mrb[0].mxu0
        %1945 = vmatprep.mubr.f32.mxu0 0.0
        %1946 = vmatmul.mubr.f32.gmra.mrb[0].mxu0 %v1832
        %v1947 = vpop.f32.mrb[0].mxu0
        %v1948 = vadd.f32 0.0, %v1947
        %v1949 = vpop.f32.mrb[0].mxu0
        %1950 = vmatprep.mubr.f32.mxu0 0.0
        %1951 = vmatmul.mubr.f32.gmra.mrb[0].mxu0 %v1835
        %v1952 = vpop.f32.mrb[0].mxu0
        %v1953 = vadd.f32 0.0, %v1952
        %v1954 = vpop.f32.mrb[0].mxu0
        %1955 = vmatprep.mubr.f32.mxu0 0.0
        %1956 = vmatmul.mubr.f32.gmra.mrb[0].mxu0 %v1838
        %v1957 = vpop.f32.mrb[0].mxu0
        %v1958 = vadd.f32 0.0, %v1957
        %v1959 = vpop.f32.mrb[0].mxu0
        %1960 = vmatprep.mubr.f32.mxu0 0.0
        %1961 = vmatmul.mubr.f32.gmra.mrb[0].mxu0 %v1841
        %v1962 = vpop.f32.mrb[0].mxu0
        %v1963 = vadd.f32 0.0, %v1962
        %v1964 = vpop.f32.mrb[0].mxu0
        %1965 = vmatprep.mubr.f32.mxu0 0.0
        %1966 = vmatmul.mubr.f32.gmra.mrb[0].mxu0 %v1844
        %v1967 = vpop.f32.mrb[0].mxu0
        %v1968 = vadd.f32 0.0, %v1967
        %v1969 = vpop.f32.mrb[0].mxu0
        %1970 = vmatprep.mubr.f32.mxu0 0.0
        %1971 = vmatmul.mubr.f32.gmra.mrb[0].mxu0 %v1847
        %v1972 = vpop.f32.mrb[0].mxu0
        %v1973 = vadd.f32 0.0, %v1972
        %v1974 = vpop.f32.mrb[0].mxu0
        %1975 = vmatprep.mubr.f32.mxu0 0.0
        %1976 = vmatmul.mubr.f32.gmra.mrb[0].mxu0 %v1850
        %v1977 = vpop.f32.mrb[0].mxu0
        %v1978 = vadd.f32 0.0, %v1977
        %v1979 = vpop.f32.mrb[0].mxu0
        %1980 = vdwg.mxu0
        %v1981 = vmul.f32 %v1943, 0.35355338
        %v1982 = vmul.f32 %v1948, 0.35355338
        %v1983 = vmul.f32 %v1953, 0.35355338
        %v1984 = vmul.f32 %v1958, 0.35355338
        %v1985 = vmul.f32 %v1963, 0.35355338
        %v1986 = vmul.f32 %v1968, 0.35355338
        %v1987 = vmul.f32 %v1973, 0.35355338
        %v1988 = vmul.f32 %v1978, 0.35355338
        %v1989 = vsel %vm1255, %v1981, -inf
        %1990 = vmax.xlane.f32.xlu0 %v1989
        %v1991 = vpop.xlane.xlu0 %1990
        %v1992 = vsel %vm1255, %v1982, -inf
        %1993 = vmax.xlane.f32.xlu0 %v1992
        %v1994 = vpop.xlane.xlu0 %1993
        %v1995 = vsel %vm1255, %v1983, -inf
        %1996 = vmax.xlane.f32.xlu0 %v1995
        %v1997 = vpop.xlane.xlu0 %1996
        %v1998 = vsel %vm1255, %v1984, -inf
        %1999 = vmax.xlane.f32.xlu0 %v1998
        %v2000 = vpop.xlane.xlu0 %1999
        %v2001 = vsel %vm1255, %v1985, -inf
        %2002 = vmax.xlane.f32.xlu0 %v2001
        %v2003 = vpop.xlane.xlu0 %2002
        %v2004 = vsel %vm1255, %v1986, -inf
        %2005 = vmax.xlane.f32.xlu0 %v2004
        %v2006 = vpop.xlane.xlu0 %2005
        %v2007 = vsel %vm1255, %v1987, -inf
        %2008 = vmax.xlane.f32.xlu0 %v2007
        %v2009 = vpop.xlane.xlu0 %2008
        %v2010 = vsel %vm1255, %v1988, -inf
        %2011 = vmax.xlane.f32.xlu0 %v2010
        %v2012 = vpop.xlane.xlu0 %2011
        %v2013 = vsub.f32 %v1981, %v1991
        %v2014 = vsub.f32 %v1982, %v1994
        %v2015 = vsub.f32 %v1983, %v1997
        %v2016 = vsub.f32 %v1984, %v2000
        %v2017 = vsub.f32 %v1985, %v2003
        %v2018 = vsub.f32 %v1986, %v2006
        %v2019 = vsub.f32 %v1987, %v2009
        %v2020 = vsub.f32 %v1988, %v2012
        %v2021 = vmul.f32 %v2013, 1.442695
        %v2022 = vpow.pop %v2021
        %v2023 = vmul.f32 %v2014, 1.442695
        %v2024 = vpow.pop %v2023
        %v2025 = vmul.f32 %v2015, 1.442695
        %v2026 = vpow.pop %v2025
        %v2027 = vmul.f32 %v2016, 1.442695
        %v2028 = vpow.pop %v2027
        %v2029 = vmul.f32 %v2017, 1.442695
        %v2030 = vpow.pop %v2029
        %v2031 = vmul.f32 %v2018, 1.442695
        %v2032 = vpow.pop %v2031
        %v2033 = vmul.f32 %v2019, 1.442695
        %v2034 = vpow.pop %v2033
        %v2035 = vmul.f32 %v2020, 1.442695
        %v2036 = vpow.pop %v2035
        %v2037 = vsel %vm1255, %v2022, 0.0
        %2038 = vadd.xlane.f32.xlu0 %v2037
        %v2039 = vpop.xlane.xlu0 %2038
        %v2040 = vsel %vm1255, %v2024, 0.0
        %2041 = vadd.xlane.f32.xlu0 %v2040
        %v2042 = vpop.xlane.xlu0 %2041
        %v2043 = vsel %vm1255, %v2026, 0.0
        %2044 = vadd.xlane.f32.xlu0 %v2043
        %v2045 = vpop.xlane.xlu0 %2044
        %v2046 = vsel %vm1255, %v2028, 0.0
        %2047 = vadd.xlane.f32.xlu0 %v2046
        %v2048 = vpop.xlane.xlu0 %2047
        %v2049 = vsel %vm1255, %v2030, 0.0
        %2050 = vadd.xlane.f32.xlu0 %v2049
        %v2051 = vpop.xlane.xlu0 %2050
        %v2052 = vsel %vm1255, %v2032, 0.0
        %2053 = vadd.xlane.f32.xlu0 %v2052
        %v2054 = vpop.xlane.xlu0 %2053
        %v2055 = vsel %vm1255, %v2034, 0.0
        %2056 = vadd.xlane.f32.xlu0 %v2055
        %v2057 = vpop.xlane.xlu0 %2056
        %v2058 = vsel %vm1255, %v2036, 0.0
        %2059 = vadd.xlane.f32.xlu0 %v2058
        %v2060 = vpop.xlane.xlu0 %2059
        %v2061 = vrcp.pop %v2039
        %v2062 = vrcp.pop %v2042
        %v2063 = vrcp.pop %v2045
        %v2064 = vrcp.pop %v2048
        %v2065 = vrcp.pop %v2051
        %v2066 = vrcp.pop %v2054
        %v2067 = vrcp.pop %v2057
        %v2068 = vrcp.pop %v2060
        %v2069 = vmul.f32 %v2022, %v2061
        %v2070 = vmul.f32 %v2024, %v2062
        %v2071 = vmul.f32 %v2026, %v2063
        %v2072 = vmul.f32 %v2028, %v2064
        %v2073 = vmul.f32 %v2030, %v2065
        %v2074 = vmul.f32 %v2032, %v2066
        %v2075 = vmul.f32 %v2034, %v2067
        %v2076 = vmul.f32 %v2036, %v2068
        %v2078 = vsel %vm1255, %v2069, 0
        %v2081 = vsel %vm1255, %v2070, 0
        %v2084 = vsel %vm1255, %v2071, 0
        %v2087 = vsel %vm1255, %v2072, 0
        %v2090 = vsel %vm1255, %v2073, 0
        %v2093 = vsel %vm1255, %v2074, 0
        %v2096 = vsel %vm1255, %v2075, 0
        %v2099 = vsel %vm1255, %v2076, 0
        %2101 = vmatprep.subr.mxu0 0.0
        %2102 = vmatpush1.msra.mxu0 %v1790
        %2103 = vmatprep.subr.mxu0 0.0
        %2104 = vmatpush1.msra.mxu0 %v1795
        %2105 = vmatprep.subr.mxu0 0.0
        %2106 = vmatpush1.msra.mxu0 %v1800
        %2107 = vmatprep.subr.mxu0 0.0
        %2108 = vmatpush1.msra.mxu0 %v1805
        %2109 = vmatprep.subr.mxu0 0.0
        %2110 = vmatpush1.msra.mxu0 %v1810
        %2111 = vmatprep.subr.mxu0 0.0
        %2112 = vmatpush1.msra.mxu0 %v1815
        %2113 = vmatprep.subr.mxu0 0.0
        %2114 = vmatpush1.msra.mxu0 %v1820
        %2115 = vmatprep.subr.mxu0 0.0
        %2116 = vmatpush1.msra.mxu0 %v1825
        %2117 = vmatprep.subr.mxu0 0.0
        %2118 = vmatpush1.msra.mxu0 0.0
        %2119 = vmatprep.subr.mxu0 0.0
        %2120 = vmatpush1.msra.mxu0 0.0
        %2121 = vmatprep.subr.mxu0 0.0
        %2122 = vmatpush1.msra.mxu0 0.0
        %2123 = vmatprep.subr.mxu0 0.0
        %2124 = vmatpush1.msra.mxu0 0.0
        %2125 = vmatprep.subr.mxu0 0.0
        %2126 = vmatpush1.msra.mxu0 0.0
        %2127 = vmatprep.subr.mxu0 0.0
        %2128 = vmatpush1.msra.mxu0 0.0
        %2129 = vmatprep.subr.mxu0 0.0
        %2130 = vmatpush1.msra.mxu0 0.0
        %2131 = vmatprep.subr.mxu0 0.0
        %2132 = vmatpush1.msra.mxu0 0.0
        %2133 = vmatprep.subr.mxu0 0.0
        %2134 = vmatpush1.msra.mxu0 0.0
        %2135 = vmatprep.subr.mxu0 0.0
        %2136 = vmatpush1.msra.mxu0 0.0
        %2137 = vmatprep.subr.mxu0 0.0
        %2138 = vmatpush1.msra.mxu0 0.0
        %2139 = vmatprep.subr.mxu0 0.0
        %2140 = vmatpush1.msra.mxu0 0.0
        %2141 = vmatprep.subr.mxu0 0.0
        %2142 = vmatpush1.msra.mxu0 0.0
        %2143 = vmatprep.subr.mxu0 0.0
        %2144 = vmatpush1.msra.mxu0 0.0
        %2145 = vmatprep.subr.mxu0 0.0
        %2146 = vmatpush1.msra.mxu0 0.0
        %2147 = vmatprep.subr.mxu0 0.0
        %2148 = vmatpush1.msra.mxu0 0.0
        %2149 = vmatprep.subr.mxu0 0.0
        %2150 = vmatpush1.msra.mxu0 0.0
        %2151 = vmatprep.subr.mxu0 0.0
        %2152 = vmatpush1.msra.mxu0 0.0
        %2153 = vmatprep.subr.mxu0 0.0
        %2154 = vmatpush1.msra.mxu0 0.0
        %2155 = vmatprep.subr.mxu0 0.0
        %2156 = vmatpush1.msra.mxu0 0.0
        %2157 = vmatprep.subr.mxu0 0.0
        %2158 = vmatpush1.msra.mxu0 0.0
        %2159 = vmatprep.subr.mxu0 0.0
        %2160 = vmatpush1.msra.mxu0 0.0
        %2161 = vmatprep.subr.mxu0 0.0
        %2162 = vmatpush1.msra.mxu0 0.0
        %2163 = vmatprep.subr.mxu0 0.0
        %2164 = vmatpush1.msra.mxu0 0.0
        %2165 = vmatprep.mubr.f32.mxu0 0.0
        %2166 = vmatmul.mubr.f32.gmra.mrb[0].mxu0 %v2078
        %v2167 = vpop.f32.mrb[0].mxu0
        %v2168 = vadd.f32 0.0, %v2167
        %v2169 = vpop.f32.mrb[0].mxu0
        %2170 = vmatprep.mubr.f32.mxu0 0.0
        %2171 = vmatmul.mubr.f32.gmra.mrb[0].mxu0 %v2081
        %v2172 = vpop.f32.mrb[0].mxu0
        %v2173 = vadd.f32 0.0, %v2172
        %v2174 = vpop.f32.mrb[0].mxu0
        %2175 = vmatprep.mubr.f32.mxu0 0.0
        %2176 = vmatmul.mubr.f32.gmra.mrb[0].mxu0 %v2084
        %v2177 = vpop.f32.mrb[0].mxu0
        %v2178 = vadd.f32 0.0, %v2177
        %v2179 = vpop.f32.mrb[0].mxu0
        %2180 = vmatprep.mubr.f32.mxu0 0.0
        %2181 = vmatmul.mubr.f32.gmra.mrb[0].mxu0 %v2087
        %v2182 = vpop.f32.mrb[0].mxu0
        %v2183 = vadd.f32 0.0, %v2182
        %v2184 = vpop.f32.mrb[0].mxu0
        %2185 = vmatprep.mubr.f32.mxu0 0.0
        %2186 = vmatmul.mubr.f32.gmra.mrb[0].mxu0 %v2090
        %v2187 = vpop.f32.mrb[0].mxu0
        %v2188 = vadd.f32 0.0, %v2187
        %v2189 = vpop.f32.mrb[0].mxu0
        %2190 = vmatprep.mubr.f32.mxu0 0.0
        %2191 = vmatmul.mubr.f32.gmra.mrb[0].mxu0 %v2093
        %v2192 = vpop.f32.mrb[0].mxu0
        %v2193 = vadd.f32 0.0, %v2192
        %v2194 = vpop.f32.mrb[0].mxu0
        %2195 = vmatprep.mubr.f32.mxu0 0.0
        %2196 = vmatmul.mubr.f32.gmra.mrb[0].mxu0 %v2096
        %v2197 = vpop.f32.mrb[0].mxu0
        %v2198 = vadd.f32 0.0, %v2197
        %v2199 = vpop.f32.mrb[0].mxu0
        %2200 = vmatprep.mubr.f32.mxu0 0.0
        %2201 = vmatmul.mubr.f32.gmra.mrb[0].mxu0 %v2099
        %v2202 = vpop.f32.mrb[0].mxu0
        %v2203 = vadd.f32 0.0, %v2202
        %v2204 = vpop.f32.mrb[0].mxu0
        %2205 = vdwg.mxu0
        %s2206 = scalar_lea.vmem %s10, 8
        %v2207 = vld [vmem:[%s2206] sm:$0xff]
        %v2209 = vsel %vm1093, %v2168, 0
        %v2212 = vsel %vm1093, %v2173, 0
        %v2215 = vsel %vm1093, %v2178, 0
        %v2218 = vsel %vm1093, %v2183, 0
        %v2221 = vsel %vm1093, %v2188, 0
        %v2224 = vsel %vm1093, %v2193, 0
        %v2227 = vsel %vm1093, %v2198, 0
        %v2230 = vsel %vm1093, %v2203, 0
        %2232 = vmatprep.subr.mxu0 0.0
        %2233 = vmatpush1.msra.mxu0 %v2207
        %2234 = vmatprep.subr.mxu0 0.0
        %2235 = vmatpush1.msra.mxu0 0.0
        %2236 = vmatprep.subr.mxu0 0.0
        %2237 = vmatpush1.msra.mxu0 0.0
        %2238 = vmatprep.subr.mxu0 0.0
        %2239 = vmatpush1.msra.mxu0 0.0
        %2240 = vmatprep.subr.mxu0 0.0
        %2241 = vmatpush1.msra.mxu0 0.0
        %2242 = vmatprep.subr.mxu0 0.0
        %2243 = vmatpush1.msra.mxu0 0.0
        %2244 = vmatprep.subr.mxu0 0.0
        %2245 = vmatpush1.msra.mxu0 0.0
        %2246 = vmatprep.subr.mxu0 0.0
        %2247 = vmatpush1.msra.mxu0 0.0
        %2248 = vmatprep.subr.mxu0 0.0
        %2249 = vmatpush1.msra.mxu0 0.0
        %2250 = vmatprep.subr.mxu0 0.0
        %2251 = vmatpush1.msra.mxu0 0.0
        %2252 = vmatprep.subr.mxu0 0.0
        %2253 = vmatpush1.msra.mxu0 0.0
        %2254 = vmatprep.subr.mxu0 0.0
        %2255 = vmatpush1.msra.mxu0 0.0
        %2256 = vmatprep.subr.mxu0 0.0
        %2257 = vmatpush1.msra.mxu0 0.0
        %2258 = vmatprep.subr.mxu0 0.0
        %2259 = vmatpush1.msra.mxu0 0.0
        %2260 = vmatprep.subr.mxu0 0.0
        %2261 = vmatpush1.msra.mxu0 0.0
        %2262 = vmatprep.subr.mxu0 0.0
        %2263 = vmatpush1.msra.mxu0 0.0
        %2264 = vmatprep.subr.mxu0 0.0
        %2265 = vmatpush1.msra.mxu0 0.0
        %2266 = vmatprep.subr.mxu0 0.0
        %2267 = vmatpush1.msra.mxu0 0.0
        %2268 = vmatprep.subr.mxu0 0.0
        %2269 = vmatpush1.msra.mxu0 0.0
        %2270 = vmatprep.subr.mxu0 0.0
        %2271 = vmatpush1.msra.mxu0 0.0
        %2272 = vmatprep.subr.mxu0 0.0
        %2273 = vmatpush1.msra.mxu0 0.0
        %2274 = vmatprep.subr.mxu0 0.0
        %2275 = vmatpush1.msra.mxu0 0.0
        %2276 = vmatprep.subr.mxu0 0.0
        %2277 = vmatpush1.msra.mxu0 0.0
        %2278 = vmatprep.subr.mxu0 0.0
        %2279 = vmatpush1.msra.mxu0 0.0
        %2280 = vmatprep.subr.mxu0 0.0
        %2281 = vmatpush1.msra.mxu0 0.0
        %2282 = vmatprep.subr.mxu0 0.0
        %2283 = vmatpush1.msra.mxu0 0.0
        %2284 = vmatprep.subr.mxu0 0.0
        %2285 = vmatpush1.msra.mxu0 0.0
        %2286 = vmatprep.subr.mxu0 0.0
        %2287 = vmatpush1.msra.mxu0 0.0
        %2288 = vmatprep.subr.mxu0 0.0
        %2289 = vmatpush1.msra.mxu0 0.0
        %2290 = vmatprep.subr.mxu0 0.0
        %2291 = vmatpush1.msra.mxu0 0.0
        %2292 = vmatprep.subr.mxu0 0.0
        %2293 = vmatpush1.msra.mxu0 0.0
        %2294 = vmatprep.subr.mxu0 0.0
        %2295 = vmatpush1.msra.mxu0 0.0
        %2296 = vmatprep.mubr.f32.mxu0 0.0
        %2297 = vmatmul.mubr.f32.gmra.mrb[0].mxu0 %v2209
        %v2298 = vpop.f32.mrb[0].mxu0
        %v2299 = vadd.f32 0.0, %v2298
        %v2300 = vpop.f32.mrb[0].mxu0
        %2301 = vmatprep.mubr.f32.mxu0 0.0
        %2302 = vmatmul.mubr.f32.gmra.mrb[0].mxu0 %v2212
        %v2303 = vpop.f32.mrb[0].mxu0
        %v2304 = vadd.f32 0.0, %v2303
        %v2305 = vpop.f32.mrb[0].mxu0
        %2306 = vmatprep.mubr.f32.mxu0 0.0
        %2307 = vmatmul.mubr.f32.gmra.mrb[0].mxu0 %v2215
        %v2308 = vpop.f32.mrb[0].mxu0
        %v2309 = vadd.f32 0.0, %v2308
        %v2310 = vpop.f32.mrb[0].mxu0
        %2311 = vmatprep.mubr.f32.mxu0 0.0
        %2312 = vmatmul.mubr.f32.gmra.mrb[0].mxu0 %v2218
        %v2313 = vpop.f32.mrb[0].mxu0
        %v2314 = vadd.f32 0.0, %v2313
        %v2315 = vpop.f32.mrb[0].mxu0
        %2316 = vmatprep.mubr.f32.mxu0 0.0
        %2317 = vmatmul.mubr.f32.gmra.mrb[0].mxu0 %v2221
        %v2318 = vpop.f32.mrb[0].mxu0
        %v2319 = vadd.f32 0.0, %v2318
        %v2320 = vpop.f32.mrb[0].mxu0
        %2321 = vmatprep.mubr.f32.mxu0 0.0
        %2322 = vmatmul.mubr.f32.gmra.mrb[0].mxu0 %v2224
        %v2323 = vpop.f32.mrb[0].mxu0
        %v2324 = vadd.f32 0.0, %v2323
        %v2325 = vpop.f32.mrb[0].mxu0
        %2326 = vmatprep.mubr.f32.mxu0 0.0
        %2327 = vmatmul.mubr.f32.gmra.mrb[0].mxu0 %v2227
        %v2328 = vpop.f32.mrb[0].mxu0
        %v2329 = vadd.f32 0.0, %v2328
        %v2330 = vpop.f32.mrb[0].mxu0
        %2331 = vmatprep.mubr.f32.mxu0 0.0
        %2332 = vmatmul.mubr.f32.gmra.mrb[0].mxu0 %v2230
        %v2333 = vpop.f32.mrb[0].mxu0
        %v2334 = vadd.f32 0.0, %v2333
        %v2335 = vpop.f32.mrb[0].mxu0
        %2336 = vdwg.mxu0
        %v2338 = vsel %vm1093, %v1435, 0
        %v2341 = vsel %vm1093, %v1440, 0
        %v2344 = vsel %vm1093, %v1445, 0
        %v2347 = vsel %vm1093, %v1450, 0
        %v2350 = vsel %vm1093, %v1455, 0
        %v2353 = vsel %vm1093, %v1460, 0
        %v2356 = vsel %vm1093, %v1465, 0
        %v2359 = vsel %vm1093, %v1470, 0
        %2361 = vmatprep.subr.mxu0 0.0
        %2362 = vmatpush1.msra.mxu0 %v1473
        %2363 = vmatprep.subr.mxu0 0.0
        %2364 = vmatpush1.msra.mxu0 0.0
        %2365 = vmatprep.subr.mxu0 0.0
        %2366 = vmatpush1.msra.mxu0 0.0
        %2367 = vmatprep.subr.mxu0 0.0
        %2368 = vmatpush1.msra.mxu0 0.0
        %2369 = vmatprep.subr.mxu0 0.0
        %2370 = vmatpush1.msra.mxu0 0.0
        %2371 = vmatprep.subr.mxu0 0.0
        %2372 = vmatpush1.msra.mxu0 0.0
        %2373 = vmatprep.subr.mxu0 0.0
        %2374 = vmatpush1.msra.mxu0 0.0
        %2375 = vmatprep.subr.mxu0 0.0
        %2376 = vmatpush1.msra.mxu0 0.0
        %2377 = vmatprep.subr.mxu0 0.0
        %2378 = vmatpush1.msra.mxu0 0.0
        %2379 = vmatprep.subr.mxu0 0.0
        %2380 = vmatpush1.msra.mxu0 0.0
        %2381 = vmatprep.subr.mxu0 0.0
        %2382 = vmatpush1.msra.mxu0 0.0
        %2383 = vmatprep.subr.mxu0 0.0
        %2384 = vmatpush1.msra.mxu0 0.0
        %2385 = vmatprep.subr.mxu0 0.0
        %2386 = vmatpush1.msra.mxu0 0.0
        %2387 = vmatprep.subr.mxu0 0.0
        %2388 = vmatpush1.msra.mxu0 0.0
        %2389 = vmatprep.subr.mxu0 0.0
        %2390 = vmatpush1.msra.mxu0 0.0
        %2391 = vmatprep.subr.mxu0 0.0
        %2392 = vmatpush1.msra.mxu0 0.0
        %2393 = vmatprep.subr.mxu0 0.0
        %2394 = vmatpush1.msra.mxu0 0.0
        %2395 = vmatprep.subr.mxu0 0.0
        %2396 = vmatpush1.msra.mxu0 0.0
        %2397 = vmatprep.subr.mxu0 0.0
        %2398 = vmatpush1.msra.mxu0 0.0
        %2399 = vmatprep.subr.mxu0 0.0
        %2400 = vmatpush1.msra.mxu0 0.0
        %2401 = vmatprep.subr.mxu0 0.0
        %2402 = vmatpush1.msra.mxu0 0.0
        %2403 = vmatprep.subr.mxu0 0.0
        %2404 = vmatpush1.msra.mxu0 0.0
        %2405 = vmatprep.subr.mxu0 0.0
        %2406 = vmatpush1.msra.mxu0 0.0
        %2407 = vmatprep.subr.mxu0 0.0
        %2408 = vmatpush1.msra.mxu0 0.0
        %2409 = vmatprep.subr.mxu0 0.0
        %2410 = vmatpush1.msra.mxu0 0.0
        %2411 = vmatprep.subr.mxu0 0.0
        %2412 = vmatpush1.msra.mxu0 0.0
        %2413 = vmatprep.subr.mxu0 0.0
        %2414 = vmatpush1.msra.mxu0 0.0
        %2415 = vmatprep.subr.mxu0 0.0
        %2416 = vmatpush1.msra.mxu0 0.0
        %2417 = vmatprep.subr.mxu0 0.0
        %2418 = vmatpush1.msra.mxu0 0.0
        %2419 = vmatprep.subr.mxu0 0.0
        %2420 = vmatpush1.msra.mxu0 0.0
        %2421 = vmatprep.subr.mxu0 0.0
        %2422 = vmatpush1.msra.mxu0 0.0
        %2423 = vmatprep.subr.mxu0 0.0
        %2424 = vmatpush1.msra.mxu0 0.0
        %2425 = vmatprep.mubr.f32.mxu0 0.0
        %2426 = vmatmul.mubr.f32.gmra.mrb[0].mxu0 %v2338
        %v2427 = vpop.f32.mrb[0].mxu0
        %v2428 = vadd.f32 %v2299, %v2427
        %v2429 = vpop.f32.mrb[0].mxu0
        %2430 = vmatprep.mubr.f32.mxu0 0.0
        %2431 = vmatmul.mubr.f32.gmra.mrb[0].mxu0 %v2341
        %v2432 = vpop.f32.mrb[0].mxu0
        %v2433 = vadd.f32 %v2304, %v2432
        %v2434 = vpop.f32.mrb[0].mxu0
        %2435 = vmatprep.mubr.f32.mxu0 0.0
        %2436 = vmatmul.mubr.f32.gmra.mrb[0].mxu0 %v2344
        %v2437 = vpop.f32.mrb[0].mxu0
        %v2438 = vadd.f32 %v2309, %v2437
        %v2439 = vpop.f32.mrb[0].mxu0
        %2440 = vmatprep.mubr.f32.mxu0 0.0
        %2441 = vmatmul.mubr.f32.gmra.mrb[0].mxu0 %v2347
        %v2442 = vpop.f32.mrb[0].mxu0
        %v2443 = vadd.f32 %v2314, %v2442
        %v2444 = vpop.f32.mrb[0].mxu0
        %2445 = vmatprep.mubr.f32.mxu0 0.0
        %2446 = vmatmul.mubr.f32.gmra.mrb[0].mxu0 %v2350
        %v2447 = vpop.f32.mrb[0].mxu0
        %v2448 = vadd.f32 %v2319, %v2447
        %v2449 = vpop.f32.mrb[0].mxu0
        %2450 = vmatprep.mubr.f32.mxu0 0.0
        %2451 = vmatmul.mubr.f32.gmra.mrb[0].mxu0 %v2353
        %v2452 = vpop.f32.mrb[0].mxu0
        %v2453 = vadd.f32 %v2324, %v2452
        %v2454 = vpop.f32.mrb[0].mxu0
        %2455 = vmatprep.mubr.f32.mxu0 0.0
        %2456 = vmatmul.mubr.f32.gmra.mrb[0].mxu0 %v2356
        %v2457 = vpop.f32.mrb[0].mxu0
        %v2458 = vadd.f32 %v2329, %v2457
        %v2459 = vpop.f32.mrb[0].mxu0
        %2460 = vmatprep.mubr.f32.mxu0 0.0
        %2461 = vmatmul.mubr.f32.gmra.mrb[0].mxu0 %v2359
        %v2462 = vpop.f32.mrb[0].mxu0
        %v2463 = vadd.f32 %v2334, %v2462
        %v2464 = vpop.f32.mrb[0].mxu0
        %2465 = vdwg.mxu0
        %s2466 = scalar_lea.vmem %s4, 64
        %v2467 = vld [vmem:[%s2466] sm:$0xff]
        %v2468 = vld [vmem:[%s2466 + $0x8] sm:$0xff]
        %v2469 = vld [vmem:[%s2466 + $0x10] sm:$0xff]
        %v2470 = vld [vmem:[%s2466 + $0x18] sm:$0xff]
        %s2471 = scalar_lea.vmem %s5, 2
        %v2472 = vld [vmem:[%s2471] sm:$0x1]
        %v2474 = vlaneseq
        %v2475 = vshrl.u32 %v2474, 7
        %v2476 = vsub.s32 0, %v2475
        %v2477 = vrot.slane %v2472, %v2476
        %2479 = vmatprep.subr.mxu0 0.0
        %2480 = vmatpush1.msra.mxu0 %v2467
        %2481 = vmatprep.subr.mxu0 0.0
        %2482 = vmatpush1.msra.mxu0 %v2468
        %2483 = vmatprep.subr.mxu0 0.0
        %2484 = vmatpush1.msra.mxu0 %v2469
        %2485 = vmatprep.subr.mxu0 0.0
        %2486 = vmatpush1.msra.mxu0 %v2470
        %2487 = vmatprep.subr.mxu0 0.0
        %2488 = vmatpush1.msra.mxu0 0.0
        %2489 = vmatprep.subr.mxu0 0.0
        %2490 = vmatpush1.msra.mxu0 0.0
        %2491 = vmatprep.subr.mxu0 0.0
        %2492 = vmatpush1.msra.mxu0 0.0
        %2493 = vmatprep.subr.mxu0 0.0
        %2494 = vmatpush1.msra.mxu0 0.0
        %2495 = vmatprep.subr.mxu0 0.0
        %2496 = vmatpush1.msra.mxu0 0.0
        %2497 = vmatprep.subr.mxu0 0.0
        %2498 = vmatpush1.msra.mxu0 0.0
        %2499 = vmatprep.subr.mxu0 0.0
        %2500 = vmatpush1.msra.mxu0 0.0
        %2501 = vmatprep.subr.mxu0 0.0
        %2502 = vmatpush1.msra.mxu0 0.0
        %2503 = vmatprep.subr.mxu0 0.0
        %2504 = vmatpush1.msra.mxu0 0.0
        %2505 = vmatprep.subr.mxu0 0.0
        %2506 = vmatpush1.msra.mxu0 0.0
        %2507 = vmatprep.subr.mxu0 0.0
        %2508 = vmatpush1.msra.mxu0 0.0
        %2509 = vmatprep.subr.mxu0 0.0
        %2510 = vmatpush1.msra.mxu0 0.0
        %2511 = vmatprep.subr.mxu0 0.0
        %2512 = vmatpush1.msra.mxu0 0.0
        %2513 = vmatprep.subr.mxu0 0.0
        %2514 = vmatpush1.msra.mxu0 0.0
        %2515 = vmatprep.subr.mxu0 0.0
        %2516 = vmatpush1.msra.mxu0 0.0
        %2517 = vmatprep.subr.mxu0 0.0
        %2518 = vmatpush1.msra.mxu0 0.0
        %2519 = vmatprep.subr.mxu0 0.0
        %2520 = vmatpush1.msra.mxu0 0.0
        %2521 = vmatprep.subr.mxu0 0.0
        %2522 = vmatpush1.msra.mxu0 0.0
        %2523 = vmatprep.subr.mxu0 0.0
        %2524 = vmatpush1.msra.mxu0 0.0
        %2525 = vmatprep.subr.mxu0 0.0
        %2526 = vmatpush1.msra.mxu0 0.0
        %2527 = vmatprep.subr.mxu0 0.0
        %2528 = vmatpush1.msra.mxu0 0.0
        %2529 = vmatprep.subr.mxu0 0.0
        %2530 = vmatpush1.msra.mxu0 0.0
        %2531 = vmatprep.subr.mxu0 0.0
        %2532 = vmatpush1.msra.mxu0 0.0
        %2533 = vmatprep.subr.mxu0 0.0
        %2534 = vmatpush1.msra.mxu0 0.0
        %2535 = vmatprep.subr.mxu0 0.0
        %2536 = vmatpush1.msra.mxu0 0.0
        %2537 = vmatprep.subr.mxu0 0.0
        %2538 = vmatpush1.msra.mxu0 0.0
        %2539 = vmatprep.subr.mxu0 0.0
        %2540 = vmatpush1.msra.mxu0 0.0
        %2541 = vmatprep.subr.mxu0 0.0
        %2542 = vmatpush1.msra.mxu0 0.0
        %2543 = vmatprep.mubr.f32.mxu0 0.0
        %2544 = vmatmul.mubr.f32.gmra.mrb[0].mxu0 %v733
        %v2545 = vpop.f32.mrb[0].mxu0
        %v2546 = vadd.f32 %v2477, %v2545
        %v2547 = vpop.f32.mrb[0].mxu0
        %2548 = vmatprep.mubr.f32.mxu0 0.0
        %2549 = vmatmul.mubr.f32.gmra.mrb[0].mxu0 %v736
        %v2550 = vpop.f32.mrb[0].mxu0
        %v2551 = vadd.f32 %v2477, %v2550
        %v2552 = vpop.f32.mrb[0].mxu0
        %2553 = vmatprep.mubr.f32.mxu0 0.0
        %2554 = vmatmul.mubr.f32.gmra.mrb[0].mxu0 %v739
        %v2555 = vpop.f32.mrb[0].mxu0
        %v2556 = vadd.f32 %v2477, %v2555
        %v2557 = vpop.f32.mrb[0].mxu0
        %2558 = vmatprep.mubr.f32.mxu0 0.0
        %2559 = vmatmul.mubr.f32.gmra.mrb[0].mxu0 %v742
        %v2560 = vpop.f32.mrb[0].mxu0
        %v2561 = vadd.f32 %v2477, %v2560
        %v2562 = vpop.f32.mrb[0].mxu0
        %2563 = vmatprep.mubr.f32.mxu0 0.0
        %2564 = vmatmul.mubr.f32.gmra.mrb[0].mxu0 %v745
        %v2565 = vpop.f32.mrb[0].mxu0
        %v2566 = vadd.f32 %v2477, %v2565
        %v2567 = vpop.f32.mrb[0].mxu0
        %2568 = vmatprep.mubr.f32.mxu0 0.0
        %2569 = vmatmul.mubr.f32.gmra.mrb[0].mxu0 %v748
        %v2570 = vpop.f32.mrb[0].mxu0
        %v2571 = vadd.f32 %v2477, %v2570
        %v2572 = vpop.f32.mrb[0].mxu0
        %2573 = vmatprep.mubr.f32.mxu0 0.0
        %2574 = vmatmul.mubr.f32.gmra.mrb[0].mxu0 %v751
        %v2575 = vpop.f32.mrb[0].mxu0
        %v2576 = vadd.f32 %v2477, %v2575
        %v2577 = vpop.f32.mrb[0].mxu0
        %2578 = vmatprep.mubr.f32.mxu0 0.0
        %2579 = vmatmul.mubr.f32.gmra.mrb[0].mxu0 %v754
        %v2580 = vpop.f32.mrb[0].mxu0
        %v2581 = vadd.f32 %v2477, %v2580
        %v2582 = vpop.f32.mrb[0].mxu0
        %2583 = vdwg.mxu0
        %s2584 = scalar_lea.vmem %s6, 64
        %v2585 = vld [vmem:[%s2584] sm:$0xff]
        %v2586 = vld [vmem:[%s2584 + $0x8] sm:$0xff]
        %v2587 = vld [vmem:[%s2584 + $0x10] sm:$0xff]
        %v2588 = vld [vmem:[%s2584 + $0x18] sm:$0xff]
        %s2589 = scalar_lea.vmem %s7, 2
        %v2590 = vld [vmem:[%s2589] sm:$0x1]
        %v2592 = vlaneseq
        %v2593 = vshrl.u32 %v2592, 7
        %v2594 = vsub.s32 0, %v2593
        %v2595 = vrot.slane %v2590, %v2594
        %2597 = vmatprep.subr.mxu0 0.0
        %2598 = vmatpush1.msra.mxu0 %v2585
        %2599 = vmatprep.subr.mxu0 0.0
        %2600 = vmatpush1.msra.mxu0 %v2586
        %2601 = vmatprep.subr.mxu0 0.0
        %2602 = vmatpush1.msra.mxu0 %v2587
        %2603 = vmatprep.subr.mxu0 0.0
        %2604 = vmatpush1.msra.mxu0 %v2588
        %2605 = vmatprep.subr.mxu0 0.0
        %2606 = vmatpush1.msra.mxu0 0.0
        %2607 = vmatprep.subr.mxu0 0.0
        %2608 = vmatpush1.msra.mxu0 0.0
        %2609 = vmatprep.subr.mxu0 0.0
        %2610 = vmatpush1.msra.mxu0 0.0
        %2611 = vmatprep.subr.mxu0 0.0
        %2612 = vmatpush1.msra.mxu0 0.0
        %2613 = vmatprep.subr.mxu0 0.0
        %2614 = vmatpush1.msra.mxu0 0.0
        %2615 = vmatprep.subr.mxu0 0.0
        %2616 = vmatpush1.msra.mxu0 0.0
        %2617 = vmatprep.subr.mxu0 0.0
        %2618 = vmatpush1.msra.mxu0 0.0
        %2619 = vmatprep.subr.mxu0 0.0
        %2620 = vmatpush1.msra.mxu0 0.0
        %2621 = vmatprep.subr.mxu0 0.0
        %2622 = vmatpush1.msra.mxu0 0.0
        %2623 = vmatprep.subr.mxu0 0.0
        %2624 = vmatpush1.msra.mxu0 0.0
        %2625 = vmatprep.subr.mxu0 0.0
        %2626 = vmatpush1.msra.mxu0 0.0
        %2627 = vmatprep.subr.mxu0 0.0
        %2628 = vmatpush1.msra.mxu0 0.0
        %2629 = vmatprep.subr.mxu0 0.0
        %2630 = vmatpush1.msra.mxu0 0.0
        %2631 = vmatprep.subr.mxu0 0.0
        %2632 = vmatpush1.msra.mxu0 0.0
        %2633 = vmatprep.subr.mxu0 0.0
        %2634 = vmatpush1.msra.mxu0 0.0
        %2635 = vmatprep.subr.mxu0 0.0
        %2636 = vmatpush1.msra.mxu0 0.0
        %2637 = vmatprep.subr.mxu0 0.0
        %2638 = vmatpush1.msra.mxu0 0.0
        %2639 = vmatprep.subr.mxu0 0.0
        %2640 = vmatpush1.msra.mxu0 0.0
        %2641 = vmatprep.subr.mxu0 0.0
        %2642 = vmatpush1.msra.mxu0 0.0
        %2643 = vmatprep.subr.mxu0 0.0
        %2644 = vmatpush1.msra.mxu0 0.0
        %2645 = vmatprep.subr.mxu0 0.0
        %2646 = vmatpush1.msra.mxu0 0.0
        %2647 = vmatprep.subr.mxu0 0.0
        %2648 = vmatpush1.msra.mxu0 0.0
        %2649 = vmatprep.subr.mxu0 0.0
        %2650 = vmatpush1.msra.mxu0 0.0
        %2651 = vmatprep.subr.mxu0 0.0
        %2652 = vmatpush1.msra.mxu0 0.0
        %2653 = vmatprep.subr.mxu0 0.0
        %2654 = vmatpush1.msra.mxu0 0.0
        %2655 = vmatprep.subr.mxu0 0.0
        %2656 = vmatpush1.msra.mxu0 0.0
        %2657 = vmatprep.subr.mxu0 0.0
        %2658 = vmatpush1.msra.mxu0 0.0
        %2659 = vmatprep.subr.mxu0 0.0
        %2660 = vmatpush1.msra.mxu0 0.0
        %2661 = vmatprep.mubr.f32.mxu0 0.0
        %2662 = vmatmul.mubr.f32.gmra.mrb[0].mxu0 %v733
        %v2663 = vpop.f32.mrb[0].mxu0
        %v2664 = vadd.f32 %v2595, %v2663
        %v2665 = vpop.f32.mrb[0].mxu0
        %2666 = vmatprep.mubr.f32.mxu0 0.0
        %2667 = vmatmul.mubr.f32.gmra.mrb[0].mxu0 %v736
        %v2668 = vpop.f32.mrb[0].mxu0
        %v2669 = vadd.f32 %v2595, %v2668
        %v2670 = vpop.f32.mrb[0].mxu0
        %2671 = vmatprep.mubr.f32.mxu0 0.0
        %2672 = vmatmul.mubr.f32.gmra.mrb[0].mxu0 %v739
        %v2673 = vpop.f32.mrb[0].mxu0
        %v2674 = vadd.f32 %v2595, %v2673
        %v2675 = vpop.f32.mrb[0].mxu0
        %2676 = vmatprep.mubr.f32.mxu0 0.0
        %2677 = vmatmul.mubr.f32.gmra.mrb[0].mxu0 %v742
        %v2678 = vpop.f32.mrb[0].mxu0
        %v2679 = vadd.f32 %v2595, %v2678
        %v2680 = vpop.f32.mrb[0].mxu0
        %2681 = vmatprep.mubr.f32.mxu0 0.0
        %2682 = vmatmul.mubr.f32.gmra.mrb[0].mxu0 %v745
        %v2683 = vpop.f32.mrb[0].mxu0
        %v2684 = vadd.f32 %v2595, %v2683
        %v2685 = vpop.f32.mrb[0].mxu0
        %2686 = vmatprep.mubr.f32.mxu0 0.0
        %2687 = vmatmul.mubr.f32.gmra.mrb[0].mxu0 %v748
        %v2688 = vpop.f32.mrb[0].mxu0
        %v2689 = vadd.f32 %v2595, %v2688
        %v2690 = vpop.f32.mrb[0].mxu0
        %2691 = vmatprep.mubr.f32.mxu0 0.0
        %2692 = vmatmul.mubr.f32.gmra.mrb[0].mxu0 %v751
        %v2693 = vpop.f32.mrb[0].mxu0
        %v2694 = vadd.f32 %v2595, %v2693
        %v2695 = vpop.f32.mrb[0].mxu0
        %2696 = vmatprep.mubr.f32.mxu0 0.0
        %2697 = vmatmul.mubr.f32.gmra.mrb[0].mxu0 %v754
        %v2698 = vpop.f32.mrb[0].mxu0
        %v2699 = vadd.f32 %v2595, %v2698
        %v2700 = vpop.f32.mrb[0].mxu0
        %2701 = vdwg.mxu0
        %s2702 = scalar_lea.vmem %s8, 64
        %v2703 = vld [vmem:[%s2702] sm:$0xff]
        %v2704 = vld [vmem:[%s2702 + $0x8] sm:$0xff]
        %v2705 = vld [vmem:[%s2702 + $0x10] sm:$0xff]
        %v2706 = vld [vmem:[%s2702 + $0x18] sm:$0xff]
        %s2707 = scalar_lea.vmem %s9, 2
        %v2708 = vld [vmem:[%s2707] sm:$0x1]
        %v2710 = vlaneseq
        %v2711 = vshrl.u32 %v2710, 7
        %v2712 = vsub.s32 0, %v2711
        %v2713 = vrot.slane %v2708, %v2712
        %2715 = vmatprep.subr.mxu0 0.0
        %2716 = vmatpush1.msra.mxu0 %v2703
        %2717 = vmatprep.subr.mxu0 0.0
        %2718 = vmatpush1.msra.mxu0 %v2704
        %2719 = vmatprep.subr.mxu0 0.0
        %2720 = vmatpush1.msra.mxu0 %v2705
        %2721 = vmatprep.subr.mxu0 0.0
        %2722 = vmatpush1.msra.mxu0 %v2706
        %2723 = vmatprep.subr.mxu0 0.0
        %2724 = vmatpush1.msra.mxu0 0.0
        %2725 = vmatprep.subr.mxu0 0.0
        %2726 = vmatpush1.msra.mxu0 0.0
        %2727 = vmatprep.subr.mxu0 0.0
        %2728 = vmatpush1.msra.mxu0 0.0
        %2729 = vmatprep.subr.mxu0 0.0
        %2730 = vmatpush1.msra.mxu0 0.0
        %2731 = vmatprep.subr.mxu0 0.0
        %2732 = vmatpush1.msra.mxu0 0.0
        %2733 = vmatprep.subr.mxu0 0.0
        %2734 = vmatpush1.msra.mxu0 0.0
        %2735 = vmatprep.subr.mxu0 0.0
        %2736 = vmatpush1.msra.mxu0 0.0
        %2737 = vmatprep.subr.mxu0 0.0
        %2738 = vmatpush1.msra.mxu0 0.0
        %2739 = vmatprep.subr.mxu0 0.0
        %2740 = vmatpush1.msra.mxu0 0.0
        %2741 = vmatprep.subr.mxu0 0.0
        %2742 = vmatpush1.msra.mxu0 0.0
        %2743 = vmatprep.subr.mxu0 0.0
        %2744 = vmatpush1.msra.mxu0 0.0
        %2745 = vmatprep.subr.mxu0 0.0
        %2746 = vmatpush1.msra.mxu0 0.0
        %2747 = vmatprep.subr.mxu0 0.0
        %2748 = vmatpush1.msra.mxu0 0.0
        %2749 = vmatprep.subr.mxu0 0.0
        %2750 = vmatpush1.msra.mxu0 0.0
        %2751 = vmatprep.subr.mxu0 0.0
        %2752 = vmatpush1.msra.mxu0 0.0
        %2753 = vmatprep.subr.mxu0 0.0
        %2754 = vmatpush1.msra.mxu0 0.0
        %2755 = vmatprep.subr.mxu0 0.0
        %2756 = vmatpush1.msra.mxu0 0.0
        %2757 = vmatprep.subr.mxu0 0.0
        %2758 = vmatpush1.msra.mxu0 0.0
        %2759 = vmatprep.subr.mxu0 0.0
        %2760 = vmatpush1.msra.mxu0 0.0
        %2761 = vmatprep.subr.mxu0 0.0
        %2762 = vmatpush1.msra.mxu0 0.0
        %2763 = vmatprep.subr.mxu0 0.0
        %2764 = vmatpush1.msra.mxu0 0.0
        %2765 = vmatprep.subr.mxu0 0.0
        %2766 = vmatpush1.msra.mxu0 0.0
        %2767 = vmatprep.subr.mxu0 0.0
        %2768 = vmatpush1.msra.mxu0 0.0
        %2769 = vmatprep.subr.mxu0 0.0
        %2770 = vmatpush1.msra.mxu0 0.0
        %2771 = vmatprep.subr.mxu0 0.0
        %2772 = vmatpush1.msra.mxu0 0.0
        %2773 = vmatprep.subr.mxu0 0.0
        %2774 = vmatpush1.msra.mxu0 0.0
        %2775 = vmatprep.subr.mxu0 0.0
        %2776 = vmatpush1.msra.mxu0 0.0
        %2777 = vmatprep.subr.mxu0 0.0
        %2778 = vmatpush1.msra.mxu0 0.0
        %2779 = vmatprep.mubr.f32.mxu0 0.0
        %2780 = vmatmul.mubr.f32.gmra.mrb[0].mxu0 %v733
        %v2781 = vpop.f32.mrb[0].mxu0
        %v2782 = vadd.f32 %v2713, %v2781
        %v2783 = vpop.f32.mrb[0].mxu0
        %2784 = vmatprep.mubr.f32.mxu0 0.0
        %2785 = vmatmul.mubr.f32.gmra.mrb[0].mxu0 %v736
        %v2786 = vpop.f32.mrb[0].mxu0
        %v2787 = vadd.f32 %v2713, %v2786
        %v2788 = vpop.f32.mrb[0].mxu0
        %2789 = vmatprep.mubr.f32.mxu0 0.0
        %2790 = vmatmul.mubr.f32.gmra.mrb[0].mxu0 %v739
        %v2791 = vpop.f32.mrb[0].mxu0
        %v2792 = vadd.f32 %v2713, %v2791
        %v2793 = vpop.f32.mrb[0].mxu0
        %2794 = vmatprep.mubr.f32.mxu0 0.0
        %2795 = vmatmul.mubr.f32.gmra.mrb[0].mxu0 %v742
        %v2796 = vpop.f32.mrb[0].mxu0
        %v2797 = vadd.f32 %v2713, %v2796
        %v2798 = vpop.f32.mrb[0].mxu0
        %2799 = vmatprep.mubr.f32.mxu0 0.0
        %2800 = vmatmul.mubr.f32.gmra.mrb[0].mxu0 %v745
        %v2801 = vpop.f32.mrb[0].mxu0
        %v2802 = vadd.f32 %v2713, %v2801
        %v2803 = vpop.f32.mrb[0].mxu0
        %2804 = vmatprep.mubr.f32.mxu0 0.0
        %2805 = vmatmul.mubr.f32.gmra.mrb[0].mxu0 %v748
        %v2806 = vpop.f32.mrb[0].mxu0
        %v2807 = vadd.f32 %v2713, %v2806
        %v2808 = vpop.f32.mrb[0].mxu0
        %2809 = vmatprep.mubr.f32.mxu0 0.0
        %2810 = vmatmul.mubr.f32.gmra.mrb[0].mxu0 %v751
        %v2811 = vpop.f32.mrb[0].mxu0
        %v2812 = vadd.f32 %v2713, %v2811
        %v2813 = vpop.f32.mrb[0].mxu0
        %2814 = vmatprep.mubr.f32.mxu0 0.0
        %2815 = vmatmul.mubr.f32.gmra.mrb[0].mxu0 %v754
        %v2816 = vpop.f32.mrb[0].mxu0
        %v2817 = vadd.f32 %v2713, %v2816
        %v2818 = vpop.f32.mrb[0].mxu0
        %2819 = vdwg.mxu0
        %v2821 = vsel %vm1093, %v2546, 0
        %v2824 = vsel %vm1093, %v2551, 0
        %v2827 = vsel %vm1093, %v2556, 0
        %v2830 = vsel %vm1093, %v2561, 0
        %v2833 = vsel %vm1093, %v2566, 0
        %v2836 = vsel %vm1093, %v2571, 0
        %v2839 = vsel %vm1093, %v2576, 0
        %v2842 = vsel %vm1093, %v2581, 0
        %v2845 = vsel %vm1093, %v2664, 0
        %v2848 = vsel %vm1093, %v2669, 0
        %v2851 = vsel %vm1093, %v2674, 0
        %v2854 = vsel %vm1093, %v2679, 0
        %v2857 = vsel %vm1093, %v2684, 0
        %v2860 = vsel %vm1093, %v2689, 0
        %v2863 = vsel %vm1093, %v2694, 0
        %v2866 = vsel %vm1093, %v2699, 0
        %2868 = vmatprep.subr.mxu0 0.0
        %2869 = vmatpush1.xpose.msra.mxu0 %v2845
        %2870 = vmatprep.subr.mxu0 0.0
        %2871 = vmatpush1.xpose.msra.mxu0 %v2848
        %2872 = vmatprep.subr.mxu0 0.0
        %2873 = vmatpush1.xpose.msra.mxu0 %v2851
        %2874 = vmatprep.subr.mxu0 0.0
        %2875 = vmatpush1.xpose.msra.mxu0 %v2854
        %2876 = vmatprep.subr.mxu0 0.0
        %2877 = vmatpush1.xpose.msra.mxu0 %v2857
        %2878 = vmatprep.subr.mxu0 0.0
        %2879 = vmatpush1.xpose.msra.mxu0 %v2860
        %2880 = vmatprep.subr.mxu0 0.0
        %2881 = vmatpush1.xpose.msra.mxu0 %v2863
        %2882 = vmatprep.subr.mxu0 0.0
        %2883 = vmatpush1.xpose.msra.mxu0 %v2866
        %2884 = vmatprep.subr.mxu0 0.0
        %2885 = vmatpush1.xpose.msra.mxu0 0.0
        %2886 = vmatprep.subr.mxu0 0.0
        %2887 = vmatpush1.xpose.msra.mxu0 0.0
        %2888 = vmatprep.subr.mxu0 0.0
        %2889 = vmatpush1.xpose.msra.mxu0 0.0
        %2890 = vmatprep.subr.mxu0 0.0
        %2891 = vmatpush1.xpose.msra.mxu0 0.0
        %2892 = vmatprep.subr.mxu0 0.0
        %2893 = vmatpush1.xpose.msra.mxu0 0.0
        %2894 = vmatprep.subr.mxu0 0.0
        %2895 = vmatpush1.xpose.msra.mxu0 0.0
        %2896 = vmatprep.subr.mxu0 0.0
        %2897 = vmatpush1.xpose.msra.mxu0 0.0
        %2898 = vmatprep.subr.mxu0 0.0
        %2899 = vmatpush1.xpose.msra.mxu0 0.0
        %2900 = vmatprep.subr.mxu0 0.0
        %2901 = vmatpush1.xpose.msra.mxu0 0.0
        %2902 = vmatprep.subr.mxu0 0.0
        %2903 = vmatpush1.xpose.msra.mxu0 0.0
        %2904 = vmatprep.subr.mxu0 0.0
        %2905 = vmatpush1.xpose.msra.mxu0 0.0
        %2906 = vmatprep.subr.mxu0 0.0
        %2907 = vmatpush1.xpose.msra.mxu0 0.0
        %2908 = vmatprep.subr.mxu0 0.0
        %2909 = vmatpush1.xpose.msra.mxu0 0.0
        %2910 = vmatprep.subr.mxu0 0.0
        %2911 = vmatpush1.xpose.msra.mxu0 0.0
        %2912 = vmatprep.subr.mxu0 0.0
        %2913 = vmatpush1.xpose.msra.mxu0 0.0
        %2914 = vmatprep.subr.mxu0 0.0
        %2915 = vmatpush1.xpose.msra.mxu0 0.0
        %2916 = vmatprep.subr.mxu0 0.0
        %2917 = vmatpush1.xpose.msra.mxu0 0.0
        %2918 = vmatprep.subr.mxu0 0.0
        %2919 = vmatpush1.xpose.msra.mxu0 0.0
        %2920 = vmatprep.subr.mxu0 0.0
        %2921 = vmatpush1.xpose.msra.mxu0 0.0
        %2922 = vmatprep.subr.mxu0 0.0
        %2923 = vmatpush1.xpose.msra.mxu0 0.0
        %2924 = vmatprep.subr.mxu0 0.0
        %2925 = vmatpush1.xpose.msra.mxu0 0.0
        %2926 = vmatprep.subr.mxu0 0.0
        %2927 = vmatpush1.xpose.msra.mxu0 0.0
        %2928 = vmatprep.subr.mxu0 0.0
        %2929 = vmatpush1.xpose.msra.mxu0 0.0
        %2930 = vmatprep.subr.mxu0 0.0
        %2931 = vmatpush1.xpose.msra.mxu0 0.0
        %2932 = vmatprep.mubr.f32.mxu0 0.0
        %2933 = vmatmul.mubr.f32.gmra.mrb[0].mxu0 %v2821
        %v2934 = vpop.f32.mrb[0].mxu0
        %v2935 = vadd.f32 0.0, %v2934
        %v2936 = vpop.f32.mrb[0].mxu0
        %2937 = vmatprep.mubr.f32.mxu0 0.0
        %2938 = vmatmul.mubr.f32.gmra.mrb[0].mxu0 %v2824
        %v2939 = vpop.f32.mrb[0].mxu0
        %v2940 = vadd.f32 0.0, %v2939
        %v2941 = vpop.f32.mrb[0].mxu0
        %2942 = vmatprep.mubr.f32.mxu0 0.0
        %2943 = vmatmul.mubr.f32.gmra.mrb[0].mxu0 %v2827
        %v2944 = vpop.f32.mrb[0].mxu0
        %v2945 = vadd.f32 0.0, %v2944
        %v2946 = vpop.f32.mrb[0].mxu0
        %2947 = vmatprep.mubr.f32.mxu0 0.0
        %2948 = vmatmul.mubr.f32.gmra.mrb[0].mxu0 %v2830
        %v2949 = vpop.f32.mrb[0].mxu0
        %v2950 = vadd.f32 0.0, %v2949
        %v2951 = vpop.f32.mrb[0].mxu0
        %2952 = vmatprep.mubr.f32.mxu0 0.0
        %2953 = vmatmul.mubr.f32.gmra.mrb[0].mxu0 %v2833
        %v2954 = vpop.f32.mrb[0].mxu0
        %v2955 = vadd.f32 0.0, %v2954
        %v2956 = vpop.f32.mrb[0].mxu0
        %2957 = vmatprep.mubr.f32.mxu0 0.0
        %2958 = vmatmul.mubr.f32.gmra.mrb[0].mxu0 %v2836
        %v2959 = vpop.f32.mrb[0].mxu0
        %v2960 = vadd.f32 0.0, %v2959
        %v2961 = vpop.f32.mrb[0].mxu0
        %2962 = vmatprep.mubr.f32.mxu0 0.0
        %2963 = vmatmul.mubr.f32.gmra.mrb[0].mxu0 %v2839
        %v2964 = vpop.f32.mrb[0].mxu0
        %v2965 = vadd.f32 0.0, %v2964
        %v2966 = vpop.f32.mrb[0].mxu0
        %2967 = vmatprep.mubr.f32.mxu0 0.0
        %2968 = vmatmul.mubr.f32.gmra.mrb[0].mxu0 %v2842
        %v2969 = vpop.f32.mrb[0].mxu0
        %v2970 = vadd.f32 0.0, %v2969
        %v2971 = vpop.f32.mrb[0].mxu0
        %2972 = vdwg.mxu0
        %v2973 = vmul.f32 %v2935, 0.35355338
        %v2974 = vmul.f32 %v2940, 0.35355338
        %v2975 = vmul.f32 %v2945, 0.35355338
        %v2976 = vmul.f32 %v2950, 0.35355338
        %v2977 = vmul.f32 %v2955, 0.35355338
        %v2978 = vmul.f32 %v2960, 0.35355338
        %v2979 = vmul.f32 %v2965, 0.35355338
        %v2980 = vmul.f32 %v2970, 0.35355338
        %v2981 = vsel %vm1255, %v2973, -inf
        %2982 = vmax.xlane.f32.xlu0 %v2981
        %v2983 = vpop.xlane.xlu0 %2982
        %v2984 = vsel %vm1255, %v2974, -inf
        %2985 = vmax.xlane.f32.xlu0 %v2984
        %v2986 = vpop.xlane.xlu0 %2985
        %v2987 = vsel %vm1255, %v2975, -inf
        %2988 = vmax.xlane.f32.xlu0 %v2987
        %v2989 = vpop.xlane.xlu0 %2988
        %v2990 = vsel %vm1255, %v2976, -inf
        %2991 = vmax.xlane.f32.xlu0 %v2990
        %v2992 = vpop.xlane.xlu0 %2991
        %v2993 = vsel %vm1255, %v2977, -inf
        %2994 = vmax.xlane.f32.xlu0 %v2993
        %v2995 = vpop.xlane.xlu0 %2994
        %v2996 = vsel %vm1255, %v2978, -inf
        %2997 = vmax.xlane.f32.xlu0 %v2996
        %v2998 = vpop.xlane.xlu0 %2997
        %v2999 = vsel %vm1255, %v2979, -inf
        %3000 = vmax.xlane.f32.xlu0 %v2999
        %v3001 = vpop.xlane.xlu0 %3000
        %v3002 = vsel %vm1255, %v2980, -inf
        %3003 = vmax.xlane.f32.xlu0 %v3002
        %v3004 = vpop.xlane.xlu0 %3003
        %v3005 = vsub.f32 %v2973, %v2983
        %v3006 = vsub.f32 %v2974, %v2986
        %v3007 = vsub.f32 %v2975, %v2989
        %v3008 = vsub.f32 %v2976, %v2992
        %v3009 = vsub.f32 %v2977, %v2995
        %v3010 = vsub.f32 %v2978, %v2998
        %v3011 = vsub.f32 %v2979, %v3001
        %v3012 = vsub.f32 %v2980, %v3004
        %v3013 = vmul.f32 %v3005, 1.442695
        %v3014 = vpow.pop %v3013
        %v3015 = vmul.f32 %v3006, 1.442695
        %v3016 = vpow.pop %v3015
        %v3017 = vmul.f32 %v3007, 1.442695
        %v3018 = vpow.pop %v3017
        %v3019 = vmul.f32 %v3008, 1.442695
        %v3020 = vpow.pop %v3019
        %v3021 = vmul.f32 %v3009, 1.442695
        %v3022 = vpow.pop %v3021
        %v3023 = vmul.f32 %v3010, 1.442695
        %v3024 = vpow.pop %v3023
        %v3025 = vmul.f32 %v3011, 1.442695
        %v3026 = vpow.pop %v3025
        %v3027 = vmul.f32 %v3012, 1.442695
        %v3028 = vpow.pop %v3027
        %v3029 = vsel %vm1255, %v3014, 0.0
        %3030 = vadd.xlane.f32.xlu0 %v3029
        %v3031 = vpop.xlane.xlu0 %3030
        %v3032 = vsel %vm1255, %v3016, 0.0
        %3033 = vadd.xlane.f32.xlu0 %v3032
        %v3034 = vpop.xlane.xlu0 %3033
        %v3035 = vsel %vm1255, %v3018, 0.0
        %3036 = vadd.xlane.f32.xlu0 %v3035
        %v3037 = vpop.xlane.xlu0 %3036
        %v3038 = vsel %vm1255, %v3020, 0.0
        %3039 = vadd.xlane.f32.xlu0 %v3038
        %v3040 = vpop.xlane.xlu0 %3039
        %v3041 = vsel %vm1255, %v3022, 0.0
        %3042 = vadd.xlane.f32.xlu0 %v3041
        %v3043 = vpop.xlane.xlu0 %3042
        %v3044 = vsel %vm1255, %v3024, 0.0
        %3045 = vadd.xlane.f32.xlu0 %v3044
        %v3046 = vpop.xlane.xlu0 %3045
        %v3047 = vsel %vm1255, %v3026, 0.0
        %3048 = vadd.xlane.f32.xlu0 %v3047
        %v3049 = vpop.xlane.xlu0 %3048
        %v3050 = vsel %vm1255, %v3028, 0.0
        %3051 = vadd.xlane.f32.xlu0 %v3050
        %v3052 = vpop.xlane.xlu0 %3051
        %v3053 = vrcp.pop %v3031
        %v3054 = vrcp.pop %v3034
        %v3055 = vrcp.pop %v3037
        %v3056 = vrcp.pop %v3040
        %v3057 = vrcp.pop %v3043
        %v3058 = vrcp.pop %v3046
        %v3059 = vrcp.pop %v3049
        %v3060 = vrcp.pop %v3052
        %v3061 = vmul.f32 %v3014, %v3053
        %v3062 = vmul.f32 %v3016, %v3054
        %v3063 = vmul.f32 %v3018, %v3055
        %v3064 = vmul.f32 %v3020, %v3056
        %v3065 = vmul.f32 %v3022, %v3057
        %v3066 = vmul.f32 %v3024, %v3058
        %v3067 = vmul.f32 %v3026, %v3059
        %v3068 = vmul.f32 %v3028, %v3060
        %v3070 = vsel %vm1255, %v3061, 0
        %v3073 = vsel %vm1255, %v3062, 0
        %v3076 = vsel %vm1255, %v3063, 0
        %v3079 = vsel %vm1255, %v3064, 0
        %v3082 = vsel %vm1255, %v3065, 0
        %v3085 = vsel %vm1255, %v3066, 0
        %v3088 = vsel %vm1255, %v3067, 0
        %v3091 = vsel %vm1255, %v3068, 0
        %3093 = vmatprep.subr.mxu0 0.0
        %3094 = vmatpush1.msra.mxu0 %v2782
        %3095 = vmatprep.subr.mxu0 0.0
        %3096 = vmatpush1.msra.mxu0 %v2787
        %3097 = vmatprep.subr.mxu0 0.0
        %3098 = vmatpush1.msra.mxu0 %v2792
        %3099 = vmatprep.subr.mxu0 0.0
        %3100 = vmatpush1.msra.mxu0 %v2797
        %3101 = vmatprep.subr.mxu0 0.0
        %3102 = vmatpush1.msra.mxu0 %v2802
        %3103 = vmatprep.subr.mxu0 0.0
        %3104 = vmatpush1.msra.mxu0 %v2807
        %3105 = vmatprep.subr.mxu0 0.0
        %3106 = vmatpush1.msra.mxu0 %v2812
        %3107 = vmatprep.subr.mxu0 0.0
        %3108 = vmatpush1.msra.mxu0 %v2817
        %3109 = vmatprep.subr.mxu0 0.0
        %3110 = vmatpush1.msra.mxu0 0.0
        %3111 = vmatprep.subr.mxu0 0.0
        %3112 = vmatpush1.msra.mxu0 0.0
        %3113 = vmatprep.subr.mxu0 0.0
        %3114 = vmatpush1.msra.mxu0 0.0
        %3115 = vmatprep.subr.mxu0 0.0
        %3116 = vmatpush1.msra.mxu0 0.0
        %3117 = vmatprep.subr.mxu0 0.0
        %3118 = vmatpush1.msra.mxu0 0.0
        %3119 = vmatprep.subr.mxu0 0.0
        %3120 = vmatpush1.msra.mxu0 0.0
        %3121 = vmatprep.subr.mxu0 0.0
        %3122 = vmatpush1.msra.mxu0 0.0
        %3123 = vmatprep.subr.mxu0 0.0
        %3124 = vmatpush1.msra.mxu0 0.0
        %3125 = vmatprep.subr.mxu0 0.0
        %3126 = vmatpush1.msra.mxu0 0.0
        %3127 = vmatprep.subr.mxu0 0.0
        %3128 = vmatpush1.msra.mxu0 0.0
        %3129 = vmatprep.subr.mxu0 0.0
        %3130 = vmatpush1.msra.mxu0 0.0
        %3131 = vmatprep.subr.mxu0 0.0
        %3132 = vmatpush1.msra.mxu0 0.0
        %3133 = vmatprep.subr.mxu0 0.0
        %3134 = vmatpush1.msra.mxu0 0.0
        %3135 = vmatprep.subr.mxu0 0.0
        %3136 = vmatpush1.msra.mxu0 0.0
        %3137 = vmatprep.subr.mxu0 0.0
        %3138 = vmatpush1.msra.mxu0 0.0
        %3139 = vmatprep.subr.mxu0 0.0
        %3140 = vmatpush1.msra.mxu0 0.0
        %3141 = vmatprep.subr.mxu0 0.0
        %3142 = vmatpush1.msra.mxu0 0.0
        %3143 = vmatprep.subr.mxu0 0.0
        %3144 = vmatpush1.msra.mxu0 0.0
        %3145 = vmatprep.subr.mxu0 0.0
        %3146 = vmatpush1.msra.mxu0 0.0
        %3147 = vmatprep.subr.mxu0 0.0
        %3148 = vmatpush1.msra.mxu0 0.0
        %3149 = vmatprep.subr.mxu0 0.0
        %3150 = vmatpush1.msra.mxu0 0.0
        %3151 = vmatprep.subr.mxu0 0.0
        %3152 = vmatpush1.msra.mxu0 0.0
        %3153 = vmatprep.subr.mxu0 0.0
        %3154 = vmatpush1.msra.mxu0 0.0
        %3155 = vmatprep.subr.mxu0 0.0
        %3156 = vmatpush1.msra.mxu0 0.0
        %3157 = vmatprep.mubr.f32.mxu0 0.0
        %3158 = vmatmul.mubr.f32.gmra.mrb[0].mxu0 %v3070
        %v3159 = vpop.f32.mrb[0].mxu0
        %v3160 = vadd.f32 0.0, %v3159
        %v3161 = vpop.f32.mrb[0].mxu0
        %3162 = vmatprep.mubr.f32.mxu0 0.0
        %3163 = vmatmul.mubr.f32.gmra.mrb[0].mxu0 %v3073
        %v3164 = vpop.f32.mrb[0].mxu0
        %v3165 = vadd.f32 0.0, %v3164
        %v3166 = vpop.f32.mrb[0].mxu0
        %3167 = vmatprep.mubr.f32.mxu0 0.0
        %3168 = vmatmul.mubr.f32.gmra.mrb[0].mxu0 %v3076
        %v3169 = vpop.f32.mrb[0].mxu0
        %v3170 = vadd.f32 0.0, %v3169
        %v3171 = vpop.f32.mrb[0].mxu0
        %3172 = vmatprep.mubr.f32.mxu0 0.0
        %3173 = vmatmul.mubr.f32.gmra.mrb[0].mxu0 %v3079
        %v3174 = vpop.f32.mrb[0].mxu0
        %v3175 = vadd.f32 0.0, %v3174
        %v3176 = vpop.f32.mrb[0].mxu0
        %3177 = vmatprep.mubr.f32.mxu0 0.0
        %3178 = vmatmul.mubr.f32.gmra.mrb[0].mxu0 %v3082
        %v3179 = vpop.f32.mrb[0].mxu0
        %v3180 = vadd.f32 0.0, %v3179
        %v3181 = vpop.f32.mrb[0].mxu0
        %3182 = vmatprep.mubr.f32.mxu0 0.0
        %3183 = vmatmul.mubr.f32.gmra.mrb[0].mxu0 %v3085
        %v3184 = vpop.f32.mrb[0].mxu0
        %v3185 = vadd.f32 0.0, %v3184
        %v3186 = vpop.f32.mrb[0].mxu0
        %3187 = vmatprep.mubr.f32.mxu0 0.0
        %3188 = vmatmul.mubr.f32.gmra.mrb[0].mxu0 %v3088
        %v3189 = vpop.f32.mrb[0].mxu0
        %v3190 = vadd.f32 0.0, %v3189
        %v3191 = vpop.f32.mrb[0].mxu0
        %3192 = vmatprep.mubr.f32.mxu0 0.0
        %3193 = vmatmul.mubr.f32.gmra.mrb[0].mxu0 %v3091
        %v3194 = vpop.f32.mrb[0].mxu0
        %v3195 = vadd.f32 0.0, %v3194
        %v3196 = vpop.f32.mrb[0].mxu0
        %3197 = vdwg.mxu0
        %s3198 = scalar_lea.vmem %s10, 16
        %v3199 = vld [vmem:[%s3198] sm:$0xff]
        %v3201 = vsel %vm1093, %v3160, 0
        %v3204 = vsel %vm1093, %v3165, 0
        %v3207 = vsel %vm1093, %v3170, 0
        %v3210 = vsel %vm1093, %v3175, 0
        %v3213 = vsel %vm1093, %v3180, 0
        %v3216 = vsel %vm1093, %v3185, 0
        %v3219 = vsel %vm1093, %v3190, 0
        %v3222 = vsel %vm1093, %v3195, 0
        %3224 = vmatprep.subr.mxu0 0.0
        %3225 = vmatpush1.msra.mxu0 %v3199
        %3226 = vmatprep.subr.mxu0 0.0
        %3227 = vmatpush1.msra.mxu0 0.0
        %3228 = vmatprep.subr.mxu0 0.0
        %3229 = vmatpush1.msra.mxu0 0.0
        %3230 = vmatprep.subr.mxu0 0.0
        %3231 = vmatpush1.msra.mxu0 0.0
        %3232 = vmatprep.subr.mxu0 0.0
        %3233 = vmatpush1.msra.mxu0 0.0
        %3234 = vmatprep.subr.mxu0 0.0
        %3235 = vmatpush1.msra.mxu0 0.0
        %3236 = vmatprep.subr.mxu0 0.0
        %3237 = vmatpush1.msra.mxu0 0.0
        %3238 = vmatprep.subr.mxu0 0.0
        %3239 = vmatpush1.msra.mxu0 0.0
        %3240 = vmatprep.subr.mxu0 0.0
        %3241 = vmatpush1.msra.mxu0 0.0
        %3242 = vmatprep.subr.mxu0 0.0
        %3243 = vmatpush1.msra.mxu0 0.0
        %3244 = vmatprep.subr.mxu0 0.0
        %3245 = vmatpush1.msra.mxu0 0.0
        %3246 = vmatprep.subr.mxu0 0.0
        %3247 = vmatpush1.msra.mxu0 0.0
        %3248 = vmatprep.subr.mxu0 0.0
        %3249 = vmatpush1.msra.mxu0 0.0
        %3250 = vmatprep.subr.mxu0 0.0
        %3251 = vmatpush1.msra.mxu0 0.0
        %3252 = vmatprep.subr.mxu0 0.0
        %3253 = vmatpush1.msra.mxu0 0.0
        %3254 = vmatprep.subr.mxu0 0.0
        %3255 = vmatpush1.msra.mxu0 0.0
        %3256 = vmatprep.subr.mxu0 0.0
        %3257 = vmatpush1.msra.mxu0 0.0
        %3258 = vmatprep.subr.mxu0 0.0
        %3259 = vmatpush1.msra.mxu0 0.0
        %3260 = vmatprep.subr.mxu0 0.0
        %3261 = vmatpush1.msra.mxu0 0.0
        %3262 = vmatprep.subr.mxu0 0.0
        %3263 = vmatpush1.msra.mxu0 0.0
        %3264 = vmatprep.subr.mxu0 0.0
        %3265 = vmatpush1.msra.mxu0 0.0
        %3266 = vmatprep.subr.mxu0 0.0
        %3267 = vmatpush1.msra.mxu0 0.0
        %3268 = vmatprep.subr.mxu0 0.0
        %3269 = vmatpush1.msra.mxu0 0.0
        %3270 = vmatprep.subr.mxu0 0.0
        %3271 = vmatpush1.msra.mxu0 0.0
        %3272 = vmatprep.subr.mxu0 0.0
        %3273 = vmatpush1.msra.mxu0 0.0
        %3274 = vmatprep.subr.mxu0 0.0
        %3275 = vmatpush1.msra.mxu0 0.0
        %3276 = vmatprep.subr.mxu0 0.0
        %3277 = vmatpush1.msra.mxu0 0.0
        %3278 = vmatprep.subr.mxu0 0.0
        %3279 = vmatpush1.msra.mxu0 0.0
        %3280 = vmatprep.subr.mxu0 0.0
        %3281 = vmatpush1.msra.mxu0 0.0
        %3282 = vmatprep.subr.mxu0 0.0
        %3283 = vmatpush1.msra.mxu0 0.0
        %3284 = vmatprep.subr.mxu0 0.0
        %3285 = vmatpush1.msra.mxu0 0.0
        %3286 = vmatprep.subr.mxu0 0.0
        %3287 = vmatpush1.msra.mxu0 0.0
        %3288 = vmatprep.mubr.f32.mxu0 0.0
        %3289 = vmatmul.mubr.f32.gmra.mrb[0].mxu0 %v3201
        %v3290 = vpop.f32.mrb[0].mxu0
        %v3291 = vadd.f32 0.0, %v3290
        %v3292 = vpop.f32.mrb[0].mxu0
        %3293 = vmatprep.mubr.f32.mxu0 0.0
        %3294 = vmatmul.mubr.f32.gmra.mrb[0].mxu0 %v3204
        %v3295 = vpop.f32.mrb[0].mxu0
        %v3296 = vadd.f32 0.0, %v3295
        %v3297 = vpop.f32.mrb[0].mxu0
        %3298 = vmatprep.mubr.f32.mxu0 0.0
        %3299 = vmatmul.mubr.f32.gmra.mrb[0].mxu0 %v3207
        %v3300 = vpop.f32.mrb[0].mxu0
        %v3301 = vadd.f32 0.0, %v3300
        %v3302 = vpop.f32.mrb[0].mxu0
        %3303 = vmatprep.mubr.f32.mxu0 0.0
        %3304 = vmatmul.mubr.f32.gmra.mrb[0].mxu0 %v3210
        %v3305 = vpop.f32.mrb[0].mxu0
        %v3306 = vadd.f32 0.0, %v3305
        %v3307 = vpop.f32.mrb[0].mxu0
        %3308 = vmatprep.mubr.f32.mxu0 0.0
        %3309 = vmatmul.mubr.f32.gmra.mrb[0].mxu0 %v3213
        %v3310 = vpop.f32.mrb[0].mxu0
        %v3311 = vadd.f32 0.0, %v3310
        %v3312 = vpop.f32.mrb[0].mxu0
        %3313 = vmatprep.mubr.f32.mxu0 0.0
        %3314 = vmatmul.mubr.f32.gmra.mrb[0].mxu0 %v3216
        %v3315 = vpop.f32.mrb[0].mxu0
        %v3316 = vadd.f32 0.0, %v3315
        %v3317 = vpop.f32.mrb[0].mxu0
        %3318 = vmatprep.mubr.f32.mxu0 0.0
        %3319 = vmatmul.mubr.f32.gmra.mrb[0].mxu0 %v3219
        %v3320 = vpop.f32.mrb[0].mxu0
        %v3321 = vadd.f32 0.0, %v3320
        %v3322 = vpop.f32.mrb[0].mxu0
        %3323 = vmatprep.mubr.f32.mxu0 0.0
        %3324 = vmatmul.mubr.f32.gmra.mrb[0].mxu0 %v3222
        %v3325 = vpop.f32.mrb[0].mxu0
        %v3326 = vadd.f32 0.0, %v3325
        %v3327 = vpop.f32.mrb[0].mxu0
        %3328 = vdwg.mxu0
        %v3329 = vadd.f32 %v2428, %v3291
        %v3330 = vadd.f32 %v2433, %v3296
        %v3331 = vadd.f32 %v2438, %v3301
        %v3332 = vadd.f32 %v2443, %v3306
        %v3333 = vadd.f32 %v2448, %v3311
        %v3334 = vadd.f32 %v2453, %v3316
        %v3335 = vadd.f32 %v2458, %v3321
        %v3336 = vadd.f32 %v2463, %v3326
        %s3337 = scalar_lea.vmem %s4, 96
        %v3338 = vld [vmem:[%s3337] sm:$0xff]
        %v3339 = vld [vmem:[%s3337 + $0x8] sm:$0xff]
        %v3340 = vld [vmem:[%s3337 + $0x10] sm:$0xff]
        %v3341 = vld [vmem:[%s3337 + $0x18] sm:$0xff]
        %s3342 = scalar_lea.vmem %s5, 3
        %v3343 = vld [vmem:[%s3342] sm:$0x1]
        %v3345 = vlaneseq
        %v3346 = vshrl.u32 %v3345, 7
        %v3347 = vsub.s32 0, %v3346
        %v3348 = vrot.slane %v3343, %v3347
        %3350 = vmatprep.subr.mxu0 0.0
        %3351 = vmatpush1.msra.mxu0 %v3338
        %3352 = vmatprep.subr.mxu0 0.0
        %3353 = vmatpush1.msra.mxu0 %v3339
        %3354 = vmatprep.subr.mxu0 0.0
        %3355 = vmatpush1.msra.mxu0 %v3340
        %3356 = vmatprep.subr.mxu0 0.0
        %3357 = vmatpush1.msra.mxu0 %v3341
        %3358 = vmatprep.subr.mxu0 0.0
        %3359 = vmatpush1.msra.mxu0 0.0
        %3360 = vmatprep.subr.mxu0 0.0
        %3361 = vmatpush1.msra.mxu0 0.0
        %3362 = vmatprep.subr.mxu0 0.0
        %3363 = vmatpush1.msra.mxu0 0.0
        %3364 = vmatprep.subr.mxu0 0.0
        %3365 = vmatpush1.msra.mxu0 0.0
        %3366 = vmatprep.subr.mxu0 0.0
        %3367 = vmatpush1.msra.mxu0 0.0
        %3368 = vmatprep.subr.mxu0 0.0
        %3369 = vmatpush1.msra.mxu0 0.0
        %3370 = vmatprep.subr.mxu0 0.0
        %3371 = vmatpush1.msra.mxu0 0.0
        %3372 = vmatprep.subr.mxu0 0.0
        %3373 = vmatpush1.msra.mxu0 0.0
        %3374 = vmatprep.subr.mxu0 0.0
        %3375 = vmatpush1.msra.mxu0 0.0
        %3376 = vmatprep.subr.mxu0 0.0
        %3377 = vmatpush1.msra.mxu0 0.0
        %3378 = vmatprep.subr.mxu0 0.0
        %3379 = vmatpush1.msra.mxu0 0.0
        %3380 = vmatprep.subr.mxu0 0.0
        %3381 = vmatpush1.msra.mxu0 0.0
        %3382 = vmatprep.subr.mxu0 0.0
        %3383 = vmatpush1.msra.mxu0 0.0
        %3384 = vmatprep.subr.mxu0 0.0
        %3385 = vmatpush1.msra.mxu0 0.0
        %3386 = vmatprep.subr.mxu0 0.0
        %3387 = vmatpush1.msra.mxu0 0.0
        %3388 = vmatprep.subr.mxu0 0.0
        %3389 = vmatpush1.msra.mxu0 0.0
        %3390 = vmatprep.subr.mxu0 0.0
        %3391 = vmatpush1.msra.mxu0 0.0
        %3392 = vmatprep.subr.mxu0 0.0
        %3393 = vmatpush1.msra.mxu0 0.0
        %3394 = vmatprep.subr.mxu0 0.0
        %3395 = vmatpush1.msra.mxu0 0.0
        %3396 = vmatprep.subr.mxu0 0.0
        %3397 = vmatpush1.msra.mxu0 0.0
        %3398 = vmatprep.subr.mxu0 0.0
        %3399 = vmatpush1.msra.mxu0 0.0
        %3400 = vmatprep.subr.mxu0 0.0
        %3401 = vmatpush1.msra.mxu0 0.0
        %3402 = vmatprep.subr.mxu0 0.0
        %3403 = vmatpush1.msra.mxu0 0.0
        %3404 = vmatprep.subr.mxu0 0.0
        %3405 = vmatpush1.msra.mxu0 0.0
        %3406 = vmatprep.subr.mxu0 0.0
        %3407 = vmatpush1.msra.mxu0 0.0
        %3408 = vmatprep.subr.mxu0 0.0
        %3409 = vmatpush1.msra.mxu0 0.0
        %3410 = vmatprep.subr.mxu0 0.0
        %3411 = vmatpush1.msra.mxu0 0.0
        %3412 = vmatprep.subr.mxu0 0.0
        %3413 = vmatpush1.msra.mxu0 0.0
        %3414 = vmatprep.mubr.f32.mxu0 0.0
        %3415 = vmatmul.mubr.f32.gmra.mrb[0].mxu0 %v733
        %v3416 = vpop.f32.mrb[0].mxu0
        %v3417 = vadd.f32 %v3348, %v3416
        %v3418 = vpop.f32.mrb[0].mxu0
        %3419 = vmatprep.mubr.f32.mxu0 0.0
        %3420 = vmatmul.mubr.f32.gmra.mrb[0].mxu0 %v736
        %v3421 = vpop.f32.mrb[0].mxu0
        %v3422 = vadd.f32 %v3348, %v3421
        %v3423 = vpop.f32.mrb[0].mxu0
        %3424 = vmatprep.mubr.f32.mxu0 0.0
        %3425 = vmatmul.mubr.f32.gmra.mrb[0].mxu0 %v739
        %v3426 = vpop.f32.mrb[0].mxu0
        %v3427 = vadd.f32 %v3348, %v3426
        %v3428 = vpop.f32.mrb[0].mxu0
        %3429 = vmatprep.mubr.f32.mxu0 0.0
        %3430 = vmatmul.mubr.f32.gmra.mrb[0].mxu0 %v742
        %v3431 = vpop.f32.mrb[0].mxu0
        %v3432 = vadd.f32 %v3348, %v3431
        %v3433 = vpop.f32.mrb[0].mxu0
        %3434 = vmatprep.mubr.f32.mxu0 0.0
        %3435 = vmatmul.mubr.f32.gmra.mrb[0].mxu0 %v745
        %v3436 = vpop.f32.mrb[0].mxu0
        %v3437 = vadd.f32 %v3348, %v3436
        %v3438 = vpop.f32.mrb[0].mxu0
        %3439 = vmatprep.mubr.f32.mxu0 0.0
        %3440 = vmatmul.mubr.f32.gmra.mrb[0].mxu0 %v748
        %v3441 = vpop.f32.mrb[0].mxu0
        %v3442 = vadd.f32 %v3348, %v3441
        %v3443 = vpop.f32.mrb[0].mxu0
        %3444 = vmatprep.mubr.f32.mxu0 0.0
        %3445 = vmatmul.mubr.f32.gmra.mrb[0].mxu0 %v751
        %v3446 = vpop.f32.mrb[0].mxu0
        %v3447 = vadd.f32 %v3348, %v3446
        %v3448 = vpop.f32.mrb[0].mxu0
        %3449 = vmatprep.mubr.f32.mxu0 0.0
        %3450 = vmatmul.mubr.f32.gmra.mrb[0].mxu0 %v754
        %v3451 = vpop.f32.mrb[0].mxu0
        %v3452 = vadd.f32 %v3348, %v3451
        %v3453 = vpop.f32.mrb[0].mxu0
        %3454 = vdwg.mxu0
        %s3455 = scalar_lea.vmem %s6, 96
        %v3456 = vld [vmem:[%s3455] sm:$0xff]
        %v3457 = vld [vmem:[%s3455 + $0x8] sm:$0xff]
        %v3458 = vld [vmem:[%s3455 + $0x10] sm:$0xff]
        %v3459 = vld [vmem:[%s3455 + $0x18] sm:$0xff]
        %s3460 = scalar_lea.vmem %s7, 3
        %v3461 = vld [vmem:[%s3460] sm:$0x1]
        %v3463 = vlaneseq
        %v3464 = vshrl.u32 %v3463, 7
        %v3465 = vsub.s32 0, %v3464
        %v3466 = vrot.slane %v3461, %v3465
        %3468 = vmatprep.subr.mxu0 0.0
        %3469 = vmatpush1.msra.mxu0 %v3456
        %3470 = vmatprep.subr.mxu0 0.0
        %3471 = vmatpush1.msra.mxu0 %v3457
        %3472 = vmatprep.subr.mxu0 0.0
        %3473 = vmatpush1.msra.mxu0 %v3458
        %3474 = vmatprep.subr.mxu0 0.0
        %3475 = vmatpush1.msra.mxu0 %v3459
        %3476 = vmatprep.subr.mxu0 0.0
        %3477 = vmatpush1.msra.mxu0 0.0
        %3478 = vmatprep.subr.mxu0 0.0
        %3479 = vmatpush1.msra.mxu0 0.0
        %3480 = vmatprep.subr.mxu0 0.0
        %3481 = vmatpush1.msra.mxu0 0.0
        %3482 = vmatprep.subr.mxu0 0.0
        %3483 = vmatpush1.msra.mxu0 0.0
        %3484 = vmatprep.subr.mxu0 0.0
        %3485 = vmatpush1.msra.mxu0 0.0
        %3486 = vmatprep.subr.mxu0 0.0
        %3487 = vmatpush1.msra.mxu0 0.0
        %3488 = vmatprep.subr.mxu0 0.0
        %3489 = vmatpush1.msra.mxu0 0.0
        %3490 = vmatprep.subr.mxu0 0.0
        %3491 = vmatpush1.msra.mxu0 0.0
        %3492 = vmatprep.subr.mxu0 0.0
        %3493 = vmatpush1.msra.mxu0 0.0
        %3494 = vmatprep.subr.mxu0 0.0
        %3495 = vmatpush1.msra.mxu0 0.0
        %3496 = vmatprep.subr.mxu0 0.0
        %3497 = vmatpush1.msra.mxu0 0.0
        %3498 = vmatprep.subr.mxu0 0.0
        %3499 = vmatpush1.msra.mxu0 0.0
        %3500 = vmatprep.subr.mxu0 0.0
        %3501 = vmatpush1.msra.mxu0 0.0
        %3502 = vmatprep.subr.mxu0 0.0
        %3503 = vmatpush1.msra.mxu0 0.0
        %3504 = vmatprep.subr.mxu0 0.0
        %3505 = vmatpush1.msra.mxu0 0.0
        %3506 = vmatprep.subr.mxu0 0.0
        %3507 = vmatpush1.msra.mxu0 0.0
        %3508 = vmatprep.subr.mxu0 0.0
        %3509 = vmatpush1.msra.mxu0 0.0
        %3510 = vmatprep.subr.mxu0 0.0
        %3511 = vmatpush1.msra.mxu0 0.0
        %3512 = vmatprep.subr.mxu0 0.0
        %3513 = vmatpush1.msra.mxu0 0.0
        %3514 = vmatprep.subr.mxu0 0.0
        %3515 = vmatpush1.msra.mxu0 0.0
        %3516 = vmatprep.subr.mxu0 0.0
        %3517 = vmatpush1.msra.mxu0 0.0
        %3518 = vmatprep.subr.mxu0 0.0
        %3519 = vmatpush1.msra.mxu0 0.0
        %3520 = vmatprep.subr.mxu0 0.0
        %3521 = vmatpush1.msra.mxu0 0.0
        %3522 = vmatprep.subr.mxu0 0.0
        %3523 = vmatpush1.msra.mxu0 0.0
        %3524 = vmatprep.subr.mxu0 0.0
        %3525 = vmatpush1.msra.mxu0 0.0
        %3526 = vmatprep.subr.mxu0 0.0
        %3527 = vmatpush1.msra.mxu0 0.0
        %3528 = vmatprep.subr.mxu0 0.0
        %3529 = vmatpush1.msra.mxu0 0.0
        %3530 = vmatprep.subr.mxu0 0.0
        %3531 = vmatpush1.msra.mxu0 0.0
        %3532 = vmatprep.mubr.f32.mxu0 0.0
        %3533 = vmatmul.mubr.f32.gmra.mrb[0].mxu0 %v733
        %v3534 = vpop.f32.mrb[0].mxu0
        %v3535 = vadd.f32 %v3466, %v3534
        %v3536 = vpop.f32.mrb[0].mxu0
        %3537 = vmatprep.mubr.f32.mxu0 0.0
        %3538 = vmatmul.mubr.f32.gmra.mrb[0].mxu0 %v736
        %v3539 = vpop.f32.mrb[0].mxu0
        %v3540 = vadd.f32 %v3466, %v3539
        %v3541 = vpop.f32.mrb[0].mxu0
        %3542 = vmatprep.mubr.f32.mxu0 0.0
        %3543 = vmatmul.mubr.f32.gmra.mrb[0].mxu0 %v739
        %v3544 = vpop.f32.mrb[0].mxu0
        %v3545 = vadd.f32 %v3466, %v3544
        %v3546 = vpop.f32.mrb[0].mxu0
        %3547 = vmatprep.mubr.f32.mxu0 0.0
        %3548 = vmatmul.mubr.f32.gmra.mrb[0].mxu0 %v742
        %v3549 = vpop.f32.mrb[0].mxu0
        %v3550 = vadd.f32 %v3466, %v3549
        %v3551 = vpop.f32.mrb[0].mxu0
        %3552 = vmatprep.mubr.f32.mxu0 0.0
        %3553 = vmatmul.mubr.f32.gmra.mrb[0].mxu0 %v745
        %v3554 = vpop.f32.mrb[0].mxu0
        %v3555 = vadd.f32 %v3466, %v3554
        %v3556 = vpop.f32.mrb[0].mxu0
        %3557 = vmatprep.mubr.f32.mxu0 0.0
        %3558 = vmatmul.mubr.f32.gmra.mrb[0].mxu0 %v748
        %v3559 = vpop.f32.mrb[0].mxu0
        %v3560 = vadd.f32 %v3466, %v3559
        %v3561 = vpop.f32.mrb[0].mxu0
        %3562 = vmatprep.mubr.f32.mxu0 0.0
        %3563 = vmatmul.mubr.f32.gmra.mrb[0].mxu0 %v751
        %v3564 = vpop.f32.mrb[0].mxu0
        %v3565 = vadd.f32 %v3466, %v3564
        %v3566 = vpop.f32.mrb[0].mxu0
        %3567 = vmatprep.mubr.f32.mxu0 0.0
        %3568 = vmatmul.mubr.f32.gmra.mrb[0].mxu0 %v754
        %v3569 = vpop.f32.mrb[0].mxu0
        %v3570 = vadd.f32 %v3466, %v3569
        %v3571 = vpop.f32.mrb[0].mxu0
        %3572 = vdwg.mxu0
        %s3573 = scalar_lea.vmem %s8, 96
        %v3574 = vld [vmem:[%s3573] sm:$0xff]
        %v3575 = vld [vmem:[%s3573 + $0x8] sm:$0xff]
        %v3576 = vld [vmem:[%s3573 + $0x10] sm:$0xff]
        %v3577 = vld [vmem:[%s3573 + $0x18] sm:$0xff]
        %s3578 = scalar_lea.vmem %s9, 3
        %v3579 = vld [vmem:[%s3578] sm:$0x1]
        %v3581 = vlaneseq
        %v3582 = vshrl.u32 %v3581, 7
        %v3583 = vsub.s32 0, %v3582
        %v3584 = vrot.slane %v3579, %v3583
        %3586 = vmatprep.subr.mxu0 0.0
        %3587 = vmatpush1.msra.mxu0 %v3574
        %3588 = vmatprep.subr.mxu0 0.0
        %3589 = vmatpush1.msra.mxu0 %v3575
        %3590 = vmatprep.subr.mxu0 0.0
        %3591 = vmatpush1.msra.mxu0 %v3576
        %3592 = vmatprep.subr.mxu0 0.0
        %3593 = vmatpush1.msra.mxu0 %v3577
        %3594 = vmatprep.subr.mxu0 0.0
        %3595 = vmatpush1.msra.mxu0 0.0
        %3596 = vmatprep.subr.mxu0 0.0
        %3597 = vmatpush1.msra.mxu0 0.0
        %3598 = vmatprep.subr.mxu0 0.0
        %3599 = vmatpush1.msra.mxu0 0.0
        %3600 = vmatprep.subr.mxu0 0.0
        %3601 = vmatpush1.msra.mxu0 0.0
        %3602 = vmatprep.subr.mxu0 0.0
        %3603 = vmatpush1.msra.mxu0 0.0
        %3604 = vmatprep.subr.mxu0 0.0
        %3605 = vmatpush1.msra.mxu0 0.0
        %3606 = vmatprep.subr.mxu0 0.0
        %3607 = vmatpush1.msra.mxu0 0.0
        %3608 = vmatprep.subr.mxu0 0.0
        %3609 = vmatpush1.msra.mxu0 0.0
        %3610 = vmatprep.subr.mxu0 0.0
        %3611 = vmatpush1.msra.mxu0 0.0
        %3612 = vmatprep.subr.mxu0 0.0
        %3613 = vmatpush1.msra.mxu0 0.0
        %3614 = vmatprep.subr.mxu0 0.0
        %3615 = vmatpush1.msra.mxu0 0.0
        %3616 = vmatprep.subr.mxu0 0.0
        %3617 = vmatpush1.msra.mxu0 0.0
        %3618 = vmatprep.subr.mxu0 0.0
        %3619 = vmatpush1.msra.mxu0 0.0
        %3620 = vmatprep.subr.mxu0 0.0
        %3621 = vmatpush1.msra.mxu0 0.0
        %3622 = vmatprep.subr.mxu0 0.0
        %3623 = vmatpush1.msra.mxu0 0.0
        %3624 = vmatprep.subr.mxu0 0.0
        %3625 = vmatpush1.msra.mxu0 0.0
        %3626 = vmatprep.subr.mxu0 0.0
        %3627 = vmatpush1.msra.mxu0 0.0
        %3628 = vmatprep.subr.mxu0 0.0
        %3629 = vmatpush1.msra.mxu0 0.0
        %3630 = vmatprep.subr.mxu0 0.0
        %3631 = vmatpush1.msra.mxu0 0.0
        %3632 = vmatprep.subr.mxu0 0.0
        %3633 = vmatpush1.msra.mxu0 0.0
        %3634 = vmatprep.subr.mxu0 0.0
        %3635 = vmatpush1.msra.mxu0 0.0
        %3636 = vmatprep.subr.mxu0 0.0
        %3637 = vmatpush1.msra.mxu0 0.0
        %3638 = vmatprep.subr.mxu0 0.0
        %3639 = vmatpush1.msra.mxu0 0.0
        %3640 = vmatprep.subr.mxu0 0.0
        %3641 = vmatpush1.msra.mxu0 0.0
        %3642 = vmatprep.subr.mxu0 0.0
        %3643 = vmatpush1.msra.mxu0 0.0
        %3644 = vmatprep.subr.mxu0 0.0
        %3645 = vmatpush1.msra.mxu0 0.0
        %3646 = vmatprep.subr.mxu0 0.0
        %3647 = vmatpush1.msra.mxu0 0.0
        %3648 = vmatprep.subr.mxu0 0.0
        %3649 = vmatpush1.msra.mxu0 0.0
        %3650 = vmatprep.mubr.f32.mxu0 0.0
        %3651 = vmatmul.mubr.f32.gmra.mrb[0].mxu0 %v733
        %v3652 = vpop.f32.mrb[0].mxu0
        %v3653 = vadd.f32 %v3584, %v3652
        %v3654 = vpop.f32.mrb[0].mxu0
        %3655 = vmatprep.mubr.f32.mxu0 0.0
        %3656 = vmatmul.mubr.f32.gmra.mrb[0].mxu0 %v736
        %v3657 = vpop.f32.mrb[0].mxu0
        %v3658 = vadd.f32 %v3584, %v3657
        %v3659 = vpop.f32.mrb[0].mxu0
        %3660 = vmatprep.mubr.f32.mxu0 0.0
        %3661 = vmatmul.mubr.f32.gmra.mrb[0].mxu0 %v739
        %v3662 = vpop.f32.mrb[0].mxu0
        %v3663 = vadd.f32 %v3584, %v3662
        %v3664 = vpop.f32.mrb[0].mxu0
        %3665 = vmatprep.mubr.f32.mxu0 0.0
        %3666 = vmatmul.mubr.f32.gmra.mrb[0].mxu0 %v742
        %v3667 = vpop.f32.mrb[0].mxu0
        %v3668 = vadd.f32 %v3584, %v3667
        %v3669 = vpop.f32.mrb[0].mxu0
        %3670 = vmatprep.mubr.f32.mxu0 0.0
        %3671 = vmatmul.mubr.f32.gmra.mrb[0].mxu0 %v745
        %v3672 = vpop.f32.mrb[0].mxu0
        %v3673 = vadd.f32 %v3584, %v3672
        %v3674 = vpop.f32.mrb[0].mxu0
        %3675 = vmatprep.mubr.f32.mxu0 0.0
        %3676 = vmatmul.mubr.f32.gmra.mrb[0].mxu0 %v748
        %v3677 = vpop.f32.mrb[0].mxu0
        %v3678 = vadd.f32 %v3584, %v3677
        %v3679 = vpop.f32.mrb[0].mxu0
        %3680 = vmatprep.mubr.f32.mxu0 0.0
        %3681 = vmatmul.mubr.f32.gmra.mrb[0].mxu0 %v751
        %v3682 = vpop.f32.mrb[0].mxu0
        %v3683 = vadd.f32 %v3584, %v3682
        %v3684 = vpop.f32.mrb[0].mxu0
        %3685 = vmatprep.mubr.f32.mxu0 0.0
        %3686 = vmatmul.mubr.f32.gmra.mrb[0].mxu0 %v754
        %v3687 = vpop.f32.mrb[0].mxu0
        %v3688 = vadd.f32 %v3584, %v3687
        %v3689 = vpop.f32.mrb[0].mxu0
        %3690 = vdwg.mxu0
        %v3692 = vsel %vm1093, %v3417, 0
        %v3695 = vsel %vm1093, %v3422, 0
        %v3698 = vsel %vm1093, %v3427, 0
        %v3701 = vsel %vm1093, %v3432, 0
        %v3704 = vsel %vm1093, %v3437, 0
        %v3707 = vsel %vm1093, %v3442, 0
        %v3710 = vsel %vm1093, %v3447, 0
        %v3713 = vsel %vm1093, %v3452, 0
        %v3716 = vsel %vm1093, %v3535, 0
        %v3719 = vsel %vm1093, %v3540, 0
        %v3722 = vsel %vm1093, %v3545, 0
        %v3725 = vsel %vm1093, %v3550, 0
        %v3728 = vsel %vm1093, %v3555, 0
        %v3731 = vsel %vm1093, %v3560, 0
        %v3734 = vsel %vm1093, %v3565, 0
        %v3737 = vsel %vm1093, %v3570, 0
        %3739 = vmatprep.subr.mxu0 0.0
        %3740 = vmatpush1.xpose.msra.mxu0 %v3716
        %3741 = vmatprep.subr.mxu0 0.0
        %3742 = vmatpush1.xpose.msra.mxu0 %v3719
        %3743 = vmatprep.subr.mxu0 0.0
        %3744 = vmatpush1.xpose.msra.mxu0 %v3722
        %3745 = vmatprep.subr.mxu0 0.0
        %3746 = vmatpush1.xpose.msra.mxu0 %v3725
        %3747 = vmatprep.subr.mxu0 0.0
        %3748 = vmatpush1.xpose.msra.mxu0 %v3728
        %3749 = vmatprep.subr.mxu0 0.0
        %3750 = vmatpush1.xpose.msra.mxu0 %v3731
        %3751 = vmatprep.subr.mxu0 0.0
        %3752 = vmatpush1.xpose.msra.mxu0 %v3734
        %3753 = vmatprep.subr.mxu0 0.0
        %3754 = vmatpush1.xpose.msra.mxu0 %v3737
        %3755 = vmatprep.subr.mxu0 0.0
        %3756 = vmatpush1.xpose.msra.mxu0 0.0
        %3757 = vmatprep.subr.mxu0 0.0
        %3758 = vmatpush1.xpose.msra.mxu0 0.0
        %3759 = vmatprep.subr.mxu0 0.0
        %3760 = vmatpush1.xpose.msra.mxu0 0.0
        %3761 = vmatprep.subr.mxu0 0.0
        %3762 = vmatpush1.xpose.msra.mxu0 0.0
        %3763 = vmatprep.subr.mxu0 0.0
        %3764 = vmatpush1.xpose.msra.mxu0 0.0
        %3765 = vmatprep.subr.mxu0 0.0
        %3766 = vmatpush1.xpose.msra.mxu0 0.0
        %3767 = vmatprep.subr.mxu0 0.0
        %3768 = vmatpush1.xpose.msra.mxu0 0.0
        %3769 = vmatprep.subr.mxu0 0.0
        %3770 = vmatpush1.xpose.msra.mxu0 0.0
        %3771 = vmatprep.subr.mxu0 0.0
        %3772 = vmatpush1.xpose.msra.mxu0 0.0
        %3773 = vmatprep.subr.mxu0 0.0
        %3774 = vmatpush1.xpose.msra.mxu0 0.0
        %3775 = vmatprep.subr.mxu0 0.0
        %3776 = vmatpush1.xpose.msra.mxu0 0.0
        %3777 = vmatprep.subr.mxu0 0.0
        %3778 = vmatpush1.xpose.msra.mxu0 0.0
        %3779 = vmatprep.subr.mxu0 0.0
        %3780 = vmatpush1.xpose.msra.mxu0 0.0
        %3781 = vmatprep.subr.mxu0 0.0
        %3782 = vmatpush1.xpose.msra.mxu0 0.0
        %3783 = vmatprep.subr.mxu0 0.0
        %3784 = vmatpush1.xpose.msra.mxu0 0.0
        %3785 = vmatprep.subr.mxu0 0.0
        %3786 = vmatpush1.xpose.msra.mxu0 0.0
        %3787 = vmatprep.subr.mxu0 0.0
        %3788 = vmatpush1.xpose.msra.mxu0 0.0
        %3789 = vmatprep.subr.mxu0 0.0
        %3790 = vmatpush1.xpose.msra.mxu0 0.0
        %3791 = vmatprep.subr.mxu0 0.0
        %3792 = vmatpush1.xpose.msra.mxu0 0.0
        %3793 = vmatprep.subr.mxu0 0.0
        %3794 = vmatpush1.xpose.msra.mxu0 0.0
        %3795 = vmatprep.subr.mxu0 0.0
        %3796 = vmatpush1.xpose.msra.mxu0 0.0
        %3797 = vmatprep.subr.mxu0 0.0
        %3798 = vmatpush1.xpose.msra.mxu0 0.0
        %3799 = vmatprep.subr.mxu0 0.0
        %3800 = vmatpush1.xpose.msra.mxu0 0.0
        %3801 = vmatprep.subr.mxu0 0.0
        %3802 = vmatpush1.xpose.msra.mxu0 0.0
        %3803 = vmatprep.mubr.f32.mxu0 0.0
        %3804 = vmatmul.mubr.f32.gmra.mrb[0].mxu0 %v3692
        %v3805 = vpop.f32.mrb[0].mxu0
        %v3806 = vadd.f32 0.0, %v3805
        %v3807 = vpop.f32.mrb[0].mxu0
        %3808 = vmatprep.mubr.f32.mxu0 0.0
        %3809 = vmatmul.mubr.f32.gmra.mrb[0].mxu0 %v3695
        %v3810 = vpop.f32.mrb[0].mxu0
        %v3811 = vadd.f32 0.0, %v3810
        %v3812 = vpop.f32.mrb[0].mxu0
        %3813 = vmatprep.mubr.f32.mxu0 0.0
        %3814 = vmatmul.mubr.f32.gmra.mrb[0].mxu0 %v3698
        %v3815 = vpop.f32.mrb[0].mxu0
        %v3816 = vadd.f32 0.0, %v3815
        %v3817 = vpop.f32.mrb[0].mxu0
        %3818 = vmatprep.mubr.f32.mxu0 0.0
        %3819 = vmatmul.mubr.f32.gmra.mrb[0].mxu0 %v3701
        %v3820 = vpop.f32.mrb[0].mxu0
        %v3821 = vadd.f32 0.0, %v3820
        %v3822 = vpop.f32.mrb[0].mxu0
        %3823 = vmatprep.mubr.f32.mxu0 0.0
        %3824 = vmatmul.mubr.f32.gmra.mrb[0].mxu0 %v3704
        %v3825 = vpop.f32.mrb[0].mxu0
        %v3826 = vadd.f32 0.0, %v3825
        %v3827 = vpop.f32.mrb[0].mxu0
        %3828 = vmatprep.mubr.f32.mxu0 0.0
        %3829 = vmatmul.mubr.f32.gmra.mrb[0].mxu0 %v3707
        %v3830 = vpop.f32.mrb[0].mxu0
        %v3831 = vadd.f32 0.0, %v3830
        %v3832 = vpop.f32.mrb[0].mxu0
        %3833 = vmatprep.mubr.f32.mxu0 0.0
        %3834 = vmatmul.mubr.f32.gmra.mrb[0].mxu0 %v3710
        %v3835 = vpop.f32.mrb[0].mxu0
        %v3836 = vadd.f32 0.0, %v3835
        %v3837 = vpop.f32.mrb[0].mxu0
        %3838 = vmatprep.mubr.f32.mxu0 0.0
        %3839 = vmatmul.mubr.f32.gmra.mrb[0].mxu0 %v3713
        %v3840 = vpop.f32.mrb[0].mxu0
        %v3841 = vadd.f32 0.0, %v3840
        %v3842 = vpop.f32.mrb[0].mxu0
        %3843 = vdwg.mxu0
        %v3844 = vmul.f32 %v3806, 0.35355338
        %v3845 = vmul.f32 %v3811, 0.35355338
        %v3846 = vmul.f32 %v3816, 0.35355338
        %v3847 = vmul.f32 %v3821, 0.35355338
        %v3848 = vmul.f32 %v3826, 0.35355338
        %v3849 = vmul.f32 %v3831, 0.35355338
        %v3850 = vmul.f32 %v3836, 0.35355338
        %v3851 = vmul.f32 %v3841, 0.35355338
        %v3852 = vsel %vm1255, %v3844, -inf
        %3853 = vmax.xlane.f32.xlu0 %v3852
        %v3854 = vpop.xlane.xlu0 %3853
        %v3855 = vsel %vm1255, %v3845, -inf
        %3856 = vmax.xlane.f32.xlu0 %v3855
        %v3857 = vpop.xlane.xlu0 %3856
        %v3858 = vsel %vm1255, %v3846, -inf
        %3859 = vmax.xlane.f32.xlu0 %v3858
        %v3860 = vpop.xlane.xlu0 %3859
        %v3861 = vsel %vm1255, %v3847, -inf
        %3862 = vmax.xlane.f32.xlu0 %v3861
        %v3863 = vpop.xlane.xlu0 %3862
        %v3864 = vsel %vm1255, %v3848, -inf
        %3865 = vmax.xlane.f32.xlu0 %v3864
        %v3866 = vpop.xlane.xlu0 %3865
        %v3867 = vsel %vm1255, %v3849, -inf
        %3868 = vmax.xlane.f32.xlu0 %v3867
        %v3869 = vpop.xlane.xlu0 %3868
        %v3870 = vsel %vm1255, %v3850, -inf
        %3871 = vmax.xlane.f32.xlu0 %v3870
        %v3872 = vpop.xlane.xlu0 %3871
        %v3873 = vsel %vm1255, %v3851, -inf
        %3874 = vmax.xlane.f32.xlu0 %v3873
        %v3875 = vpop.xlane.xlu0 %3874
        %v3876 = vsub.f32 %v3844, %v3854
        %v3877 = vsub.f32 %v3845, %v3857
        %v3878 = vsub.f32 %v3846, %v3860
        %v3879 = vsub.f32 %v3847, %v3863
        %v3880 = vsub.f32 %v3848, %v3866
        %v3881 = vsub.f32 %v3849, %v3869
        %v3882 = vsub.f32 %v3850, %v3872
        %v3883 = vsub.f32 %v3851, %v3875
        %v3884 = vmul.f32 %v3876, 1.442695
        %v3885 = vpow.pop %v3884
        %v3886 = vmul.f32 %v3877, 1.442695
        %v3887 = vpow.pop %v3886
        %v3888 = vmul.f32 %v3878, 1.442695
        %v3889 = vpow.pop %v3888
        %v3890 = vmul.f32 %v3879, 1.442695
        %v3891 = vpow.pop %v3890
        %v3892 = vmul.f32 %v3880, 1.442695
        %v3893 = vpow.pop %v3892
        %v3894 = vmul.f32 %v3881, 1.442695
        %v3895 = vpow.pop %v3894
        %v3896 = vmul.f32 %v3882, 1.442695
        %v3897 = vpow.pop %v3896
        %v3898 = vmul.f32 %v3883, 1.442695
        %v3899 = vpow.pop %v3898
        %v3900 = vsel %vm1255, %v3885, 0.0
        %3901 = vadd.xlane.f32.xlu0 %v3900
        %v3902 = vpop.xlane.xlu0 %3901
        %v3903 = vsel %vm1255, %v3887, 0.0
        %3904 = vadd.xlane.f32.xlu0 %v3903
        %v3905 = vpop.xlane.xlu0 %3904
        %v3906 = vsel %vm1255, %v3889, 0.0
        %3907 = vadd.xlane.f32.xlu0 %v3906
        %v3908 = vpop.xlane.xlu0 %3907
        %v3909 = vsel %vm1255, %v3891, 0.0
        %3910 = vadd.xlane.f32.xlu0 %v3909
        %v3911 = vpop.xlane.xlu0 %3910
        %v3912 = vsel %vm1255, %v3893, 0.0
        %3913 = vadd.xlane.f32.xlu0 %v3912
        %v3914 = vpop.xlane.xlu0 %3913
        %v3915 = vsel %vm1255, %v3895, 0.0
        %3916 = vadd.xlane.f32.xlu0 %v3915
        %v3917 = vpop.xlane.xlu0 %3916
        %v3918 = vsel %vm1255, %v3897, 0.0
        %3919 = vadd.xlane.f32.xlu0 %v3918
        %v3920 = vpop.xlane.xlu0 %3919
        %v3921 = vsel %vm1255, %v3899, 0.0
        %3922 = vadd.xlane.f32.xlu0 %v3921
        %v3923 = vpop.xlane.xlu0 %3922
        %v3924 = vrcp.pop %v3902
        %v3925 = vrcp.pop %v3905
        %v3926 = vrcp.pop %v3908
        %v3927 = vrcp.pop %v3911
        %v3928 = vrcp.pop %v3914
        %v3929 = vrcp.pop %v3917
        %v3930 = vrcp.pop %v3920
        %v3931 = vrcp.pop %v3923
        %v3932 = vmul.f32 %v3885, %v3924
        %v3933 = vmul.f32 %v3887, %v3925
        %v3934 = vmul.f32 %v3889, %v3926
        %v3935 = vmul.f32 %v3891, %v3927
        %v3936 = vmul.f32 %v3893, %v3928
        %v3937 = vmul.f32 %v3895, %v3929
        %v3938 = vmul.f32 %v3897, %v3930
        %v3939 = vmul.f32 %v3899, %v3931
        %v3941 = vsel %vm1255, %v3932, 0
        %v3944 = vsel %vm1255, %v3933, 0
        %v3947 = vsel %vm1255, %v3934, 0
        %v3950 = vsel %vm1255, %v3935, 0
        %v3953 = vsel %vm1255, %v3936, 0
        %v3956 = vsel %vm1255, %v3937, 0
        %v3959 = vsel %vm1255, %v3938, 0
        %v3962 = vsel %vm1255, %v3939, 0
        %3964 = vmatprep.subr.mxu0 0.0
        %3965 = vmatpush1.msra.mxu0 %v3653
        %3966 = vmatprep.subr.mxu0 0.0
        %3967 = vmatpush1.msra.mxu0 %v3658
        %3968 = vmatprep.subr.mxu0 0.0
        %3969 = vmatpush1.msra.mxu0 %v3663
        %3970 = vmatprep.subr.mxu0 0.0
        %3971 = vmatpush1.msra.mxu0 %v3668
        %3972 = vmatprep.subr.mxu0 0.0
        %3973 = vmatpush1.msra.mxu0 %v3673
        %3974 = vmatprep.subr.mxu0 0.0
        %3975 = vmatpush1.msra.mxu0 %v3678
        %3976 = vmatprep.subr.mxu0 0.0
        %3977 = vmatpush1.msra.mxu0 %v3683
        %3978 = vmatprep.subr.mxu0 0.0
        %3979 = vmatpush1.msra.mxu0 %v3688
        %3980 = vmatprep.subr.mxu0 0.0
        %3981 = vmatpush1.msra.mxu0 0.0
        %3982 = vmatprep.subr.mxu0 0.0
        %3983 = vmatpush1.msra.mxu0 0.0
        %3984 = vmatprep.subr.mxu0 0.0
        %3985 = vmatpush1.msra.mxu0 0.0
        %3986 = vmatprep.subr.mxu0 0.0
        %3987 = vmatpush1.msra.mxu0 0.0
        %3988 = vmatprep.subr.mxu0 0.0
        %3989 = vmatpush1.msra.mxu0 0.0
        %3990 = vmatprep.subr.mxu0 0.0
        %3991 = vmatpush1.msra.mxu0 0.0
        %3992 = vmatprep.subr.mxu0 0.0
        %3993 = vmatpush1.msra.mxu0 0.0
        %3994 = vmatprep.subr.mxu0 0.0
        %3995 = vmatpush1.msra.mxu0 0.0
        %3996 = vmatprep.subr.mxu0 0.0
        %3997 = vmatpush1.msra.mxu0 0.0
        %3998 = vmatprep.subr.mxu0 0.0
        %3999 = vmatpush1.msra.mxu0 0.0
        %4000 = vmatprep.subr.mxu0 0.0
        %4001 = vmatpush1.msra.mxu0 0.0
        %4002 = vmatprep.subr.mxu0 0.0
        %4003 = vmatpush1.msra.mxu0 0.0
        %4004 = vmatprep.subr.mxu0 0.0
        %4005 = vmatpush1.msra.mxu0 0.0
        %4006 = vmatprep.subr.mxu0 0.0
        %4007 = vmatpush1.msra.mxu0 0.0
        %4008 = vmatprep.subr.mxu0 0.0
        %4009 = vmatpush1.msra.mxu0 0.0
        %4010 = vmatprep.subr.mxu0 0.0
        %4011 = vmatpush1.msra.mxu0 0.0
        %4012 = vmatprep.subr.mxu0 0.0
        %4013 = vmatpush1.msra.mxu0 0.0
        %4014 = vmatprep.subr.mxu0 0.0
        %4015 = vmatpush1.msra.mxu0 0.0
        %4016 = vmatprep.subr.mxu0 0.0
        %4017 = vmatpush1.msra.mxu0 0.0
        %4018 = vmatprep.subr.mxu0 0.0
        %4019 = vmatpush1.msra.mxu0 0.0
        %4020 = vmatprep.subr.mxu0 0.0
        %4021 = vmatpush1.msra.mxu0 0.0
        %4022 = vmatprep.subr.mxu0 0.0
        %4023 = vmatpush1.msra.mxu0 0.0
        %4024 = vmatprep.subr.mxu0 0.0
        %4025 = vmatpush1.msra.mxu0 0.0
        %4026 = vmatprep.subr.mxu0 0.0
        %4027 = vmatpush1.msra.mxu0 0.0
        %4028 = vmatprep.mubr.f32.mxu0 0.0
        %4029 = vmatmul.mubr.f32.gmra.mrb[0].mxu0 %v3941
        %v4030 = vpop.f32.mrb[0].mxu0
        %v4031 = vadd.f32 0.0, %v4030
        %v4032 = vpop.f32.mrb[0].mxu0
        %4033 = vmatprep.mubr.f32.mxu0 0.0
        %4034 = vmatmul.mubr.f32.gmra.mrb[0].mxu0 %v3944
        %v4035 = vpop.f32.mrb[0].mxu0
        %v4036 = vadd.f32 0.0, %v4035
        %v4037 = vpop.f32.mrb[0].mxu0
        %4038 = vmatprep.mubr.f32.mxu0 0.0
        %4039 = vmatmul.mubr.f32.gmra.mrb[0].mxu0 %v3947
        %v4040 = vpop.f32.mrb[0].mxu0
        %v4041 = vadd.f32 0.0, %v4040
        %v4042 = vpop.f32.mrb[0].mxu0
        %4043 = vmatprep.mubr.f32.mxu0 0.0
        %4044 = vmatmul.mubr.f32.gmra.mrb[0].mxu0 %v3950
        %v4045 = vpop.f32.mrb[0].mxu0
        %v4046 = vadd.f32 0.0, %v4045
        %v4047 = vpop.f32.mrb[0].mxu0
        %4048 = vmatprep.mubr.f32.mxu0 0.0
        %4049 = vmatmul.mubr.f32.gmra.mrb[0].mxu0 %v3953
        %v4050 = vpop.f32.mrb[0].mxu0
        %v4051 = vadd.f32 0.0, %v4050
        %v4052 = vpop.f32.mrb[0].mxu0
        %4053 = vmatprep.mubr.f32.mxu0 0.0
        %4054 = vmatmul.mubr.f32.gmra.mrb[0].mxu0 %v3956
        %v4055 = vpop.f32.mrb[0].mxu0
        %v4056 = vadd.f32 0.0, %v4055
        %v4057 = vpop.f32.mrb[0].mxu0
        %4058 = vmatprep.mubr.f32.mxu0 0.0
        %4059 = vmatmul.mubr.f32.gmra.mrb[0].mxu0 %v3959
        %v4060 = vpop.f32.mrb[0].mxu0
        %v4061 = vadd.f32 0.0, %v4060
        %v4062 = vpop.f32.mrb[0].mxu0
        %4063 = vmatprep.mubr.f32.mxu0 0.0
        %4064 = vmatmul.mubr.f32.gmra.mrb[0].mxu0 %v3962
        %v4065 = vpop.f32.mrb[0].mxu0
        %v4066 = vadd.f32 0.0, %v4065
        %v4067 = vpop.f32.mrb[0].mxu0
        %4068 = vdwg.mxu0
        %s4069 = scalar_lea.vmem %s10, 24
        %v4070 = vld [vmem:[%s4069] sm:$0xff]
        %v4072 = vsel %vm1093, %v4031, 0
        %v4075 = vsel %vm1093, %v4036, 0
        %v4078 = vsel %vm1093, %v4041, 0
        %v4081 = vsel %vm1093, %v4046, 0
        %v4084 = vsel %vm1093, %v4051, 0
        %v4087 = vsel %vm1093, %v4056, 0
        %v4090 = vsel %vm1093, %v4061, 0
        %v4093 = vsel %vm1093, %v4066, 0
        %4095 = vmatprep.subr.mxu0 0.0
        %4096 = vmatpush1.msra.mxu0 %v4070
        %4097 = vmatprep.subr.mxu0 0.0
        %4098 = vmatpush1.msra.mxu0 0.0
        %4099 = vmatprep.subr.mxu0 0.0
        %4100 = vmatpush1.msra.mxu0 0.0
        %4101 = vmatprep.subr.mxu0 0.0
        %4102 = vmatpush1.msra.mxu0 0.0
        %4103 = vmatprep.subr.mxu0 0.0
        %4104 = vmatpush1.msra.mxu0 0.0
        %4105 = vmatprep.subr.mxu0 0.0
        %4106 = vmatpush1.msra.mxu0 0.0
        %4107 = vmatprep.subr.mxu0 0.0
        %4108 = vmatpush1.msra.mxu0 0.0
        %4109 = vmatprep.subr.mxu0 0.0
        %4110 = vmatpush1.msra.mxu0 0.0
        %4111 = vmatprep.subr.mxu0 0.0
        %4112 = vmatpush1.msra.mxu0 0.0
        %4113 = vmatprep.subr.mxu0 0.0
        %4114 = vmatpush1.msra.mxu0 0.0
        %4115 = vmatprep.subr.mxu0 0.0
        %4116 = vmatpush1.msra.mxu0 0.0
        %4117 = vmatprep.subr.mxu0 0.0
        %4118 = vmatpush1.msra.mxu0 0.0
        %4119 = vmatprep.subr.mxu0 0.0
        %4120 = vmatpush1.msra.mxu0 0.0
        %4121 = vmatprep.subr.mxu0 0.0
        %4122 = vmatpush1.msra.mxu0 0.0
        %4123 = vmatprep.subr.mxu0 0.0
        %4124 = vmatpush1.msra.mxu0 0.0
        %4125 = vmatprep.subr.mxu0 0.0
        %4126 = vmatpush1.msra.mxu0 0.0
        %4127 = vmatprep.subr.mxu0 0.0
        %4128 = vmatpush1.msra.mxu0 0.0
        %4129 = vmatprep.subr.mxu0 0.0
        %4130 = vmatpush1.msra.mxu0 0.0
        %4131 = vmatprep.subr.mxu0 0.0
        %4132 = vmatpush1.msra.mxu0 0.0
        %4133 = vmatprep.subr.mxu0 0.0
        %4134 = vmatpush1.msra.mxu0 0.0
        %4135 = vmatprep.subr.mxu0 0.0
        %4136 = vmatpush1.msra.mxu0 0.0
        %4137 = vmatprep.subr.mxu0 0.0
        %4138 = vmatpush1.msra.mxu0 0.0
        %4139 = vmatprep.subr.mxu0 0.0
        %4140 = vmatpush1.msra.mxu0 0.0
        %4141 = vmatprep.subr.mxu0 0.0
        %4142 = vmatpush1.msra.mxu0 0.0
        %4143 = vmatprep.subr.mxu0 0.0
        %4144 = vmatpush1.msra.mxu0 0.0
        %4145 = vmatprep.subr.mxu0 0.0
        %4146 = vmatpush1.msra.mxu0 0.0
        %4147 = vmatprep.subr.mxu0 0.0
        %4148 = vmatpush1.msra.mxu0 0.0
        %4149 = vmatprep.subr.mxu0 0.0
        %4150 = vmatpush1.msra.mxu0 0.0
        %4151 = vmatprep.subr.mxu0 0.0
        %4152 = vmatpush1.msra.mxu0 0.0
        %4153 = vmatprep.subr.mxu0 0.0
        %4154 = vmatpush1.msra.mxu0 0.0
        %4155 = vmatprep.subr.mxu0 0.0
        %4156 = vmatpush1.msra.mxu0 0.0
        %4157 = vmatprep.subr.mxu0 0.0
        %4158 = vmatpush1.msra.mxu0 0.0
        %4159 = vmatprep.mubr.f32.mxu0 0.0
        %4160 = vmatmul.mubr.f32.gmra.mrb[0].mxu0 %v4072
        %v4161 = vpop.f32.mrb[0].mxu0
        %v4162 = vadd.f32 0.0, %v4161
        %v4163 = vpop.f32.mrb[0].mxu0
        %4164 = vmatprep.mubr.f32.mxu0 0.0
        %4165 = vmatmul.mubr.f32.gmra.mrb[0].mxu0 %v4075
        %v4166 = vpop.f32.mrb[0].mxu0
        %v4167 = vadd.f32 0.0, %v4166
        %v4168 = vpop.f32.mrb[0].mxu0
        %4169 = vmatprep.mubr.f32.mxu0 0.0
        %4170 = vmatmul.mubr.f32.gmra.mrb[0].mxu0 %v4078
        %v4171 = vpop.f32.mrb[0].mxu0
        %v4172 = vadd.f32 0.0, %v4171
        %v4173 = vpop.f32.mrb[0].mxu0
        %4174 = vmatprep.mubr.f32.mxu0 0.0
        %4175 = vmatmul.mubr.f32.gmra.mrb[0].mxu0 %v4081
        %v4176 = vpop.f32.mrb[0].mxu0
        %v4177 = vadd.f32 0.0, %v4176
        %v4178 = vpop.f32.mrb[0].mxu0
        %4179 = vmatprep.mubr.f32.mxu0 0.0
        %4180 = vmatmul.mubr.f32.gmra.mrb[0].mxu0 %v4084
        %v4181 = vpop.f32.mrb[0].mxu0
        %v4182 = vadd.f32 0.0, %v4181
        %v4183 = vpop.f32.mrb[0].mxu0
        %4184 = vmatprep.mubr.f32.mxu0 0.0
        %4185 = vmatmul.mubr.f32.gmra.mrb[0].mxu0 %v4087
        %v4186 = vpop.f32.mrb[0].mxu0
        %v4187 = vadd.f32 0.0, %v4186
        %v4188 = vpop.f32.mrb[0].mxu0
        %4189 = vmatprep.mubr.f32.mxu0 0.0
        %4190 = vmatmul.mubr.f32.gmra.mrb[0].mxu0 %v4090
        %v4191 = vpop.f32.mrb[0].mxu0
        %v4192 = vadd.f32 0.0, %v4191
        %v4193 = vpop.f32.mrb[0].mxu0
        %4194 = vmatprep.mubr.f32.mxu0 0.0
        %4195 = vmatmul.mubr.f32.gmra.mrb[0].mxu0 %v4093
        %v4196 = vpop.f32.mrb[0].mxu0
        %v4197 = vadd.f32 0.0, %v4196
        %v4198 = vpop.f32.mrb[0].mxu0
        %4199 = vdwg.mxu0
        %v4200 = vadd.f32 %v3329, %v4162
        %v4201 = vadd.f32 %v3330, %v4167
        %v4202 = vadd.f32 %v3331, %v4172
        %v4203 = vadd.f32 %v3332, %v4177
        %v4204 = vadd.f32 %v3333, %v4182
        %v4205 = vadd.f32 %v3334, %v4187
        %v4206 = vadd.f32 %v3335, %v4192
        %v4207 = vadd.f32 %v3336, %v4197
        %v4208 = vld [vmem:[%s11] sm:$0x1]
        %v4210 = vlaneseq
        %v4211 = vshrl.u32 %v4210, 7
        %v4212 = vsub.s32 0, %v4211
        %v4213 = vrot.slane %v4208, %v4212
        %v4215 = vadd.f32 %v4200, %v4213
        %v4216 = vadd.f32 %v4201, %v4213
        %v4217 = vadd.f32 %v4202, %v4213
        %v4218 = vadd.f32 %v4203, %v4213
        %v4219 = vadd.f32 %v4204, %v4213
        %v4220 = vadd.f32 %v4205, %v4213
        %v4221 = vadd.f32 %v4206, %v4213
        %v4222 = vadd.f32 %v4207, %v4213
        %v4223 = vstv %s584
        %v4224 = vmul.f32 %v4223, %v4215
        %v4225 = vmul.f32 %v4223, %v4216
        %v4226 = vmul.f32 %v4223, %v4217
        %v4227 = vmul.f32 %v4223, %v4218
        %v4228 = vmul.f32 %v4223, %v4219
        %v4229 = vmul.f32 %v4223, %v4220
        %v4230 = vmul.f32 %v4223, %v4221
        %v4231 = vmul.f32 %v4223, %v4222
        %v4232 = vadd.f32 %v575, %v4224
        %v4233 = vadd.f32 %v576, %v4225
        %v4234 = vadd.f32 %v577, %v4226
        %v4235 = vadd.f32 %v578, %v4227
        %v4236 = vadd.f32 %v579, %v4228
        %v4237 = vadd.f32 %v580, %v4229
        %v4238 = vadd.f32 %v581, %v4230
        %v4239 = vadd.f32 %v582, %v4231
        %v4240 = vld [vmem:[%s12] sm:$0x1]
        %v4241 = vld [vmem:[%s13] sm:$0x1]
        %v4242 = vsel %vm587, %v4232, 0.0
        %4243 = vadd.xlane.f32.xlu0 %v4242
        %v4244 = vpop.xlane.xlu0 %4243
        %v4245 = vsel %vm587, %v4233, 0.0
        %4246 = vadd.xlane.f32.xlu0 %v4245
        %v4247 = vpop.xlane.xlu0 %4246
        %v4248 = vsel %vm587, %v4234, 0.0
        %4249 = vadd.xlane.f32.xlu0 %v4248
        %v4250 = vpop.xlane.xlu0 %4249
        %v4251 = vsel %vm587, %v4235, 0.0
        %4252 = vadd.xlane.f32.xlu0 %v4251
        %v4253 = vpop.xlane.xlu0 %4252
        %v4254 = vsel %vm587, %v4236, 0.0
        %4255 = vadd.xlane.f32.xlu0 %v4254
        %v4256 = vpop.xlane.xlu0 %4255
        %v4257 = vsel %vm587, %v4237, 0.0
        %4258 = vadd.xlane.f32.xlu0 %v4257
        %v4259 = vpop.xlane.xlu0 %4258
        %v4260 = vsel %vm587, %v4238, 0.0
        %4261 = vadd.xlane.f32.xlu0 %v4260
        %v4262 = vpop.xlane.xlu0 %4261
        %v4263 = vsel %vm587, %v4239, 0.0
        %4264 = vadd.xlane.f32.xlu0 %v4263
        %v4265 = vpop.xlane.xlu0 %4264
        %v4266 = vmul.f32 %v4244, %v612
        %v4267 = vmul.f32 %v4247, %v612
        %v4268 = vmul.f32 %v4250, %v612
        %v4269 = vmul.f32 %v4253, %v612
        %v4270 = vmul.f32 %v4256, %v612
        %v4271 = vmul.f32 %v4259, %v612
        %v4272 = vmul.f32 %v4262, %v612
        %v4273 = vmul.f32 %v4265, %v612
        %v4274 = vsub.f32 %v4232, %v4266
        %v4275 = vsub.f32 %v4233, %v4267
        %v4276 = vsub.f32 %v4234, %v4268
        %v4277 = vsub.f32 %v4235, %v4269
        %v4278 = vsub.f32 %v4236, %v4270
        %v4279 = vsub.f32 %v4237, %v4271
        %v4280 = vsub.f32 %v4238, %v4272
        %v4281 = vsub.f32 %v4239, %v4273
        %v4282 = vmul.f32 %v4274, %v4274
        %v4283 = vmul.f32 %v4275, %v4275
        %v4284 = vmul.f32 %v4276, %v4276
        %v4285 = vmul.f32 %v4277, %v4277
        %v4286 = vmul.f32 %v4278, %v4278
        %v4287 = vmul.f32 %v4279, %v4279
        %v4288 = vmul.f32 %v4280, %v4280
        %v4289 = vmul.f32 %v4281, %v4281
        %v4290 = vsel %vm587, %v4282, 0.0
        %4291 = vadd.xlane.f32.xlu0 %v4290
        %v4292 = vpop.xlane.xlu0 %4291
        %v4293 = vsel %vm587, %v4283, 0.0
        %4294 = vadd.xlane.f32.xlu0 %v4293
        %v4295 = vpop.xlane.xlu0 %4294
        %v4296 = vsel %vm587, %v4284, 0.0
        %4297 = vadd.xlane.f32.xlu0 %v4296
        %v4298 = vpop.xlane.xlu0 %4297
        %v4299 = vsel %vm587, %v4285, 0.0
        %4300 = vadd.xlane.f32.xlu0 %v4299
        %v4301 = vpop.xlane.xlu0 %4300
        %v4302 = vsel %vm587, %v4286, 0.0
        %4303 = vadd.xlane.f32.xlu0 %v4302
        %v4304 = vpop.xlane.xlu0 %4303
        %v4305 = vsel %vm587, %v4287, 0.0
        %4306 = vadd.xlane.f32.xlu0 %v4305
        %v4307 = vpop.xlane.xlu0 %4306
        %v4308 = vsel %vm587, %v4288, 0.0
        %4309 = vadd.xlane.f32.xlu0 %v4308
        %v4310 = vpop.xlane.xlu0 %4309
        %v4311 = vsel %vm587, %v4289, 0.0
        %4312 = vadd.xlane.f32.xlu0 %v4311
        %v4313 = vpop.xlane.xlu0 %4312
        %v4314 = vmul.f32 %v4292, %v612
        %v4315 = vmul.f32 %v4295, %v612
        %v4316 = vmul.f32 %v4298, %v612
        %v4317 = vmul.f32 %v4301, %v612
        %v4318 = vmul.f32 %v4304, %v612
        %v4319 = vmul.f32 %v4307, %v612
        %v4320 = vmul.f32 %v4310, %v612
        %v4321 = vmul.f32 %v4313, %v612
        %v4322 = vadd.f32 %v4314, 1e-05
        %v4323 = vadd.f32 %v4315, 1e-05
        %v4324 = vadd.f32 %v4316, 1e-05
        %v4325 = vadd.f32 %v4317, 1e-05
        %v4326 = vadd.f32 %v4318, 1e-05
        %v4327 = vadd.f32 %v4319, 1e-05
        %v4328 = vadd.f32 %v4320, 1e-05
        %v4329 = vadd.f32 %v4321, 1e-05
        %v4330 = vrsqrt.pop %v4322
        %v4331 = vrsqrt.pop %v4323
        %v4332 = vrsqrt.pop %v4324
        %v4333 = vrsqrt.pop %v4325
        %v4334 = vrsqrt.pop %v4326
        %v4335 = vrsqrt.pop %v4327
        %v4336 = vrsqrt.pop %v4328
        %v4337 = vrsqrt.pop %v4329
        %v4338 = vmul.f32 %v4274, %v4330
        %v4339 = vmul.f32 %v4275, %v4331
        %v4340 = vmul.f32 %v4276, %v4332
        %v4341 = vmul.f32 %v4277, %v4333
        %v4342 = vmul.f32 %v4278, %v4334
        %v4343 = vmul.f32 %v4279, %v4335
        %v4344 = vmul.f32 %v4280, %v4336
        %v4345 = vmul.f32 %v4281, %v4337
        %v4347 = vlaneseq
        %v4348 = vshrl.u32 %v4347, 7
        %v4349 = vsub.s32 0, %v4348
        %v4350 = vrot.slane %v4240, %v4349
        %v4352 = vmul.f32 %v4338, %v4350
        %v4353 = vmul.f32 %v4339, %v4350
        %v4354 = vmul.f32 %v4340, %v4350
        %v4355 = vmul.f32 %v4341, %v4350
        %v4356 = vmul.f32 %v4342, %v4350
        %v4357 = vmul.f32 %v4343, %v4350
        %v4358 = vmul.f32 %v4344, %v4350
        %v4359 = vmul.f32 %v4345, %v4350
        %v4361 = vlaneseq
        %v4362 = vshrl.u32 %v4361, 7
        %v4363 = vsub.s32 0, %v4362
        %v4364 = vrot.slane %v4241, %v4363
        %v4366 = vadd.f32 %v4352, %v4364
        %v4367 = vadd.f32 %v4353, %v4364
        %v4368 = vadd.f32 %v4354, %v4364
        %v4369 = vadd.f32 %v4355, %v4364
        %v4370 = vadd.f32 %v4356, %v4364
        %v4371 = vadd.f32 %v4357, %v4364
        %v4372 = vadd.f32 %v4358, %v4364
        %v4373 = vadd.f32 %v4359, %v4364
        %v4374 = vld [vmem:[%s14] sm:$0xff]
        %v4375 = vld [vmem:[%s14 + $0x8] sm:$0xff]
        %v4376 = vld [vmem:[%s14 + $0x10] sm:$0xff]
        %v4377 = vld [vmem:[%s14 + $0x18] sm:$0xff]
        %v4378 = vld [vmem:[%s15] sm:$0x1]
        %v4380 = vlaneseq
        %v4381 = vshrl.u32 %v4380, 7
        %v4382 = vsub.s32 0, %v4381
        %v4383 = vrot.slane %v4378, %v4382
        %v4386 = vsel %vm587, %v4366, 0
        %v4389 = vsel %vm587, %v4367, 0
        %v4392 = vsel %vm587, %v4368, 0
        %v4395 = vsel %vm587, %v4369, 0
        %v4398 = vsel %vm587, %v4370, 0
        %v4401 = vsel %vm587, %v4371, 0
        %v4404 = vsel %vm587, %v4372, 0
        %v4407 = vsel %vm587, %v4373, 0
        %4409 = vmatprep.subr.mxu0 0.0
        %4410 = vmatpush1.msra.mxu0 %v4374
        %4411 = vmatprep.subr.mxu0 0.0
        %4412 = vmatpush1.msra.mxu0 %v4375
        %4413 = vmatprep.subr.mxu0 0.0
        %4414 = vmatpush1.msra.mxu0 %v4376
        %4415 = vmatprep.subr.mxu0 0.0
        %4416 = vmatpush1.msra.mxu0 %v4377
        %4417 = vmatprep.subr.mxu0 0.0
        %4418 = vmatpush1.msra.mxu0 0.0
        %4419 = vmatprep.subr.mxu0 0.0
        %4420 = vmatpush1.msra.mxu0 0.0
        %4421 = vmatprep.subr.mxu0 0.0
        %4422 = vmatpush1.msra.mxu0 0.0
        %4423 = vmatprep.subr.mxu0 0.0
        %4424 = vmatpush1.msra.mxu0 0.0
        %4425 = vmatprep.subr.mxu0 0.0
        %4426 = vmatpush1.msra.mxu0 0.0
        %4427 = vmatprep.subr.mxu0 0.0
        %4428 = vmatpush1.msra.mxu0 0.0
        %4429 = vmatprep.subr.mxu0 0.0
        %4430 = vmatpush1.msra.mxu0 0.0
        %4431 = vmatprep.subr.mxu0 0.0
        %4432 = vmatpush1.msra.mxu0 0.0
        %4433 = vmatprep.subr.mxu0 0.0
        %4434 = vmatpush1.msra.mxu0 0.0
        %4435 = vmatprep.subr.mxu0 0.0
        %4436 = vmatpush1.msra.mxu0 0.0
        %4437 = vmatprep.subr.mxu0 0.0
        %4438 = vmatpush1.msra.mxu0 0.0
        %4439 = vmatprep.subr.mxu0 0.0
        %4440 = vmatpush1.msra.mxu0 0.0
        %4441 = vmatprep.subr.mxu0 0.0
        %4442 = vmatpush1.msra.mxu0 0.0
        %4443 = vmatprep.subr.mxu0 0.0
        %4444 = vmatpush1.msra.mxu0 0.0
        %4445 = vmatprep.subr.mxu0 0.0
        %4446 = vmatpush1.msra.mxu0 0.0
        %4447 = vmatprep.subr.mxu0 0.0
        %4448 = vmatpush1.msra.mxu0 0.0
        %4449 = vmatprep.subr.mxu0 0.0
        %4450 = vmatpush1.msra.mxu0 0.0
        %4451 = vmatprep.subr.mxu0 0.0
        %4452 = vmatpush1.msra.mxu0 0.0
        %4453 = vmatprep.subr.mxu0 0.0
        %4454 = vmatpush1.msra.mxu0 0.0
        %4455 = vmatprep.subr.mxu0 0.0
        %4456 = vmatpush1.msra.mxu0 0.0
        %4457 = vmatprep.subr.mxu0 0.0
        %4458 = vmatpush1.msra.mxu0 0.0
        %4459 = vmatprep.subr.mxu0 0.0
        %4460 = vmatpush1.msra.mxu0 0.0
        %4461 = vmatprep.subr.mxu0 0.0
        %4462 = vmatpush1.msra.mxu0 0.0
        %4463 = vmatprep.subr.mxu0 0.0
        %4464 = vmatpush1.msra.mxu0 0.0
        %4465 = vmatprep.subr.mxu0 0.0
        %4466 = vmatpush1.msra.mxu0 0.0
        %4467 = vmatprep.subr.mxu0 0.0
        %4468 = vmatpush1.msra.mxu0 0.0
        %4469 = vmatprep.subr.mxu0 0.0
        %4470 = vmatpush1.msra.mxu0 0.0
        %4471 = vmatprep.subr.mxu0 0.0
        %4472 = vmatpush1.msra.mxu0 0.0
        %4473 = vmatprep.mubr.f32.mxu0 0.0
        %4474 = vmatmul.mubr.f32.gmra.mrb[0].mxu0 %v4386
        %v4475 = vpop.f32.mrb[0].mxu0
        %v4476 = vadd.f32 %v4383, %v4475
        %v4477 = vpop.f32.mrb[0].mxu0
        %4478 = vmatprep.mubr.f32.mxu0 0.0
        %4479 = vmatmul.mubr.f32.gmra.mrb[0].mxu0 %v4389
        %v4480 = vpop.f32.mrb[0].mxu0
        %v4481 = vadd.f32 %v4383, %v4480
        %v4482 = vpop.f32.mrb[0].mxu0
        %4483 = vmatprep.mubr.f32.mxu0 0.0
        %4484 = vmatmul.mubr.f32.gmra.mrb[0].mxu0 %v4392
        %v4485 = vpop.f32.mrb[0].mxu0
        %v4486 = vadd.f32 %v4383, %v4485
        %v4487 = vpop.f32.mrb[0].mxu0
        %4488 = vmatprep.mubr.f32.mxu0 0.0
        %4489 = vmatmul.mubr.f32.gmra.mrb[0].mxu0 %v4395
        %v4490 = vpop.f32.mrb[0].mxu0
        %v4491 = vadd.f32 %v4383, %v4490
        %v4492 = vpop.f32.mrb[0].mxu0
        %4493 = vmatprep.mubr.f32.mxu0 0.0
        %4494 = vmatmul.mubr.f32.gmra.mrb[0].mxu0 %v4398
        %v4495 = vpop.f32.mrb[0].mxu0
        %v4496 = vadd.f32 %v4383, %v4495
        %v4497 = vpop.f32.mrb[0].mxu0
        %4498 = vmatprep.mubr.f32.mxu0 0.0
        %4499 = vmatmul.mubr.f32.gmra.mrb[0].mxu0 %v4401
        %v4500 = vpop.f32.mrb[0].mxu0
        %v4501 = vadd.f32 %v4383, %v4500
        %v4502 = vpop.f32.mrb[0].mxu0
        %4503 = vmatprep.mubr.f32.mxu0 0.0
        %4504 = vmatmul.mubr.f32.gmra.mrb[0].mxu0 %v4404
        %v4505 = vpop.f32.mrb[0].mxu0
        %v4506 = vadd.f32 %v4383, %v4505
        %v4507 = vpop.f32.mrb[0].mxu0
        %4508 = vmatprep.mubr.f32.mxu0 0.0
        %4509 = vmatmul.mubr.f32.gmra.mrb[0].mxu0 %v4407
        %v4510 = vpop.f32.mrb[0].mxu0
        %v4511 = vadd.f32 %v4383, %v4510
        %v4512 = vpop.f32.mrb[0].mxu0
        %4513 = vdwg.mxu0
        %v4514 = vmax.f32 %v4476, 0.0
        %v4515 = vmax.f32 %v4481, 0.0
        %v4516 = vmax.f32 %v4486, 0.0
        %v4517 = vmax.f32 %v4491, 0.0
        %v4518 = vmax.f32 %v4496, 0.0
        %v4519 = vmax.f32 %v4501, 0.0
        %v4520 = vmax.f32 %v4506, 0.0
        %v4521 = vmax.f32 %v4511, 0.0
        %v4522 = vld [vmem:[%s16] sm:$0xff]
        %v4523 = vld [vmem:[%s16 + $0x8] sm:$0xff]
        %v4524 = vld [vmem:[%s16 + $0x10] sm:$0xff]
        %v4525 = vld [vmem:[%s16 + $0x18] sm:$0xff]
        %v4526 = vld [vmem:[%s16 + $0x20] sm:$0xff]
        %v4527 = vld [vmem:[%s16 + $0x28] sm:$0xff]
        %v4528 = vld [vmem:[%s16 + $0x30] sm:$0xff]
        %v4529 = vld [vmem:[%s16 + $0x38] sm:$0xff]
        %v4530 = vld [vmem:[%s17] sm:$0x1]
        %v4532 = vlaneseq
        %v4533 = vshrl.u32 %v4532, 7
        %v4534 = vsub.s32 0, %v4533
        %v4535 = vrot.slane %v4530, %v4534
        %v4538 = vsel %vm1255, %v4514, 0
        %v4541 = vsel %vm1255, %v4515, 0
        %v4544 = vsel %vm1255, %v4516, 0
        %v4547 = vsel %vm1255, %v4517, 0
        %v4550 = vsel %vm1255, %v4518, 0
        %v4553 = vsel %vm1255, %v4519, 0
        %v4556 = vsel %vm1255, %v4520, 0
        %v4559 = vsel %vm1255, %v4521, 0
        %4561 = vmatprep.subr.mxu0 0.0
        %4562 = vmatpush1.msra.mxu0 %v4522
        %4563 = vmatprep.subr.mxu0 0.0
        %4564 = vmatpush1.msra.mxu0 %v4523
        %4565 = vmatprep.subr.mxu0 0.0
        %4566 = vmatpush1.msra.mxu0 %v4524
        %4567 = vmatprep.subr.mxu0 0.0
        %4568 = vmatpush1.msra.mxu0 %v4525
        %4569 = vmatprep.subr.mxu0 0.0
        %4570 = vmatpush1.msra.mxu0 %v4526
        %4571 = vmatprep.subr.mxu0 0.0
        %4572 = vmatpush1.msra.mxu0 %v4527
        %4573 = vmatprep.subr.mxu0 0.0
        %4574 = vmatpush1.msra.mxu0 %v4528
        %4575 = vmatprep.subr.mxu0 0.0
        %4576 = vmatpush1.msra.mxu0 %v4529
        %4577 = vmatprep.subr.mxu0 0.0
        %4578 = vmatpush1.msra.mxu0 0.0
        %4579 = vmatprep.subr.mxu0 0.0
        %4580 = vmatpush1.msra.mxu0 0.0
        %4581 = vmatprep.subr.mxu0 0.0
        %4582 = vmatpush1.msra.mxu0 0.0
        %4583 = vmatprep.subr.mxu0 0.0
        %4584 = vmatpush1.msra.mxu0 0.0
        %4585 = vmatprep.subr.mxu0 0.0
        %4586 = vmatpush1.msra.mxu0 0.0
        %4587 = vmatprep.subr.mxu0 0.0
        %4588 = vmatpush1.msra.mxu0 0.0
        %4589 = vmatprep.subr.mxu0 0.0
        %4590 = vmatpush1.msra.mxu0 0.0
        %4591 = vmatprep.subr.mxu0 0.0
        %4592 = vmatpush1.msra.mxu0 0.0
        %4593 = vmatprep.subr.mxu0 0.0
        %4594 = vmatpush1.msra.mxu0 0.0
        %4595 = vmatprep.subr.mxu0 0.0
        %4596 = vmatpush1.msra.mxu0 0.0
        %4597 = vmatprep.subr.mxu0 0.0
        %4598 = vmatpush1.msra.mxu0 0.0
        %4599 = vmatprep.subr.mxu0 0.0
        %4600 = vmatpush1.msra.mxu0 0.0
        %4601 = vmatprep.subr.mxu0 0.0
        %4602 = vmatpush1.msra.mxu0 0.0
        %4603 = vmatprep.subr.mxu0 0.0
        %4604 = vmatpush1.msra.mxu0 0.0
        %4605 = vmatprep.subr.mxu0 0.0
        %4606 = vmatpush1.msra.mxu0 0.0
        %4607 = vmatprep.subr.mxu0 0.0
        %4608 = vmatpush1.msra.mxu0 0.0
        %4609 = vmatprep.subr.mxu0 0.0
        %4610 = vmatpush1.msra.mxu0 0.0
        %4611 = vmatprep.subr.mxu0 0.0
        %4612 = vmatpush1.msra.mxu0 0.0
        %4613 = vmatprep.subr.mxu0 0.0
        %4614 = vmatpush1.msra.mxu0 0.0
        %4615 = vmatprep.subr.mxu0 0.0
        %4616 = vmatpush1.msra.mxu0 0.0
        %4617 = vmatprep.subr.mxu0 0.0
        %4618 = vmatpush1.msra.mxu0 0.0
        %4619 = vmatprep.subr.mxu0 0.0
        %4620 = vmatpush1.msra.mxu0 0.0
        %4621 = vmatprep.subr.mxu0 0.0
        %4622 = vmatpush1.msra.mxu0 0.0
        %4623 = vmatprep.subr.mxu0 0.0
        %4624 = vmatpush1.msra.mxu0 0.0
        %4625 = vmatprep.mubr.f32.mxu0 0.0
        %4626 = vmatmul.mubr.f32.gmra.mrb[0].mxu0 %v4538
        %v4627 = vpop.f32.mrb[0].mxu0
        %v4628 = vadd.f32 %v4535, %v4627
        %v4629 = vpop.f32.mrb[0].mxu0
        %4630 = vmatprep.mubr.f32.mxu0 0.0
        %4631 = vmatmul.mubr.f32.gmra.mrb[0].mxu0 %v4541
        %v4632 = vpop.f32.mrb[0].mxu0
        %v4633 = vadd.f32 %v4535, %v4632
        %v4634 = vpop.f32.mrb[0].mxu0
        %4635 = vmatprep.mubr.f32.mxu0 0.0
        %4636 = vmatmul.mubr.f32.gmra.mrb[0].mxu0 %v4544
        %v4637 = vpop.f32.mrb[0].mxu0
        %v4638 = vadd.f32 %v4535, %v4637
        %v4639 = vpop.f32.mrb[0].mxu0
        %4640 = vmatprep.mubr.f32.mxu0 0.0
        %4641 = vmatmul.mubr.f32.gmra.mrb[0].mxu0 %v4547
        %v4642 = vpop.f32.mrb[0].mxu0
        %v4643 = vadd.f32 %v4535, %v4642
        %v4644 = vpop.f32.mrb[0].mxu0
        %4645 = vmatprep.mubr.f32.mxu0 0.0
        %4646 = vmatmul.mubr.f32.gmra.mrb[0].mxu0 %v4550
        %v4647 = vpop.f32.mrb[0].mxu0
        %v4648 = vadd.f32 %v4535, %v4647
        %v4649 = vpop.f32.mrb[0].mxu0
        %4650 = vmatprep.mubr.f32.mxu0 0.0
        %4651 = vmatmul.mubr.f32.gmra.mrb[0].mxu0 %v4553
        %v4652 = vpop.f32.mrb[0].mxu0
        %v4653 = vadd.f32 %v4535, %v4652
        %v4654 = vpop.f32.mrb[0].mxu0
        %4655 = vmatprep.mubr.f32.mxu0 0.0
        %4656 = vmatmul.mubr.f32.gmra.mrb[0].mxu0 %v4556
        %v4657 = vpop.f32.mrb[0].mxu0
        %v4658 = vadd.f32 %v4535, %v4657
        %v4659 = vpop.f32.mrb[0].mxu0
        %4660 = vmatprep.mubr.f32.mxu0 0.0
        %4661 = vmatmul.mubr.f32.gmra.mrb[0].mxu0 %v4559
        %v4662 = vpop.f32.mrb[0].mxu0
        %v4663 = vadd.f32 %v4535, %v4662
        %v4664 = vpop.f32.mrb[0].mxu0
        %4665 = vdwg.mxu0
        %v4666 = vmax.f32 %v4628, 0.0
        %v4667 = vmax.f32 %v4633, 0.0
        %v4668 = vmax.f32 %v4638, 0.0
        %v4669 = vmax.f32 %v4643, 0.0
        %v4670 = vmax.f32 %v4648, 0.0
        %v4671 = vmax.f32 %v4653, 0.0
        %v4672 = vmax.f32 %v4658, 0.0
        %v4673 = vmax.f32 %v4663, 0.0
        %v4674 = vmul.f32 %v4223, %v4666
        %v4675 = vmul.f32 %v4223, %v4667
        %v4676 = vmul.f32 %v4223, %v4668
        %v4677 = vmul.f32 %v4223, %v4669
        %v4678 = vmul.f32 %v4223, %v4670
        %v4679 = vmul.f32 %v4223, %v4671
        %v4680 = vmul.f32 %v4223, %v4672
        %v4681 = vmul.f32 %v4223, %v4673
        %v4682 = vadd.f32 %v4232, %v4674
        %v4683 = vadd.f32 %v4233, %v4675
        %v4684 = vadd.f32 %v4234, %v4676
        %v4685 = vadd.f32 %v4235, %v4677
        %v4686 = vadd.f32 %v4236, %v4678
        %v4687 = vadd.f32 %v4237, %v4679
        %v4688 = vadd.f32 %v4238, %v4680
        %v4689 = vadd.f32 %v4239, %v4681
        %4690 = vst.msk [vmem:[%s569] sm:$0xff] %vm587, %v4682
        %4691 = vst.msk [vmem:[%s569 + $0x8] sm:$0xff] %vm587, %v4683
        %4692 = vst.msk [vmem:[%s569 + $0x10] sm:$0xff] %vm587, %v4684
        %4693 = vst.msk [vmem:[%s569 + $0x18] sm:$0xff] %vm587, %v4685
        %4694 = vst.msk [vmem:[%s569 + $0x20] sm:$0xff] %vm587, %v4686
        %4695 = vst.msk [vmem:[%s569 + $0x28] sm:$0xff] %vm587, %v4687
        %4696 = vst.msk [vmem:[%s569 + $0x30] sm:$0xff] %vm587, %v4688
        %4697 = vst.msk [vmem:[%s569 + $0x38] sm:$0xff] %vm587, %v4689
        %s4698 = sand.u32 %s424, 1
        %s4699 = scalar_lea.sflag [#allocation4], %s4698
        %s4700 = sand.u32 %s424, 1
        %s4701 = smul.addr %s4700, 64
        %s4702 = scalar_lea.vmem [#allocation3], %s4701
        // Predicated region
        $region93: #{hierarchical_layer_forward.1} parent=91 // pred_check
          %p4703 = pneg %p434
        $region94: #{hierarchical_layer_forward.1} parent=91 // pred_check_branch
          %4705 = sbr.rel (%p4703) target = $region96
        $region95: #{hierarchical_layer_forward.1} parent=91 // pred_region
          %s4707 = ssub.s32 1024, 1024
          %4708 = vsyncadd %s4699, %s4707
          %s4709 = smul.addr %s33, 8
          %s4710 = smul.addr %s4709, 128
          %s4711 = scalar_lea.hbm %s18, %s4710
          %s4712 = sshll.u32 %s4702, 4
          %s4713 = int_to_ptr.vmem [resolvable:$true] %s4712
          %4718 = dma.vmem_to_hbm [thread:$0]  %s4713, 1024, %s4711, %s4699, 128, 128, 8
        $region96: #{hierarchical_layer_forward.1} parent=91 // pred_fallthru
          _
      $region92: #{hierarchical_layer_forward.1} parent=5 // pred_fallthru
        _
      %p4719 = scmp.le.s32.totalorder 2, %s28
      // Predicated region
      $region97: #{hierarchical_layer_forward.1} parent=5 // pred_check
        %p4720 = pneg %p4719
      $region98: #{hierarchical_layer_forward.1} parent=5 // pred_check_branch
        %4722 = sbr.rel (%p4720) target = $region100
      $region99: #{hierarchical_layer_forward.1} parent=5 // pred_region
        %s4723 = ssub.s32 %s28, 2
        // Predicated region
        $region101: #{hierarchical_layer_forward.1} parent=99 // pred_check
          %p4724 = pneg %p440
        $region102: #{hierarchical_layer_forward.1} parent=99 // pred_check_branch
          %4726 = sbr.rel (%p4724) target = $region104
        $region103: #{hierarchical_layer_forward.1} parent=99 // pred_region
          %s4727 = sand.u32 %s425, 1
          %s4728 = scalar_lea.sflag [#allocation4], %s4727
          %s4729 = sand.u32 %s425, 1
          %s4730 = smul.addr %s4729, 64
          %s4731 = scalar_lea.vmem [#allocation3], %s4730
          %4732 = dma.done %s4728, 1024
        $region104: #{hierarchical_layer_forward.1} parent=99 // pred_fallthru
          _
      $region100: #{hierarchical_layer_forward.1} parent=5 // pred_fallthru
        _
    $region6: #{hierarchical_layer_forward.1} parent=1 // loop_footer
      %s32 = sadd.s32 1, %s28
    $region7: #{hierarchical_layer_forward.1} parent=1 // loop_footer_branch
      %27 = sbr.rel target = $region3
    $region8: #{hierarchical_layer_forward.1} parent=1 // loop_exit
      _
    %4733 = vsyncpa [#allocation4], 1
    %s4734 = scalar_lea.sflag [#allocation4], 1
    %4735 = vsyncpa %s4734, 1

</llo_original>
